<compile_context>
chip_gen: v7x
topology: tpu7x:2x2x1
jax: 0.10.0
libtpu: 0.0.40
codegen_flags: <defaults>
</compile_context>

<pallas_src>
import functools
import math

import jax
import jax.numpy as jnp
from jax import lax
from jax.experimental import pallas as pl
from jax.experimental.pallas import tpu as pltpu


# --------------------- chip-aware budgets & small helpers -------------------


def _tpu_vmem_bytes():
    """Physical VMEM per TensorCore (falls back to the v7x 64 MiB if unknown)."""
    try:
        return int(pltpu.get_tpu_info().vmem_capacity_bytes)
    except Exception:
        return 64 * 1024 * 1024


_VMEM_CAP = _tpu_vmem_bytes()
# ~48 MiB scoped budget on 64-MiB v7x parts, ~96 MiB on 128-MiB v5e/v6e parts.
_VMEM_LIMIT = min(int(_VMEM_CAP * 3 // 4), 112 * 1024 * 1024)
# Bigger row tiles amortize per-grid-step overhead on the 128-MiB chips.
_MAX_TILE_M = 512 if _VMEM_CAP >= 96 * 1024 * 1024 else 256


def _pick_tile_m(m, dtype):
    """Row-tile choice, dtype-aware (sublane minimum 8/16/32 for 4/2/1-byte).

    Small M: use the full row block on a single grid step (no pipeline overhead).
    Large M: biggest sublane-aligned tile <= _MAX_TILE_M that divides M.
    """
    sub = {4: 8, 2: 16, 1: 32}.get(jnp.dtype(dtype).itemsize, 8)
    if m <= _MAX_TILE_M:
        return m
    t = (_MAX_TILE_M // sub) * sub
    while t >= sub:
        if m % t == 0:
            return t
        t -= sub
    return m


def _nbytes(*arrays):
    return int(sum(a.size * jnp.dtype(a.dtype).itemsize for a in arrays))


# Single-buffering of grid-constant blocks (pl.Buffered(1)) is probed at runtime
# so the script always runs even on Pallas builds without pipeline_mode support.
_BUFFERED1 = False


def _probe_buffered1():
    """Must be called OUTSIDE any jit trace (done in __main__ before jitting)."""
    global _BUFFERED1

    def _probe_kernel(x_ref, o_ref):
        o_ref[...] = x_ref[...] * 2.0

    try:
        f = pl.pallas_call(
            _probe_kernel,
            out_shape=jax.ShapeDtypeStruct((16, 128), jnp.float32),
            grid=(2,),
            in_specs=[pl.BlockSpec((8, 128), lambda i: (0, 0),
                                   pipeline_mode=pl.Buffered(1))],
            out_specs=pl.BlockSpec((8, 128), lambda i: (i, 0)),
        )
        jax.block_until_ready(f(jnp.zeros((8, 128), jnp.float32)))
        _BUFFERED1 = True
    except Exception:
        _BUFFERED1 = False
    return _BUFFERED1


def _resident_spec(shape):
    """BlockSpec for a weight/bias that never changes across the grid.

    Pallas double-buffers every input by default; a never-changing block only
    needs one buffer -- on v7x's 64 MiB VMEM this halves the resident-weight
    footprint (e.g. FFN-out weights at BERT scale)."""
    idx = lambda *_: (0,) * len(shape)
    if _BUFFERED1:
        return pl.BlockSpec(shape, idx, pipeline_mode=pl.Buffered(1))
    return pl.BlockSpec(shape, idx)


# ------------------------------ Pallas kernels ------------------------------


def _layernorm_f32(h, g_ref, b_ref, eps):
    """LayerNorm epilogue in f32; h is f32, returns f32."""
    mu = jnp.mean(h, axis=-1, keepdims=True)
    var = jnp.mean(jnp.square(h - mu), axis=-1, keepdims=True)
    inv = lax.rsqrt(var + eps)
    return (h - mu) * inv * g_ref[...].astype(jnp.float32) + b_ref[...].astype(jnp.float32)


def _emb_ln_kernel(w_ref, p_ref, t_ref, g_ref, b_ref, o_ref, *, eps):
    """LayerNorm(word + position + token_type) -- embedding adds fused in."""
    h = (w_ref[...].astype(jnp.float32)
         + p_ref[...].astype(jnp.float32)
         + t_ref[...].astype(jnp.float32))
    o_ref[...] = _layernorm_f32(h, g_ref, b_ref, eps).astype(o_ref.dtype)


def embed_layernorm(word_e, pos_e, type_e, gamma, beta, eps=1e-12):
    M, N = word_e.shape
    tm = _pick_tile_m(M, word_e.dtype)
    return pl.pallas_call(
        functools.partial(_emb_ln_kernel, eps=eps),
        out_shape=jax.ShapeDtypeStruct((M, N), word_e.dtype),
        grid=(M // tm,),
        in_specs=[
            pl.BlockSpec((tm, N), lambda i: (i, 0)),
            pl.BlockSpec((tm, N), lambda i: (i, 0)),
            pl.BlockSpec((tm, N), lambda i: (i, 0)),
            _resident_spec((1, N)),
            _resident_spec((1, N)),
        ],
        out_specs=pl.BlockSpec((tm, N), lambda i: (i, 0)),
        compiler_params=pltpu.CompilerParams(
            dimension_semantics=("parallel",),
            vmem_limit_bytes=_VMEM_LIMIT,
        ),
    )(word_e, pos_e, type_e, gamma.reshape(1, N), beta.reshape(1, N))


def _linear_kernel(x_ref, w_ref, b_ref, o_ref, *, activation):
    """out = act(x @ w + b) for one row tile.  Accumulation + epilogue in f32."""
    y = jnp.dot(x_ref[...], w_ref[...], preferred_element_type=jnp.float32)
    y = y + b_ref[...].astype(jnp.float32)
    if activation == "gelu":
        # TODO(synk): HF BERT uses erf-GELU; tanh-approx GELU used here (EUP-friendly).
        y = jax.nn.gelu(y, approximate=True)
    o_ref[...] = y.astype(o_ref.dtype)


def linear(x, w, b, activation=None):
    """Row-tiled dense layer: grid over M ("parallel"), full K/N per step,
    weight/bias resident (single-buffered when supported)."""
    M, K = x.shape
    N = w.shape[1]
    tm = _pick_tile_m(M, x.dtype)
    cost = pl.CostEstimate(
        flops=2 * M * K * N,
        transcendentals=M * N if activation == "gelu" else 0,
        bytes_accessed=_nbytes(x, w, b) + M * N * jnp.dtype(x.dtype).itemsize,
    )
    return pl.pallas_call(
        functools.partial(_linear_kernel, activation=activation),
        out_shape=jax.ShapeDtypeStruct((M, N), x.dtype),
        grid=(M // tm,),
        in_specs=[
            pl.BlockSpec((tm, K), lambda i: (i, 0)),
            _resident_spec((K, N)),
            _resident_spec((1, N)),
        ],
        out_specs=pl.BlockSpec((tm, N), lambda i: (i, 0)),
        compiler_params=pltpu.CompilerParams(
            dimension_semantics=("parallel",),
            vmem_limit_bytes=_VMEM_LIMIT,
        ),
        cost_estimate=cost,
    )(x, w, b.reshape(1, N))


def _proj_residual_ln_f32(x_ref, w_ref, b_ref, r_ref, g_ref, beta_ref, eps):
    h = jnp.dot(x_ref[...], w_ref[...], preferred_element_type=jnp.float32)
    h = h + b_ref[...].astype(jnp.float32) + r_ref[...].astype(jnp.float32)
    return _layernorm_f32(h, g_ref, beta_ref, eps)


def _linear_add_ln_kernel(x_ref, w_ref, b_ref, r_ref, g_ref, beta_ref, o_ref, *, eps):
    """out = LayerNorm((x @ w + b) + residual) * gamma + beta, fused epilogue."""
    y = _proj_residual_ln_f32(x_ref, w_ref, b_ref, r_ref, g_ref, beta_ref, eps)
    o_ref[...] = y.astype(o_ref.dtype)


def _linear_add_ln_head_kernel(x_ref, w_ref, b_ref, r_ref, g_ref, beta_ref,
                               hw_ref, hb_ref, o_ref, h_ref, *, eps):
    """Same as above, plus a fused lane-dense head projection of the LN output
    (used on the last layer for the padded QA head -- saves a full extra pass
    over sequence_output)."""
    y = _proj_residual_ln_f32(x_ref, w_ref, b_ref, r_ref, g_ref, beta_ref, eps)
    o_ref[...] = y.astype(o_ref.dtype)
    logits = jnp.dot(y, hw_ref[...].astype(jnp.float32),
                     preferred_element_type=jnp.float32)
    h_ref[...] = (logits + hb_ref[...].astype(jnp.float32)).astype(h_ref.dtype)


def linear_add_ln(x, w, b, residual, gamma, beta, eps=1e-12,
                  head_w=None, head_b=None):
    """Dense projection + bias + residual + LayerNorm in one pallas_call.
    If head_w/head_b are given, also emits head = LN_out @ head_w + head_b
    as a second lane-dense output."""
    M, K = x.shape
    N = w.shape[1]
    tm = _pick_tile_m(M, x.dtype)
    base_in_specs = [
        pl.BlockSpec((tm, K), lambda i: (i, 0)),
        _resident_spec((K, N)),
        _resident_spec((1, N)),
        pl.BlockSpec((tm, N), lambda i: (i, 0)),
        _resident_spec((1, N)),
        _resident_spec((1, N)),
    ]
    base_args = (x, w, b.reshape(1, N), residual,
                 gamma.reshape(1, N), beta.reshape(1, N))
    common = dict(
        compiler_params=pltpu.CompilerParams(
            dimension_semantics=("parallel",),
            vmem_limit_bytes=_VMEM_LIMIT,
        ),
    )
    if head_w is None:
        cost = pl.CostEstimate(
            flops=2 * M * K * N + 8 * M * N, transcendentals=M,
            bytes_accessed=_nbytes(x, w, b, residual, gamma, beta)
            + M * N * jnp.dtype(x.dtype).itemsize)
        return pl.pallas_call(
            functools.partial(_linear_add_ln_kernel, eps=eps),
            out_shape=jax.ShapeDtypeStruct((M, N), x.dtype),
            grid=(M // tm,),
            in_specs=base_in_specs,
            out_specs=pl.BlockSpec((tm, N), lambda i: (i, 0)),
            cost_estimate=cost, **common,
        )(*base_args)

    NP = head_w.shape[1]
    cost = pl.CostEstimate(
        flops=2 * M * K * N + 8 * M * N + 2 * M * N * NP, transcendentals=M,
        bytes_accessed=_nbytes(x, w, b, residual, gamma, beta, head_w, head_b)
        + M * (N + NP) * jnp.dtype(x.dtype).itemsize)
    return pl.pallas_call(
        functools.partial(_linear_add_ln_head_kernel, eps=eps),
        out_shape=(jax.ShapeDtypeStruct((M, N), x.dtype),
                   jax.ShapeDtypeStruct((M, NP), jnp.float32)),
        grid=(M // tm,),
        in_specs=base_in_specs + [_resident_spec((N, NP)), _resident_spec((1, NP))],
        out_specs=(pl.BlockSpec((tm, N), lambda i: (i, 0)),
                   pl.BlockSpec((tm, NP), lambda i: (i, 0))),
        cost_estimate=cost, **common,
    )(*base_args, head_w, head_b.reshape(1, NP))


def _attn_kernel(x_ref, wqkv_ref, bqkv_ref, mask_ref, o_ref, *,
                 n_heads, head_dim, hidden, scale):
    """One batch element: fused QKV projection + all heads of
    softmax(q k^T * scale + mask) @ v, with a single lane-dense output store.

    The (H, 3H) QKV weight stays resident in VMEM (single-buffered when
    supported), so the (B*S, 3H) activations never round-trip through HBM.
    """
    x = x_ref[0]                                              # (S, H)
    qkv = jnp.dot(x, wqkv_ref[...], preferred_element_type=jnp.float32)
    qkv = (qkv + bqkv_ref[...].astype(jnp.float32)).astype(x.dtype)   # (S, 3H)
    bias = mask_ref[0].astype(jnp.float32)                    # (1, S) additive key mask

    ctx = []
    # Static unroll is fine for small n_heads; for BERT-scale head counts
    # (n_heads >= 12) switch to lax.fori_loop / a batched-head dot_general on a
    # per-head-contiguous weight layout to bound live ranges and keep the MXU fed.
    for h in range(n_heads):
        q = qkv[:, h * head_dim:(h + 1) * head_dim]
        k = qkv[:, hidden + h * head_dim:hidden + (h + 1) * head_dim]
        v = qkv[:, 2 * hidden + h * head_dim:2 * hidden + (h + 1) * head_dim]
        # contract last dims directly -> no explicit K transpose materialised
        s = lax.dot_general(q, k, (((1,), (1,)), ((), ())),
                            preferred_element_type=jnp.float32) * scale + bias
        s = s - jnp.max(s, axis=-1, keepdims=True)
        p = jnp.exp(s)
        p = p * pl.reciprocal(jnp.sum(p, axis=-1, keepdims=True), approx=True)
        ctx.append(jnp.dot(p.astype(v.dtype), v, preferred_element_type=jnp.float32))
    # ONE lane-dense (S, H) store (avoids per-head 64-wide masked vst.msk stores).
    o_ref[0] = jnp.concatenate(ctx, axis=-1).astype(o_ref.dtype)


def fused_qkv_attention(x_bsh, wqkv, bqkv, mask_bias, n_heads, head_dim):
    """x_bsh: (B, S, H); wqkv: (H, 3H); mask_bias: (B, 1, S) additive (0 / -1e9)."""
    B, S, H = x_bsh.shape
    hidden = n_heads * head_dim
    assert hidden == H
    # TODO(synk): for B == 1 on v7x (2 TensorCores), add a second parallel grid
    # axis over query-row tiles / head groups so both cores are used.
    cost = pl.CostEstimate(
        flops=2 * B * S * H * 3 * H + 4 * B * n_heads * S * S * head_dim,
        transcendentals=B * n_heads * S * S,
        bytes_accessed=_nbytes(x_bsh, wqkv, bqkv, mask_bias)
        + B * S * H * jnp.dtype(x_bsh.dtype).itemsize,
    )
    return pl.pallas_call(
        functools.partial(_attn_kernel, n_heads=n_heads, head_dim=head_dim,
                          hidden=hidden, scale=1.0 / math.sqrt(head_dim)),
        out_shape=jax.ShapeDtypeStruct((B, S, H), x_bsh.dtype),
        grid=(B,),
        in_specs=[
            pl.BlockSpec((1, S, H), lambda b: (b, 0, 0)),
            _resident_spec((H, 3 * H)),
            _resident_spec((1, 3 * H)),
            pl.BlockSpec((1, 1, S), lambda b: (b, 0, 0)),
        ],
        out_specs=pl.BlockSpec((1, S, H), lambda b: (b, 0, 0)),
        compiler_params=pltpu.CompilerParams(
            dimension_semantics=("parallel",),
            vmem_limit_bytes=_VMEM_LIMIT,
        ),
        cost_estimate=cost,
    )(x_bsh, wqkv, bqkv.reshape(1, 3 * H), mask_bias)


def _pooler_cls_kernel(cls_ref, pw_ref, pb_ref, cw_ref, cb_ref, o_ref):
    """pooled = tanh(CLS @ Wp + bp); out = sigmoid(pooled @ Wc_pad + bc_pad)."""
    pooled = jnp.tanh(
        jnp.dot(cls_ref[...], pw_ref[...], preferred_element_type=jnp.float32)
        + pb_ref[...].astype(jnp.float32))
    logits = jnp.dot(pooled, cw_ref[...].astype(jnp.float32),
                     preferred_element_type=jnp.float32) + cb_ref[...].astype(jnp.float32)
    # The PyTorch reference applies torch.sigmoid to the classifier output.
    o_ref[...] = jax.nn.sigmoid(logits).astype(o_ref.dtype)


def pooler_classifier(cls_tokens, pooler_w, pooler_b, cls_w_pad, cls_b_pad):
    B, H = cls_tokens.shape
    NP = cls_w_pad.shape[1]
    return pl.pallas_call(
        _pooler_cls_kernel,
        out_shape=jax.ShapeDtypeStruct((B, NP), jnp.float32),
        grid=(1,),
        in_specs=[
            pl.BlockSpec((B, H), lambda i: (0, 0)),
            pl.BlockSpec((H, H), lambda i: (0, 0)),
            pl.BlockSpec((1, H), lambda i: (0, 0)),
            pl.BlockSpec((H, NP), lambda i: (0, 0)),
            pl.BlockSpec((1, NP), lambda i: (0, 0)),
        ],
        out_specs=pl.BlockSpec((B, NP), lambda i: (0, 0)),
        compiler_params=pltpu.CompilerParams(vmem_limit_bytes=_VMEM_LIMIT),
    )(cls_tokens, pooler_w, pooler_b.reshape(1, H), cls_w_pad, cls_b_pad.reshape(1, NP))


# --------------------------- synthetic BERT model --------------------------


class Config:
    vocab_size = 100
    type_vocab_size = 2
    max_position_embeddings = 16
    hidden_size = 128
    num_layers = 2
    num_heads = 2
    intermediate_size = 256
    layer_norm_eps = 1e-12
    head_pad = 128        # lane-dense padding for the 2-wide / 1-wide QA heads
    # bfloat16 storage (MXU-peak path on v6e/v7x, half the HBM bytes).  Kernels
    # accumulate and compute LayerNorm / softmax statistics in f32, and tiling
    # is dtype-aware, so jnp.float32 also works if exact f32 numerics are needed.
    dtype = jnp.bfloat16


def init_params(key, cfg):
    H, I, NP = cfg.hidden_size, cfg.intermediate_size, cfg.head_pad
    std = 0.02
    dt = cfg.dtype

    def nrm(k, shape):
        return (std * jax.random.normal(k, shape, dtype=jnp.float32)).astype(dt)

    keys = iter(jax.random.split(key, 64))
    qa_w = nrm(next(keys), (H, 2))
    cls_w = nrm(next(keys), (H, 1))
    p = {
        "word_emb": nrm(next(keys), (cfg.vocab_size, H)),
        "pos_emb": nrm(next(keys), (cfg.max_position_embeddings, H)),
        "type_emb": nrm(next(keys), (cfg.type_vocab_size, H)),
        "emb_ln_g": jnp.ones((H,), dt),
        "emb_ln_b": jnp.zeros((H,), dt),
        "pooler_w": nrm(next(keys), (H, H)),
        "pooler_b": jnp.zeros((H,), dt),
        # QA / verification heads zero-padded to a lane-dense 128-wide output
        # (cols 0..1 = start/end logits; col 0 of classifier = verification).
        "qa_w_pad": jnp.zeros((H, NP), dt).at[:, :2].set(qa_w),
        "qa_b_pad": jnp.zeros((NP,), dt),
        "cls_w_pad": jnp.zeros((H, NP), dt).at[:, :1].set(cls_w),
        "cls_b_pad": jnp.zeros((NP,), dt),
        "layers": [],
    }
    for _ in range(cfg.num_layers):
        layer = {
            # fused QKV: one (H, 3H) matmul, done inside the attention kernel
            "qkv_w": nrm(next(keys), (H, 3 * H)),
            "qkv_b": jnp.zeros((3 * H,), dt),
            "o_w": nrm(next(keys), (H, H)), "o_b": jnp.zeros((H,), dt),
            "attn_ln_g": jnp.ones((H,), dt), "attn_ln_b": jnp.zeros((H,), dt),
            "ffn_in_w": nrm(next(keys), (H, I)), "ffn_in_b": jnp.zeros((I,), dt),
            "ffn_out_w": nrm(next(keys), (I, H)), "ffn_out_b": jnp.zeros((H,), dt),
            "ffn_ln_g": jnp.ones((H,), dt), "ffn_ln_b": jnp.zeros((H,), dt),
        }
        p["layers"].append(layer)
    return p


def bert_qa_forward(params, input_ids, attention_mask, token_type_ids, cfg):
    B, S = input_ids.shape
    H = cfg.hidden_size
    nH = cfg.num_heads
    Dh = H // nH
    M = B * S

    # ---- embeddings: gathers in plain JAX, add + LayerNorm fused in Pallas ----
    pos_ids = jnp.arange(S, dtype=jnp.int32)
    word_e = params["word_emb"][input_ids].reshape(M, H)
    pos_e = jnp.broadcast_to(params["pos_emb"][pos_ids][None, :, :], (B, S, H)).reshape(M, H)
    type_e = params["type_emb"][token_type_ids].reshape(M, H)
    x = embed_layernorm(word_e, pos_e, type_e,
                        params["emb_ln_g"], params["emb_ln_b"],
                        eps=cfg.layer_norm_eps)                # (M, H)

    # additive attention-mask bias over key positions: 0 keep, -1e9 masked
    mask_bias = ((1.0 - attention_mask.astype(jnp.float32)) * -1e9).reshape(B, 1, S)

    # ---- transformer layers (activations stay [B*S, H] / [B, S, H] on device) ----
    qa_pad = None
    n_layers = len(params["layers"])
    for li, lyr in enumerate(params["layers"]):
        ctx = fused_qkv_attention(x.reshape(B, S, H), lyr["qkv_w"], lyr["qkv_b"],
                                  mask_bias, nH, Dh).reshape(M, H)
        x = linear_add_ln(ctx, lyr["o_w"], lyr["o_b"], x,
                          lyr["attn_ln_g"], lyr["attn_ln_b"],
                          eps=cfg.layer_norm_eps)
        ffn = linear(x, lyr["ffn_in_w"], lyr["ffn_in_b"], activation="gelu")
        if li == n_layers - 1:
            # fuse the padded QA-head projection into the final epilogue kernel
            x, qa_pad = linear_add_ln(ffn, lyr["ffn_out_w"], lyr["ffn_out_b"], x,
                                      lyr["ffn_ln_g"], lyr["ffn_ln_b"],
                                      eps=cfg.layer_norm_eps,
                                      head_w=params["qa_w_pad"],
                                      head_b=params["qa_b_pad"])
        else:
            x = linear_add_ln(ffn, lyr["ffn_out_w"], lyr["ffn_out_b"], x,
                              lyr["ffn_ln_g"], lyr["ffn_ln_b"],
                              eps=cfg.layer_norm_eps)

    sequence_output = x                                        # (M, H)

    # ---- QA head: slice the 2 real columns out of the fused lane-dense output ----
    logits = qa_pad[:, :2].reshape(B, S, 2)                    # already f32
    start_logits = logits[..., 0]                              # (B, S)
    end_logits = logits[..., 1]                                # (B, S)

    # ---- pooler (tanh on CLS) + classifier (sigmoid), fused in one kernel ----
    cls_tokens = sequence_output.reshape(B, S, H)[:, 0, :]     # (B, H)
    # dropout(pooled_output): eval-mode identity.
    ver_pad = pooler_classifier(cls_tokens, params["pooler_w"], params["pooler_b"],
                                params["cls_w_pad"], params["cls_b_pad"])
    verification_logits = ver_pad[:, :1]                       # (B, 1) sigmoid prob
    return start_logits, end_logits, verification_logits


# --------------------------------- main -------------------------------------

if __name__ == "__main__":
    cfg = Config()
    # Decide (outside any trace) whether single-buffered resident weight blocks
    # are supported by this Pallas build; falls back to default double-buffering.
    _probe_buffered1()

    key = jax.random.PRNGKey(0)
    k_param, k_ids = jax.random.split(key)

    B, S = 2, 8
    params = init_params(k_param, cfg)

    input_ids = jax.random.randint(k_ids, (B, S), 0, cfg.vocab_size, dtype=jnp.int32)
    attention_mask = jnp.array(
        [[1, 1, 1, 1, 1, 1, 1, 1],
         [1, 1, 1, 1, 1, 1, 0, 0]], dtype=jnp.int32)
    token_type_ids = jnp.array(
        [[0, 0, 0, 0, 1, 1, 1, 1],
         [0, 0, 0, 1, 1, 1, 1, 1]], dtype=jnp.int32)

    fwd = jax.jit(functools.partial(bert_qa_forward, cfg=cfg))
    start_logits, end_logits, verification_logits = fwd(
        params, input_ids, attention_mask, token_type_ids)
    jax.block_until_ready((start_logits, end_logits, verification_logits))

    assert start_logits.shape == (B, S)
    assert end_logits.shape == (B, S)
    assert verification_logits.shape == (B, 1)
    assert bool(jnp.all(jnp.isfinite(start_logits)))
    assert bool(jnp.all(jnp.isfinite(end_logits)))
    assert bool(jnp.all((verification_logits >= 0) & (verification_logits <= 1)))
    print("KERNEL_OK")
</pallas_src>

<mosaic_0001>
module attributes {stable_mosaic.version = 11 : i64} {
  func.func @_probe_kernel(%arg0: i32, %arg1: memref<8x128xf32, #tpu.memory_space<vmem>>, %arg2: memref<8x128xf32, #tpu.memory_space<vmem>>) attributes {dimension_semantics = [#tpu.dimension_semantics<arbitrary>], iteration_bounds = array<i64: 2>, scalar_prefetch = 0 : i64, scratch_operands = 0 : i64, tpu.core_type = #tpu.core_type<tc>, window_params = [{pipeline_mode = #tpu.pipeline_mode<synchronous>, transform_indices = @transform_0, window_bounds = array<i64: 8, 128>}, {transform_indices = @transform_1, window_bounds = array<i64: 8, 128>}]} {
    %c0 = arith.constant 0 : index
    %c0_0 = arith.constant 0 : index
    %0 = vector.load %arg1[%c0, %c0_0] : memref<8x128xf32, #tpu.memory_space<vmem>>, vector<8x128xf32>
    %cst = arith.constant 2.000000e+00 : f32
    %1 = vector.broadcast %cst : f32 to vector<8x128xf32>
    %2 = arith.mulf %0, %1 : vector<8x128xf32>
    %c0_1 = arith.constant 0 : index
    %c0_2 = arith.constant 0 : index
    %3 = vector.load %arg2[%c0_1, %c0_2] : memref<8x128xf32, #tpu.memory_space<vmem>>, vector<8x128xf32>
    tpu.vector_store %arg2[%c0_1, %c0_2], %2 {strides = array<i32>} : memref<8x128xf32, #tpu.memory_space<vmem>>, vector<8x128xf32>,
    return
  }
  func.func @transform_0(%arg0: i32) -> (i32, i32) {
    %c0_i32 = arith.constant 0 : i32
    %c0_i32_0 = arith.constant 0 : i32
    %c0_i32_1 = arith.constant 0 : i32
    return %c0_i32, %c0_i32_0 : i32, i32
  }
  func.func @transform_1(%arg0: i32) -> (i32, i32) {
    %c0_i32 = arith.constant 0 : i32
    %c0_i32_0 = arith.constant 0 : i32
    return %arg0, %c0_i32 : i32, i32
  }
}

module attributes {stable_mosaic.version = 11 : i64} {
  func.func @_linear_kernel(%arg0: i32, %arg1: memref<16x128xbf16, #tpu.memory_space<vmem>>, %arg2: memref<128x256xbf16, #tpu.memory_space<vmem>>, %arg3: memref<1x256xbf16, #tpu.memory_space<vmem>>, %arg4: memref<16x256xbf16, #tpu.memory_space<vmem>>) attributes {dimension_semantics = [#tpu.dimension_semantics<parallel>], iteration_bounds = array<i64: 1>, scalar_prefetch = 0 : i64, scratch_operands = 0 : i64, tpu.core_type = #tpu.core_type<tc>, window_params = [{transform_indices = @transform_0, window_bounds = array<i64: 16, 128>}, {pipeline_mode = #tpu.pipeline_mode<synchronous>, transform_indices = @transform_1, window_bounds = array<i64: 128, 256>}, {pipeline_mode = #tpu.pipeline_mode<synchronous>, transform_indices = @transform_2, window_bounds = array<i64: 1, 256>}, {transform_indices = @transform_3, window_bounds = array<i64: 16, 256>}]} {
    %c0 = arith.constant 0 : index
    %c0_0 = arith.constant 0 : index
    %0 = vector.load %arg1[%c0, %c0_0] : memref<16x128xbf16, #tpu.memory_space<vmem>>, vector<16x128xbf16>
    %c0_1 = arith.constant 0 : index
    %c0_2 = arith.constant 0 : index
    %1 = vector.load %arg2[%c0_1, %c0_2] : memref<128x256xbf16, #tpu.memory_space<vmem>>, vector<128x256xbf16>
    %cst = arith.constant dense<0.000000e+00> : vector<16x256xf32>
    %2 = tpu.matmul %0, %1, %cst {dimension_numbers = #tpu.dot_dimension_numbers<[1], [0], [0], [1], [0, 0, 1, 1], [], []>} : vector<16x128xbf16>, vector<128x256xbf16>, vector<16x256xf32> -> vector<16x256xf32>
    %c0_3 = arith.constant 0 : index
    %c0_4 = arith.constant 0 : index
    %3 = vector.load %arg3[%c0_3, %c0_4] : memref<1x256xbf16, #tpu.memory_space<vmem>>, vector<1x256xbf16>
    %4 = arith.extf %3 : vector<1x256xbf16> to vector<1x256xf32>
    %5 = vector.broadcast %4 : vector<1x256xf32> to vector<16x256xf32>
    %6 = arith.addf %2, %5 : vector<16x256xf32>
    %7 = arith.mulf %6, %6 : vector<16x256xf32>
    %8 = arith.mulf %6, %7 : vector<16x256xf32>
    %cst_5 = arith.constant 4.471500e-02 : f32
    %9 = vector.broadcast %cst_5 : f32 to vector<16x256xf32>
    %10 = arith.mulf %9, %8 : vector<16x256xf32>
    %11 = arith.addf %6, %10 : vector<16x256xf32>
    %cst_6 = arith.constant 0.797884583 : f32
    %12 = vector.broadcast %cst_6 : f32 to vector<16x256xf32>
    %13 = arith.mulf %12, %11 : vector<16x256xf32>
    %14 = math.tanh %13 : vector<16x256xf32>
    %cst_7 = arith.constant 1.000000e+00 : f32
    %15 = vector.broadcast %cst_7 : f32 to vector<16x256xf32>
    %16 = arith.addf %15, %14 : vector<16x256xf32>
    %cst_8 = arith.constant 5.000000e-01 : f32
    %17 = vector.broadcast %cst_8 : f32 to vector<16x256xf32>
    %18 = arith.mulf %17, %16 : vector<16x256xf32>
    %19 = arith.mulf %6, %18 : vector<16x256xf32>
    %20 = arith.truncf %19 : vector<16x256xf32> to vector<16x256xbf16>
    %c0_9 = arith.constant 0 : index
    %c0_10 = arith.constant 0 : index
    %21 = vector.load %arg4[%c0_9, %c0_10] : memref<16x256xbf16, #tpu.memory_space<vmem>>, vector<16x256xbf16>
    tpu.vector_store %arg4[%c0_9, %c0_10], %20 {strides = array<i32>} : memref<16x256xbf16, #tpu.memory_space<vmem>>, vector<16x256xbf16>,
    return
  }
  func.func @transform_0(%arg0: i32) -> (i32, i32) {
    %c0_i32 = arith.constant 0 : i32
    %c0_i32_0 = arith.constant 0 : i32
    return %arg0, %c0_i32 : i32, i32
  }
  func.func @transform_1(%arg0: i32) -> (i32, i32) {
    %c0_i32 = arith.constant 0 : i32
    %c0_i32_0 = arith.constant 0 : i32
    %c0_i32_1 = arith.constant 0 : i32
    return %c0_i32, %c0_i32_0 : i32, i32
  }
  func.func @transform_2(%arg0: i32) -> (i32, i32) {
    %c0_i32 = arith.constant 0 : i32
    %c0_i32_0 = arith.constant 0 : i32
    %c0_i32_1 = arith.constant 0 : i32
    return %c0_i32, %c0_i32_0 : i32, i32
  }
  func.func @transform_3(%arg0: i32) -> (i32, i32) {
    %c0_i32 = arith.constant 0 : i32
    %c0_i32_0 = arith.constant 0 : i32
    return %arg0, %c0_i32 : i32, i32
  }
}

module attributes {stable_mosaic.version = 11 : i64} {
  func.func @_emb_ln_kernel(%arg0: i32, %arg1: memref<16x128xbf16, #tpu.memory_space<vmem>>, %arg2: memref<16x128xbf16, #tpu.memory_space<vmem>>, %arg3: memref<16x128xbf16, #tpu.memory_space<vmem>>, %arg4: memref<1x128xbf16, #tpu.memory_space<vmem>>, %arg5: memref<1x128xbf16, #tpu.memory_space<vmem>>, %arg6: memref<16x128xbf16, #tpu.memory_space<vmem>>) attributes {dimension_semantics = [#tpu.dimension_semantics<parallel>], iteration_bounds = array<i64: 1>, scalar_prefetch = 0 : i64, scratch_operands = 0 : i64, tpu.core_type = #tpu.core_type<tc>, window_params = [{transform_indices = @transform_0, window_bounds = array<i64: 16, 128>}, {transform_indices = @transform_1, window_bounds = array<i64: 16, 128>}, {transform_indices = @transform_2, window_bounds = array<i64: 16, 128>}, {pipeline_mode = #tpu.pipeline_mode<synchronous>, transform_indices = @transform_3, window_bounds = array<i64: 1, 128>}, {pipeline_mode = #tpu.pipeline_mode<synchronous>, transform_indices = @transform_4, window_bounds = array<i64: 1, 128>}, {transform_indices = @transform_5, window_bounds = array<i64: 16, 128>}]} {
    %c0 = arith.constant 0 : index
    %c0_0 = arith.constant 0 : index
    %0 = vector.load %arg1[%c0, %c0_0] : memref<16x128xbf16, #tpu.memory_space<vmem>>, vector<16x128xbf16>
    %1 = arith.extf %0 : vector<16x128xbf16> to vector<16x128xf32>
    %c0_1 = arith.constant 0 : index
    %c0_2 = arith.constant 0 : index
    %2 = vector.load %arg2[%c0_1, %c0_2] : memref<16x128xbf16, #tpu.memory_space<vmem>>, vector<16x128xbf16>
    %3 = arith.extf %2 : vector<16x128xbf16> to vector<16x128xf32>
    %4 = arith.addf %1, %3 : vector<16x128xf32>
    %c0_3 = arith.constant 0 : index
    %c0_4 = arith.constant 0 : index
    %5 = vector.load %arg3[%c0_3, %c0_4] : memref<16x128xbf16, #tpu.memory_space<vmem>>, vector<16x128xbf16>
    %6 = arith.extf %5 : vector<16x128xbf16> to vector<16x128xf32>
    %7 = arith.addf %4, %6 : vector<16x128xf32>
    %cst = arith.constant dense<0.000000e+00> : vector<16xf32>
    %8 = vector.multi_reduction <add>, %7, %cst [1] : vector<16x128xf32> to vector<16xf32>
    %9 = vector.shape_cast %8 : vector<16xf32> to vector<16x1xf32>
    %cst_5 = arith.constant 1.280000e+02 : f32
    %10 = vector.broadcast %cst_5 : f32 to vector<16x1xf32>
    %11 = arith.divf %9, %10 : vector<16x1xf32>
    %12 = vector.broadcast %11 : vector<16x1xf32> to vector<16x128xf32>
    %13 = arith.subf %7, %12 : vector<16x128xf32>
    %14 = arith.mulf %13, %13 : vector<16x128xf32>
    %cst_6 = arith.constant dense<0.000000e+00> : vector<16xf32>
    %15 = vector.multi_reduction <add>, %14, %cst_6 [1] : vector<16x128xf32> to vector<16xf32>
    %16 = vector.shape_cast %15 : vector<16xf32> to vector<16x1xf32>
    %cst_7 = arith.constant 1.280000e+02 : f32
    %17 = vector.broadcast %cst_7 : f32 to vector<16x1xf32>
    %18 = arith.divf %16, %17 : vector<16x1xf32>
    %cst_8 = arith.constant 9.99999996E-13 : f32
    %19 = vector.broadcast %cst_8 : f32 to vector<16x1xf32>
    %20 = arith.addf %18, %19 : vector<16x1xf32>
    %21 = math.rsqrt %20 : vector<16x1xf32>
    %22 = vector.broadcast %11 : vector<16x1xf32> to vector<16x128xf32>
    %23 = arith.subf %7, %22 : vector<16x128xf32>
    %24 = vector.broadcast %21 : vector<16x1xf32> to vector<16x128xf32>
    %25 = arith.mulf %23, %24 : vector<16x128xf32>
    %c0_9 = arith.constant 0 : index
    %c0_10 = arith.constant 0 : index
    %26 = vector.load %arg4[%c0_9, %c0_10] : memref<1x128xbf16, #tpu.memory_space<vmem>>, vector<1x128xbf16>
    %27 = arith.extf %26 : vector<1x128xbf16> to vector<1x128xf32>
    %28 = vector.broadcast %27 : vector<1x128xf32> to vector<16x128xf32>
    %29 = arith.mulf %25, %28 : vector<16x128xf32>
    %c0_11 = arith.constant 0 : index
    %c0_12 = arith.constant 0 : index
    %30 = vector.load %arg5[%c0_11, %c0_12] : memref<1x128xbf16, #tpu.memory_space<vmem>>, vector<1x128xbf16>
    %31 = arith.extf %30 : vector<1x128xbf16> to vector<1x128xf32>
    %32 = vector.broadcast %31 : vector<1x128xf32> to vector<16x128xf32>
    %33 = arith.addf %29, %32 : vector<16x128xf32>
    %34 = arith.truncf %33 : vector<16x128xf32> to vector<16x128xbf16>
    %c0_13 = arith.constant 0 : index
    %c0_14 = arith.constant 0 : index
    %35 = vector.load %arg6[%c0_13, %c0_14] : memref<16x128xbf16, #tpu.memory_space<vmem>>, vector<16x128xbf16>
    tpu.vector_store %arg6[%c0_13, %c0_14], %34 {strides = array<i32>} : memref<16x128xbf16, #tpu.memory_space<vmem>>, vector<16x128xbf16>,
    return
  }
  func.func @transform_0(%arg0: i32) -> (i32, i32) {
    %c0_i32 = arith.constant 0 : i32
    %c0_i32_0 = arith.constant 0 : i32
    return %arg0, %c0_i32 : i32, i32
  }
  func.func @transform_1(%arg0: i32) -> (i32, i32) {
    %c0_i32 = arith.constant 0 : i32
    %c0_i32_0 = arith.constant 0 : i32
    return %arg0, %c0_i32 : i32, i32
  }
  func.func @transform_2(%arg0: i32) -> (i32, i32) {
    %c0_i32 = arith.constant 0 : i32
    %c0_i32_0 = arith.constant 0 : i32
    return %arg0, %c0_i32 : i32, i32
  }
  func.func @transform_3(%arg0: i32) -> (i32, i32) {
    %c0_i32 = arith.constant 0 : i32
    %c0_i32_0 = arith.constant 0 : i32
    %c0_i32_1 = arith.constant 0 : i32
    return %c0_i32, %c0_i32_0 : i32, i32
  }
  func.func @transform_4(%arg0: i32) -> (i32, i32) {
    %c0_i32 = arith.constant 0 : i32
    %c0_i32_0 = arith.constant 0 : i32
    %c0_i32_1 = arith.constant 0 : i32
    return %c0_i32, %c0_i32_0 : i32, i32
  }
  func.func @transform_5(%arg0: i32) -> (i32, i32) {
    %c0_i32 = arith.constant 0 : i32
    %c0_i32_0 = arith.constant 0 : i32
    return %arg0, %c0_i32 : i32, i32
  }
}

module attributes {stable_mosaic.version = 11 : i64} {
  func.func @_linear_add_ln_kernel(%arg0: i32, %arg1: memref<16x128xbf16, #tpu.memory_space<vmem>>, %arg2: memref<128x128xbf16, #tpu.memory_space<vmem>>, %arg3: memref<1x128xbf16, #tpu.memory_space<vmem>>, %arg4: memref<16x128xbf16, #tpu.memory_space<vmem>>, %arg5: memref<1x128xbf16, #tpu.memory_space<vmem>>, %arg6: memref<1x128xbf16, #tpu.memory_space<vmem>>, %arg7: memref<16x128xbf16, #tpu.memory_space<vmem>>) attributes {dimension_semantics = [#tpu.dimension_semantics<parallel>], iteration_bounds = array<i64: 1>, scalar_prefetch = 0 : i64, scratch_operands = 0 : i64, tpu.core_type = #tpu.core_type<tc>, window_params = [{transform_indices = @transform_0, window_bounds = array<i64: 16, 128>}, {pipeline_mode = #tpu.pipeline_mode<synchronous>, transform_indices = @transform_1, window_bounds = array<i64: 128, 128>}, {pipeline_mode = #tpu.pipeline_mode<synchronous>, transform_indices = @transform_2, window_bounds = array<i64: 1, 128>}, {transform_indices = @transform_3, window_bounds = array<i64: 16, 128>}, {pipeline_mode = #tpu.pipeline_mode<synchronous>, transform_indices = @transform_4, window_bounds = array<i64: 1, 128>}, {pipeline_mode = #tpu.pipeline_mode<synchronous>, transform_indices = @transform_5, window_bounds = array<i64: 1, 128>}, {transform_indices = @transform_6, window_bounds = array<i64: 16, 128>}]} {
    %c0 = arith.constant 0 : index
    %c0_0 = arith.constant 0 : index
    %0 = vector.load %arg1[%c0, %c0_0] : memref<16x128xbf16, #tpu.memory_space<vmem>>, vector<16x128xbf16>
    %c0_1 = arith.constant 0 : index
    %c0_2 = arith.constant 0 : index
    %1 = vector.load %arg2[%c0_1, %c0_2] : memref<128x128xbf16, #tpu.memory_space<vmem>>, vector<128x128xbf16>
    %cst = arith.constant dense<0.000000e+00> : vector<16x128xf32>
    %2 = tpu.matmul %0, %1, %cst {dimension_numbers = #tpu.dot_dimension_numbers<[1], [0], [0], [1], [0, 0, 1, 1], [], []>} : vector<16x128xbf16>, vector<128x128xbf16>, vector<16x128xf32> -> vector<16x128xf32>
    %c0_3 = arith.constant 0 : index
    %c0_4 = arith.constant 0 : index
    %3 = vector.load %arg3[%c0_3, %c0_4] : memref<1x128xbf16, #tpu.memory_space<vmem>>, vector<1x128xbf16>
    %4 = arith.extf %3 : vector<1x128xbf16> to vector<1x128xf32>
    %5 = vector.broadcast %4 : vector<1x128xf32> to vector<16x128xf32>
    %6 = arith.addf %2, %5 : vector<16x128xf32>
    %c0_5 = arith.constant 0 : index
    %c0_6 = arith.constant 0 : index
    %7 = vector.load %arg4[%c0_5, %c0_6] : memref<16x128xbf16, #tpu.memory_space<vmem>>, vector<16x128xbf16>
    %8 = arith.extf %7 : vector<16x128xbf16> to vector<16x128xf32>
    %9 = arith.addf %6, %8 : vector<16x128xf32>
    %cst_7 = arith.constant dense<0.000000e+00> : vector<16xf32>
    %10 = vector.multi_reduction <add>, %9, %cst_7 [1] : vector<16x128xf32> to vector<16xf32>
    %11 = vector.shape_cast %10 : vector<16xf32> to vector<16x1xf32>
    %cst_8 = arith.constant 1.280000e+02 : f32
    %12 = vector.broadcast %cst_8 : f32 to vector<16x1xf32>
    %13 = arith.divf %11, %12 : vector<16x1xf32>
    %14 = vector.broadcast %13 : vector<16x1xf32> to vector<16x128xf32>
    %15 = arith.subf %9, %14 : vector<16x128xf32>
    %16 = arith.mulf %15, %15 : vector<16x128xf32>
    %cst_9 = arith.constant dense<0.000000e+00> : vector<16xf32>
    %17 = vector.multi_reduction <add>, %16, %cst_9 [1] : vector<16x128xf32> to vector<16xf32>
    %18 = vector.shape_cast %17 : vector<16xf32> to vector<16x1xf32>
    %cst_10 = arith.constant 1.280000e+02 : f32
    %19 = vector.broadcast %cst_10 : f32 to vector<16x1xf32>
    %20 = arith.divf %18, %19 : vector<16x1xf32>
    %cst_11 = arith.constant 9.99999996E-13 : f32
    %21 = vector.broadcast %cst_11 : f32 to vector<16x1xf32>
    %22 = arith.addf %20, %21 : vector<16x1xf32>
    %23 = math.rsqrt %22 : vector<16x1xf32>
    %24 = vector.broadcast %13 : vector<16x1xf32> to vector<16x128xf32>
    %25 = arith.subf %9, %24 : vector<16x128xf32>
    %26 = vector.broadcast %23 : vector<16x1xf32> to vector<16x128xf32>
    %27 = arith.mulf %25, %26 : vector<16x128xf32>
    %c0_12 = arith.constant 0 : index
    %c0_13 = arith.constant 0 : index
    %28 = vector.load %arg5[%c0_12, %c0_13] : memref<1x128xbf16, #tpu.memory_space<vmem>>, vector<1x128xbf16>
    %29 = arith.extf %28 : vector<1x128xbf16> to vector<1x128xf32>
    %30 = vector.broadcast %29 : vector<1x128xf32> to vector<16x128xf32>
    %31 = arith.mulf %27, %30 : vector<16x128xf32>
    %c0_14 = arith.constant 0 : index
    %c0_15 = arith.constant 0 : index
    %32 = vector.load %arg6[%c0_14, %c0_15] : memref<1x128xbf16, #tpu.memory_space<vmem>>, vector<1x128xbf16>
    %33 = arith.extf %32 : vector<1x128xbf16> to vector<1x128xf32>
    %34 = vector.broadcast %33 : vector<1x128xf32> to vector<16x128xf32>
    %35 = arith.addf %31, %34 : vector<16x128xf32>
    %36 = arith.truncf %35 : vector<16x128xf32> to vector<16x128xbf16>
    %c0_16 = arith.constant 0 : index
    %c0_17 = arith.constant 0 : index
    %37 = vector.load %arg7[%c0_16, %c0_17] : memref<16x128xbf16, #tpu.memory_space<vmem>>, vector<16x128xbf16>
    tpu.vector_store %arg7[%c0_16, %c0_17], %36 {strides = array<i32>} : memref<16x128xbf16, #tpu.memory_space<vmem>>, vector<16x128xbf16>,
    return
  }
  func.func @transform_0(%arg0: i32) -> (i32, i32) {
    %c0_i32 = arith.constant 0 : i32
    %c0_i32_0 = arith.constant 0 : i32
    return %arg0, %c0_i32 : i32, i32
  }
  func.func @transform_1(%arg0: i32) -> (i32, i32) {
    %c0_i32 = arith.constant 0 : i32
    %c0_i32_0 = arith.constant 0 : i32
    %c0_i32_1 = arith.constant 0 : i32
    return %c0_i32, %c0_i32_0 : i32, i32
  }
  func.func @transform_2(%arg0: i32) -> (i32, i32) {
    %c0_i32 = arith.constant 0 : i32
    %c0_i32_0 = arith.constant 0 : i32
    %c0_i32_1 = arith.constant 0 : i32
    return %c0_i32, %c0_i32_0 : i32, i32
  }
  func.func @transform_3(%arg0: i32) -> (i32, i32) {
    %c0_i32 = arith.constant 0 : i32
    %c0_i32_0 = arith.constant 0 : i32
    return %arg0, %c0_i32 : i32, i32
  }
  func.func @transform_4(%arg0: i32) -> (i32, i32) {
    %c0_i32 = arith.constant 0 : i32
    %c0_i32_0 = arith.constant 0 : i32
    %c0_i32_1 = arith.constant 0 : i32
    return %c0_i32, %c0_i32_0 : i32, i32
  }
  func.func @transform_5(%arg0: i32) -> (i32, i32) {
    %c0_i32 = arith.constant 0 : i32
    %c0_i32_0 = arith.constant 0 : i32
    %c0_i32_1 = arith.constant 0 : i32
    return %c0_i32, %c0_i32_0 : i32, i32
  }
  func.func @transform_6(%arg0: i32) -> (i32, i32) {
    %c0_i32 = arith.constant 0 : i32
    %c0_i32_0 = arith.constant 0 : i32
    return %arg0, %c0_i32 : i32, i32
  }
}

module attributes {stable_mosaic.version = 11 : i64} {
  func.func @_attn_kernel(%arg0: i32, %arg1: memref<1x8x128xbf16, #tpu.memory_space<vmem>>, %arg2: memref<128x384xbf16, #tpu.memory_space<vmem>>, %arg3: memref<1x384xbf16, #tpu.memory_space<vmem>>, %arg4: memref<1x1x8xf32, #tpu.memory_space<vmem>>, %arg5: memref<1x8x128xbf16, #tpu.memory_space<vmem>>) attributes {dimension_semantics = [#tpu.dimension_semantics<parallel>], iteration_bounds = array<i64: 2>, scalar_prefetch = 0 : i64, scratch_operands = 0 : i64, tpu.core_type = #tpu.core_type<tc>, window_params = [{transform_indices = @transform_0, window_bounds = array<i64: 1, 8, 128>}, {pipeline_mode = #tpu.pipeline_mode<synchronous>, transform_indices = @transform_1, window_bounds = array<i64: 128, 384>}, {pipeline_mode = #tpu.pipeline_mode<synchronous>, transform_indices = @transform_2, window_bounds = array<i64: 1, 384>}, {transform_indices = @transform_3, window_bounds = array<i64: 1, 1, 8>}, {transform_indices = @transform_4, window_bounds = array<i64: 1, 8, 128>}]} {
    %c0 = arith.constant 0 : index
    %c0_0 = arith.constant 0 : index
    %c0_1 = arith.constant 0 : index
    %0 = vector.load %arg1[%c0, %c0_0, %c0_1] : memref<1x8x128xbf16, #tpu.memory_space<vmem>>, vector<1x8x128xbf16>
    %1 = vector.shape_cast %0 : vector<1x8x128xbf16> to vector<8x128xbf16>
    %c0_2 = arith.constant 0 : index
    %c0_3 = arith.constant 0 : index
    %2 = vector.load %arg2[%c0_2, %c0_3] : memref<128x384xbf16, #tpu.memory_space<vmem>>, vector<128x384xbf16>
    %cst = arith.constant dense<0.000000e+00> : vector<8x384xf32>
    %3 = tpu.matmul %1, %2, %cst {dimension_numbers = #tpu.dot_dimension_numbers<[1], [0], [0], [1], [0, 0, 1, 1], [], []>} : vector<8x128xbf16>, vector<128x384xbf16>, vector<8x384xf32> -> vector<8x384xf32>
    %c0_4 = arith.constant 0 : index
    %c0_5 = arith.constant 0 : index
    %4 = vector.load %arg3[%c0_4, %c0_5] : memref<1x384xbf16, #tpu.memory_space<vmem>>, vector<1x384xbf16>
    %5 = arith.extf %4 : vector<1x384xbf16> to vector<1x384xf32>
    %6 = vector.broadcast %5 : vector<1x384xf32> to vector<8x384xf32>
    %7 = arith.addf %3, %6 : vector<8x384xf32>
    %8 = arith.truncf %7 : vector<8x384xf32> to vector<8x384xbf16>
    %c0_6 = arith.constant 0 : index
    %c0_7 = arith.constant 0 : index
    %c0_8 = arith.constant 0 : index
    %9 = vector.load %arg4[%c0_6, %c0_7, %c0_8] : memref<1x1x8xf32, #tpu.memory_space<vmem>>, vector<1x1x8xf32>
    %10 = vector.shape_cast %9 : vector<1x1x8xf32> to vector<1x8xf32>
    %11 = vector.extract_strided_slice %8 {offsets = [0, 0], sizes = [8, 64], strides = [1, 1]} : vector<8x384xbf16> to vector<8x64xbf16>
    %12 = vector.extract_strided_slice %8 {offsets = [0, 128], sizes = [8, 64], strides = [1, 1]} : vector<8x384xbf16> to vector<8x64xbf16>
    %13 = vector.extract_strided_slice %8 {offsets = [0, 256], sizes = [8, 64], strides = [1, 1]} : vector<8x384xbf16> to vector<8x64xbf16>
    %cst_9 = arith.constant dense<0.000000e+00> : vector<8x8xf32>
    %14 = tpu.matmul %11, %12, %cst_9 {dimension_numbers = #tpu.dot_dimension_numbers<[1], [1], [0], [0], [0, 0, 1, 0], [], []>} : vector<8x64xbf16>, vector<8x64xbf16>, vector<8x8xf32> -> vector<8x8xf32>
    %cst_10 = arith.constant 1.250000e-01 : f32
    %15 = vector.broadcast %cst_10 : f32 to vector<8x8xf32>
    %16 = arith.mulf %14, %15 : vector<8x8xf32>
    %17 = vector.broadcast %10 : vector<1x8xf32> to vector<8x8xf32>
    %18 = arith.addf %16, %17 : vector<8x8xf32>
    %cst_11 = arith.constant dense<0xFF800000> : vector<8xf32>
    %19 = vector.multi_reduction <maximumf>, %18, %cst_11 [1] : vector<8x8xf32> to vector<8xf32>
    %20 = vector.shape_cast %19 : vector<8xf32> to vector<8x1xf32>
    %21 = vector.broadcast %20 : vector<8x1xf32> to vector<8x8xf32>
    %22 = arith.subf %18, %21 : vector<8x8xf32>
    %23 = math.exp %22 : vector<8x8xf32>
    %cst_12 = arith.constant dense<0.000000e+00> : vector<8xf32>
    %24 = vector.multi_reduction <add>, %23, %cst_12 [1] : vector<8x8xf32> to vector<8xf32>
    %25 = vector.shape_cast %24 : vector<8xf32> to vector<8x1xf32>
    %26 = tpu.reciprocal %25 {approx = true} : vector<8x1xf32> -> vector<8x1xf32>
    %27 = vector.broadcast %26 : vector<8x1xf32> to vector<8x8xf32>
    %28 = arith.mulf %23, %27 : vector<8x8xf32>
    %29 = arith.truncf %28 : vector<8x8xf32> to vector<8x8xbf16>
    %cst_13 = arith.constant dense<0.000000e+00> : vector<8x64xf32>
    %30 = tpu.matmul %29, %13, %cst_13 {dimension_numbers = #tpu.dot_dimension_numbers<[1], [0], [0], [1], [0, 0, 1, 1], [], []>} : vector<8x8xbf16>, vector<8x64xbf16>, vector<8x64xf32> -> vector<8x64xf32>
    %31 = vector.extract_strided_slice %8 {offsets = [0, 64], sizes = [8, 64], strides = [1, 1]} : vector<8x384xbf16> to vector<8x64xbf16>
    %32 = vector.extract_strided_slice %8 {offsets = [0, 192], sizes = [8, 64], strides = [1, 1]} : vector<8x384xbf16> to vector<8x64xbf16>
    %33 = vector.extract_strided_slice %8 {offsets = [0, 320], sizes = [8, 64], strides = [1, 1]} : vector<8x384xbf16> to vector<8x64xbf16>
    %cst_14 = arith.constant dense<0.000000e+00> : vector<8x8xf32>
    %34 = tpu.matmul %31, %32, %cst_14 {dimension_numbers = #tpu.dot_dimension_numbers<[1], [1], [0], [0], [0, 0, 1, 0], [], []>} : vector<8x64xbf16>, vector<8x64xbf16>, vector<8x8xf32> -> vector<8x8xf32>
    %cst_15 = arith.constant 1.250000e-01 : f32
    %35 = vector.broadcast %cst_15 : f32 to vector<8x8xf32>
    %36 = arith.mulf %34, %35 : vector<8x8xf32>
    %37 = vector.broadcast %10 : vector<1x8xf32> to vector<8x8xf32>
    %38 = arith.addf %36, %37 : vector<8x8xf32>
    %cst_16 = arith.constant dense<0xFF800000> : vector<8xf32>
    %39 = vector.multi_reduction <maximumf>, %38, %cst_16 [1] : vector<8x8xf32> to vector<8xf32>
    %40 = vector.shape_cast %39 : vector<8xf32> to vector<8x1xf32>
    %41 = vector.broadcast %40 : vector<8x1xf32> to vector<8x8xf32>
    %42 = arith.subf %38, %41 : vector<8x8xf32>
    %43 = math.exp %42 : vector<8x8xf32>
    %cst_17 = arith.constant dense<0.000000e+00> : vector<8xf32>
    %44 = vector.multi_reduction <add>, %43, %cst_17 [1] : vector<8x8xf32> to vector<8xf32>
    %45 = vector.shape_cast %44 : vector<8xf32> to vector<8x1xf32>
    %46 = tpu.reciprocal %45 {approx = true} : vector<8x1xf32> -> vector<8x1xf32>
    %47 = vector.broadcast %46 : vector<8x1xf32> to vector<8x8xf32>
    %48 = arith.mulf %43, %47 : vector<8x8xf32>
    %49 = arith.truncf %48 : vector<8x8xf32> to vector<8x8xbf16>
    %cst_18 = arith.constant dense<0.000000e+00> : vector<8x64xf32>
    %50 = tpu.matmul %49, %33, %cst_18 {dimension_numbers = #tpu.dot_dimension_numbers<[1], [0], [0], [1], [0, 0, 1, 1], [], []>} : vector<8x8xbf16>, vector<8x64xbf16>, vector<8x64xf32> -> vector<8x64xf32>
    %51 = tpu.concatenate %30, %50 in 1 : vector<8x64xf32>, vector<8x64xf32> -> vector<8x128xf32>
    %52 = arith.truncf %51 : vector<8x128xf32> to vector<8x128xbf16>
    %c0_19 = arith.constant 0 : index
    %c0_20 = arith.constant 0 : index
    %c0_21 = arith.constant 0 : index
    %53 = vector.load %arg5[%c0_19, %c0_20, %c0_21] : memref<1x8x128xbf16, #tpu.memory_space<vmem>>, vector<1x8x128xbf16>
    %54 = vector.shape_cast %53 : vector<1x8x128xbf16> to vector<8x128xbf16>
    %55 = vector.shape_cast %52 : vector<8x128xbf16> to vector<1x8x128xbf16>
    tpu.vector_store %arg5[%c0_19, %c0_20, %c0_21], %55 {strides = array<i32>} : memref<1x8x128xbf16, #tpu.memory_space<vmem>>, vector<1x8x128xbf16>,
    return
  }
  func.func @transform_0(%arg0: i32) -> (i32, i32, i32) {
    %c0_i32 = arith.constant 0 : i32
    %c0_i32_0 = arith.constant 0 : i32
    %c0_i32_1 = arith.constant 0 : i32
    return %arg0, %c0_i32, %c0_i32_0 : i32, i32, i32
  }
  func.func @transform_1(%arg0: i32) -> (i32, i32) {
    %c0_i32 = arith.constant 0 : i32
    %c0_i32_0 = arith.constant 0 : i32
    %c0_i32_1 = arith.constant 0 : i32
    return %c0_i32, %c0_i32_0 : i32, i32
  }
  func.func @transform_2(%arg0: i32) -> (i32, i32) {
    %c0_i32 = arith.constant 0 : i32
    %c0_i32_0 = arith.constant 0 : i32
    %c0_i32_1 = arith.constant 0 : i32
    return %c0_i32, %c0_i32_0 : i32, i32
  }
  func.func @transform_3(%arg0: i32) -> (i32, i32, i32) {
    %c0_i32 = arith.constant 0 : i32
    %c0_i32_0 = arith.constant 0 : i32
    %c0_i32_1 = arith.constant 0 : i32
    return %arg0, %c0_i32, %c0_i32_0 : i32, i32, i32
  }
  func.func @transform_4(%arg0: i32) -> (i32, i32, i32) {
    %c0_i32 = arith.constant 0 : i32
    %c0_i32_0 = arith.constant 0 : i32
    %c0_i32_1 = arith.constant 0 : i32
    return %arg0, %c0_i32, %c0_i32_0 : i32, i32, i32
  }
}

module attributes {stable_mosaic.version = 11 : i64} {
  func.func @_linear_add_ln_kernel(%arg0: i32, %arg1: memref<16x256xbf16, #tpu.memory_space<vmem>>, %arg2: memref<256x128xbf16, #tpu.memory_space<vmem>>, %arg3: memref<1x128xbf16, #tpu.memory_space<vmem>>, %arg4: memref<16x128xbf16, #tpu.memory_space<vmem>>, %arg5: memref<1x128xbf16, #tpu.memory_space<vmem>>, %arg6: memref<1x128xbf16, #tpu.memory_space<vmem>>, %arg7: memref<16x128xbf16, #tpu.memory_space<vmem>>) attributes {dimension_semantics = [#tpu.dimension_semantics<parallel>], iteration_bounds = array<i64: 1>, scalar_prefetch = 0 : i64, scratch_operands = 0 : i64, tpu.core_type = #tpu.core_type<tc>, window_params = [{transform_indices = @transform_0, window_bounds = array<i64: 16, 256>}, {pipeline_mode = #tpu.pipeline_mode<synchronous>, transform_indices = @transform_1, window_bounds = array<i64: 256, 128>}, {pipeline_mode = #tpu.pipeline_mode<synchronous>, transform_indices = @transform_2, window_bounds = array<i64: 1, 128>}, {transform_indices = @transform_3, window_bounds = array<i64: 16, 128>}, {pipeline_mode = #tpu.pipeline_mode<synchronous>, transform_indices = @transform_4, window_bounds = array<i64: 1, 128>}, {pipeline_mode = #tpu.pipeline_mode<synchronous>, transform_indices = @transform_5, window_bounds = array<i64: 1, 128>}, {transform_indices = @transform_6, window_bounds = array<i64: 16, 128>}]} {
    %c0 = arith.constant 0 : index
    %c0_0 = arith.constant 0 : index
    %0 = vector.load %arg1[%c0, %c0_0] : memref<16x256xbf16, #tpu.memory_space<vmem>>, vector<16x256xbf16>
    %c0_1 = arith.constant 0 : index
    %c0_2 = arith.constant 0 : index
    %1 = vector.load %arg2[%c0_1, %c0_2] : memref<256x128xbf16, #tpu.memory_space<vmem>>, vector<256x128xbf16>
    %cst = arith.constant dense<0.000000e+00> : vector<16x128xf32>
    %2 = tpu.matmul %0, %1, %cst {dimension_numbers = #tpu.dot_dimension_numbers<[1], [0], [0], [1], [0, 0, 1, 1], [], []>} : vector<16x256xbf16>, vector<256x128xbf16>, vector<16x128xf32> -> vector<16x128xf32>
    %c0_3 = arith.constant 0 : index
    %c0_4 = arith.constant 0 : index
    %3 = vector.load %arg3[%c0_3, %c0_4] : memref<1x128xbf16, #tpu.memory_space<vmem>>, vector<1x128xbf16>
    %4 = arith.extf %3 : vector<1x128xbf16> to vector<1x128xf32>
    %5 = vector.broadcast %4 : vector<1x128xf32> to vector<16x128xf32>
    %6 = arith.addf %2, %5 : vector<16x128xf32>
    %c0_5 = arith.constant 0 : index
    %c0_6 = arith.constant 0 : index
    %7 = vector.load %arg4[%c0_5, %c0_6] : memref<16x128xbf16, #tpu.memory_space<vmem>>, vector<16x128xbf16>
    %8 = arith.extf %7 : vector<16x128xbf16> to vector<16x128xf32>
    %9 = arith.addf %6, %8 : vector<16x128xf32>
    %cst_7 = arith.constant dense<0.000000e+00> : vector<16xf32>
    %10 = vector.multi_reduction <add>, %9, %cst_7 [1] : vector<16x128xf32> to vector<16xf32>
    %11 = vector.shape_cast %10 : vector<16xf32> to vector<16x1xf32>
    %cst_8 = arith.constant 1.280000e+02 : f32
    %12 = vector.broadcast %cst_8 : f32 to vector<16x1xf32>
    %13 = arith.divf %11, %12 : vector<16x1xf32>
    %14 = vector.broadcast %13 : vector<16x1xf32> to vector<16x128xf32>
    %15 = arith.subf %9, %14 : vector<16x128xf32>
    %16 = arith.mulf %15, %15 : vector<16x128xf32>
    %cst_9 = arith.constant dense<0.000000e+00> : vector<16xf32>
    %17 = vector.multi_reduction <add>, %16, %cst_9 [1] : vector<16x128xf32> to vector<16xf32>
    %18 = vector.shape_cast %17 : vector<16xf32> to vector<16x1xf32>
    %cst_10 = arith.constant 1.280000e+02 : f32
    %19 = vector.broadcast %cst_10 : f32 to vector<16x1xf32>
    %20 = arith.divf %18, %19 : vector<16x1xf32>
    %cst_11 = arith.constant 9.99999996E-13 : f32
    %21 = vector.broadcast %cst_11 : f32 to vector<16x1xf32>
    %22 = arith.addf %20, %21 : vector<16x1xf32>
    %23 = math.rsqrt %22 : vector<16x1xf32>
    %24 = vector.broadcast %13 : vector<16x1xf32> to vector<16x128xf32>
    %25 = arith.subf %9, %24 : vector<16x128xf32>
    %26 = vector.broadcast %23 : vector<16x1xf32> to vector<16x128xf32>
    %27 = arith.mulf %25, %26 : vector<16x128xf32>
    %c0_12 = arith.constant 0 : index
    %c0_13 = arith.constant 0 : index
    %28 = vector.load %arg5[%c0_12, %c0_13] : memref<1x128xbf16, #tpu.memory_space<vmem>>, vector<1x128xbf16>
    %29 = arith.extf %28 : vector<1x128xbf16> to vector<1x128xf32>
    %30 = vector.broadcast %29 : vector<1x128xf32> to vector<16x128xf32>
    %31 = arith.mulf %27, %30 : vector<16x128xf32>
    %c0_14 = arith.constant 0 : index
    %c0_15 = arith.constant 0 : index
    %32 = vector.load %arg6[%c0_14, %c0_15] : memref<1x128xbf16, #tpu.memory_space<vmem>>, vector<1x128xbf16>
    %33 = arith.extf %32 : vector<1x128xbf16> to vector<1x128xf32>
    %34 = vector.broadcast %33 : vector<1x128xf32> to vector<16x128xf32>
    %35 = arith.addf %31, %34 : vector<16x128xf32>
    %36 = arith.truncf %35 : vector<16x128xf32> to vector<16x128xbf16>
    %c0_16 = arith.constant 0 : index
    %c0_17 = arith.constant 0 : index
    %37 = vector.load %arg7[%c0_16, %c0_17] : memref<16x128xbf16, #tpu.memory_space<vmem>>, vector<16x128xbf16>
    tpu.vector_store %arg7[%c0_16, %c0_17], %36 {strides = array<i32>} : memref<16x128xbf16, #tpu.memory_space<vmem>>, vector<16x128xbf16>,
    return
  }
  func.func @transform_0(%arg0: i32) -> (i32, i32) {
    %c0_i32 = arith.constant 0 : i32
    %c0_i32_0 = arith.constant 0 : i32
    return %arg0, %c0_i32 : i32, i32
  }
  func.func @transform_1(%arg0: i32) -> (i32, i32) {
    %c0_i32 = arith.constant 0 : i32
    %c0_i32_0 = arith.constant 0 : i32
    %c0_i32_1 = arith.constant 0 : i32
    return %c0_i32, %c0_i32_0 : i32, i32
  }
  func.func @transform_2(%arg0: i32) -> (i32, i32) {
    %c0_i32 = arith.constant 0 : i32
    %c0_i32_0 = arith.constant 0 : i32
    %c0_i32_1 = arith.constant 0 : i32
    return %c0_i32, %c0_i32_0 : i32, i32
  }
  func.func @transform_3(%arg0: i32) -> (i32, i32) {
    %c0_i32 = arith.constant 0 : i32
    %c0_i32_0 = arith.constant 0 : i32
    return %arg0, %c0_i32 : i32, i32
  }
  func.func @transform_4(%arg0: i32) -> (i32, i32) {
    %c0_i32 = arith.constant 0 : i32
    %c0_i32_0 = arith.constant 0 : i32
    %c0_i32_1 = arith.constant 0 : i32
    return %c0_i32, %c0_i32_0 : i32, i32
  }
  func.func @transform_5(%arg0: i32) -> (i32, i32) {
    %c0_i32 = arith.constant 0 : i32
    %c0_i32_0 = arith.constant 0 : i32
    %c0_i32_1 = arith.constant 0 : i32
    return %c0_i32, %c0_i32_0 : i32, i32
  }
  func.func @transform_6(%arg0: i32) -> (i32, i32) {
    %c0_i32 = arith.constant 0 : i32
    %c0_i32_0 = arith.constant 0 : i32
    return %arg0, %c0_i32 : i32, i32
  }
}

module attributes {stable_mosaic.version = 11 : i64} {
  func.func @_linear_add_ln_head_kernel(%arg0: i32, %arg1: memref<16x256xbf16, #tpu.memory_space<vmem>>, %arg2: memref<256x128xbf16, #tpu.memory_space<vmem>>, %arg3: memref<1x128xbf16, #tpu.memory_space<vmem>>, %arg4: memref<16x128xbf16, #tpu.memory_space<vmem>>, %arg5: memref<1x128xbf16, #tpu.memory_space<vmem>>, %arg6: memref<1x128xbf16, #tpu.memory_space<vmem>>, %arg7: memref<128x128xbf16, #tpu.memory_space<vmem>>, %arg8: memref<1x128xbf16, #tpu.memory_space<vmem>>, %arg9: memref<16x128xbf16, #tpu.memory_space<vmem>>, %arg10: memref<16x128xf32, #tpu.memory_space<vmem>>) attributes {dimension_semantics = [#tpu.dimension_semantics<parallel>], iteration_bounds = array<i64: 1>, scalar_prefetch = 0 : i64, scratch_operands = 0 : i64, tpu.core_type = #tpu.core_type<tc>, window_params = [{transform_indices = @transform_0, window_bounds = array<i64: 16, 256>}, {pipeline_mode = #tpu.pipeline_mode<synchronous>, transform_indices = @transform_1, window_bounds = array<i64: 256, 128>}, {pipeline_mode = #tpu.pipeline_mode<synchronous>, transform_indices = @transform_2, window_bounds = array<i64: 1, 128>}, {transform_indices = @transform_3, window_bounds = array<i64: 16, 128>}, {pipeline_mode = #tpu.pipeline_mode<synchronous>, transform_indices = @transform_4, window_bounds = array<i64: 1, 128>}, {pipeline_mode = #tpu.pipeline_mode<synchronous>, transform_indices = @transform_5, window_bounds = array<i64: 1, 128>}, {pipeline_mode = #tpu.pipeline_mode<synchronous>, transform_indices = @transform_6, window_bounds = array<i64: 128, 128>}, {pipeline_mode = #tpu.pipeline_mode<synchronous>, transform_indices = @transform_7, window_bounds = array<i64: 1, 128>}, {transform_indices = @transform_8, window_bounds = array<i64: 16, 128>}, {transform_indices = @transform_9, window_bounds = array<i64: 16, 128>}]} {
    %c0 = arith.constant 0 : index
    %c0_0 = arith.constant 0 : index
    %0 = vector.load %arg1[%c0, %c0_0] : memref<16x256xbf16, #tpu.memory_space<vmem>>, vector<16x256xbf16>
    %c0_1 = arith.constant 0 : index
    %c0_2 = arith.constant 0 : index
    %1 = vector.load %arg2[%c0_1, %c0_2] : memref<256x128xbf16, #tpu.memory_space<vmem>>, vector<256x128xbf16>
    %cst = arith.constant dense<0.000000e+00> : vector<16x128xf32>
    %2 = tpu.matmul %0, %1, %cst {dimension_numbers = #tpu.dot_dimension_numbers<[1], [0], [0], [1], [0, 0, 1, 1], [], []>} : vector<16x256xbf16>, vector<256x128xbf16>, vector<16x128xf32> -> vector<16x128xf32>
    %c0_3 = arith.constant 0 : index
    %c0_4 = arith.constant 0 : index
    %3 = vector.load %arg3[%c0_3, %c0_4] : memref<1x128xbf16, #tpu.memory_space<vmem>>, vector<1x128xbf16>
    %4 = arith.extf %3 : vector<1x128xbf16> to vector<1x128xf32>
    %5 = vector.broadcast %4 : vector<1x128xf32> to vector<16x128xf32>
    %6 = arith.addf %2, %5 : vector<16x128xf32>
    %c0_5 = arith.constant 0 : index
    %c0_6 = arith.constant 0 : index
    %7 = vector.load %arg4[%c0_5, %c0_6] : memref<16x128xbf16, #tpu.memory_space<vmem>>, vector<16x128xbf16>
    %8 = arith.extf %7 : vector<16x128xbf16> to vector<16x128xf32>
    %9 = arith.addf %6, %8 : vector<16x128xf32>
    %cst_7 = arith.constant dense<0.000000e+00> : vector<16xf32>
    %10 = vector.multi_reduction <add>, %9, %cst_7 [1] : vector<16x128xf32> to vector<16xf32>
    %11 = vector.shape_cast %10 : vector<16xf32> to vector<16x1xf32>
    %cst_8 = arith.constant 1.280000e+02 : f32
    %12 = vector.broadcast %cst_8 : f32 to vector<16x1xf32>
    %13 = arith.divf %11, %12 : vector<16x1xf32>
    %14 = vector.broadcast %13 : vector<16x1xf32> to vector<16x128xf32>
    %15 = arith.subf %9, %14 : vector<16x128xf32>
    %16 = arith.mulf %15, %15 : vector<16x128xf32>
    %cst_9 = arith.constant dense<0.000000e+00> : vector<16xf32>
    %17 = vector.multi_reduction <add>, %16, %cst_9 [1] : vector<16x128xf32> to vector<16xf32>
    %18 = vector.shape_cast %17 : vector<16xf32> to vector<16x1xf32>
    %cst_10 = arith.constant 1.280000e+02 : f32
    %19 = vector.broadcast %cst_10 : f32 to vector<16x1xf32>
    %20 = arith.divf %18, %19 : vector<16x1xf32>
    %cst_11 = arith.constant 9.99999996E-13 : f32
    %21 = vector.broadcast %cst_11 : f32 to vector<16x1xf32>
    %22 = arith.addf %20, %21 : vector<16x1xf32>
    %23 = math.rsqrt %22 : vector<16x1xf32>
    %24 = vector.broadcast %13 : vector<16x1xf32> to vector<16x128xf32>
    %25 = arith.subf %9, %24 : vector<16x128xf32>
    %26 = vector.broadcast %23 : vector<16x1xf32> to vector<16x128xf32>
    %27 = arith.mulf %25, %26 : vector<16x128xf32>
    %c0_12 = arith.constant 0 : index
    %c0_13 = arith.constant 0 : index
    %28 = vector.load %arg5[%c0_12, %c0_13] : memref<1x128xbf16, #tpu.memory_space<vmem>>, vector<1x128xbf16>
    %29 = arith.extf %28 : vector<1x128xbf16> to vector<1x128xf32>
    %30 = vector.broadcast %29 : vector<1x128xf32> to vector<16x128xf32>
    %31 = arith.mulf %27, %30 : vector<16x128xf32>
    %c0_14 = arith.constant 0 : index
    %c0_15 = arith.constant 0 : index
    %32 = vector.load %arg6[%c0_14, %c0_15] : memref<1x128xbf16, #tpu.memory_space<vmem>>, vector<1x128xbf16>
    %33 = arith.extf %32 : vector<1x128xbf16> to vector<1x128xf32>
    %34 = vector.broadcast %33 : vector<1x128xf32> to vector<16x128xf32>
    %35 = arith.addf %31, %34 : vector<16x128xf32>
    %36 = arith.truncf %35 : vector<16x128xf32> to vector<16x128xbf16>
    %c0_16 = arith.constant 0 : index
    %c0_17 = arith.constant 0 : index
    %37 = vector.load %arg9[%c0_16, %c0_17] : memref<16x128xbf16, #tpu.memory_space<vmem>>, vector<16x128xbf16>
    tpu.vector_store %arg9[%c0_16, %c0_17], %36 {strides = array<i32>} : memref<16x128xbf16, #tpu.memory_space<vmem>>, vector<16x128xbf16>,
    %c0_18 = arith.constant 0 : index
    %c0_19 = arith.constant 0 : index
    %38 = vector.load %arg7[%c0_18, %c0_19] : memref<128x128xbf16, #tpu.memory_space<vmem>>, vector<128x128xbf16>
    %39 = arith.extf %38 : vector<128x128xbf16> to vector<128x128xf32>
    %cst_20 = arith.constant dense<0.000000e+00> : vector<16x128xf32>
    %40 = tpu.matmul %35, %39, %cst_20 {dimension_numbers = #tpu.dot_dimension_numbers<[1], [0], [0], [1], [0, 0, 1, 1], [], []>} : vector<16x128xf32>, vector<128x128xf32>, vector<16x128xf32> -> vector<16x128xf32>
    %c0_21 = arith.constant 0 : index
    %c0_22 = arith.constant 0 : index
    %41 = vector.load %arg8[%c0_21, %c0_22] : memref<1x128xbf16, #tpu.memory_space<vmem>>, vector<1x128xbf16>
    %42 = arith.extf %41 : vector<1x128xbf16> to vector<1x128xf32>
    %43 = vector.broadcast %42 : vector<1x128xf32> to vector<16x128xf32>
    %44 = arith.addf %40, %43 : vector<16x128xf32>
    %c0_23 = arith.constant 0 : index
    %c0_24 = arith.constant 0 : index
    %45 = vector.load %arg10[%c0_23, %c0_24] : memref<16x128xf32, #tpu.memory_space<vmem>>, vector<16x128xf32>
    tpu.vector_store %arg10[%c0_23, %c0_24], %44 {strides = array<i32>} : memref<16x128xf32, #tpu.memory_space<vmem>>, vector<16x128xf32>,
    return
  }
  func.func @transform_0(%arg0: i32) -> (i32, i32) {
    %c0_i32 = arith.constant 0 : i32
    %c0_i32_0 = arith.constant 0 : i32
    return %arg0, %c0_i32 : i32, i32
  }
  func.func @transform_1(%arg0: i32) -> (i32, i32) {
    %c0_i32 = arith.constant 0 : i32
    %c0_i32_0 = arith.constant 0 : i32
    %c0_i32_1 = arith.constant 0 : i32
    return %c0_i32, %c0_i32_0 : i32, i32
  }
  func.func @transform_2(%arg0: i32) -> (i32, i32) {
    %c0_i32 = arith.constant 0 : i32
    %c0_i32_0 = arith.constant 0 : i32
    %c0_i32_1 = arith.constant 0 : i32
    return %c0_i32, %c0_i32_0 : i32, i32
  }
  func.func @transform_3(%arg0: i32) -> (i32, i32) {
    %c0_i32 = arith.constant 0 : i32
    %c0_i32_0 = arith.constant 0 : i32
    return %arg0, %c0_i32 : i32, i32
  }
  func.func @transform_4(%arg0: i32) -> (i32, i32) {
    %c0_i32 = arith.constant 0 : i32
    %c0_i32_0 = arith.constant 0 : i32
    %c0_i32_1 = arith.constant 0 : i32
    return %c0_i32, %c0_i32_0 : i32, i32
  }
  func.func @transform_5(%arg0: i32) -> (i32, i32) {
    %c0_i32 = arith.constant 0 : i32
    %c0_i32_0 = arith.constant 0 : i32
    %c0_i32_1 = arith.constant 0 : i32
    return %c0_i32, %c0_i32_0 : i32, i32
  }
  func.func @transform_6(%arg0: i32) -> (i32, i32) {
    %c0_i32 = arith.constant 0 : i32
    %c0_i32_0 = arith.constant 0 : i32
    %c0_i32_1 = arith.constant 0 : i32
    return %c0_i32, %c0_i32_0 : i32, i32
  }
  func.func @transform_7(%arg0: i32) -> (i32, i32) {
    %c0_i32 = arith.constant 0 : i32
    %c0_i32_0 = arith.constant 0 : i32
    %c0_i32_1 = arith.constant 0 : i32
    return %c0_i32, %c0_i32_0 : i32, i32
  }
  func.func @transform_8(%arg0: i32) -> (i32, i32) {
    %c0_i32 = arith.constant 0 : i32
    %c0_i32_0 = arith.constant 0 : i32
    return %arg0, %c0_i32 : i32, i32
  }
  func.func @transform_9(%arg0: i32) -> (i32, i32) {
    %c0_i32 = arith.constant 0 : i32
    %c0_i32_0 = arith.constant 0 : i32
    return %arg0, %c0_i32 : i32, i32
  }
}

module attributes {stable_mosaic.version = 11 : i64} {
  func.func @_pooler_cls_kernel(%arg0: i32, %arg1: memref<2x128xbf16, #tpu.memory_space<vmem>>, %arg2: memref<128x128xbf16, #tpu.memory_space<vmem>>, %arg3: memref<1x128xbf16, #tpu.memory_space<vmem>>, %arg4: memref<128x128xbf16, #tpu.memory_space<vmem>>, %arg5: memref<1x128xbf16, #tpu.memory_space<vmem>>, %arg6: memref<2x128xf32, #tpu.memory_space<vmem>>) attributes {dimension_semantics = [#tpu.dimension_semantics<arbitrary>], iteration_bounds = array<i64: 1>, scalar_prefetch = 0 : i64, scratch_operands = 0 : i64, tpu.core_type = #tpu.core_type<tc>, window_params = [{pipeline_mode = #tpu.pipeline_mode<synchronous>, transform_indices = @transform_0, window_bounds = array<i64: 2, 128>}, {pipeline_mode = #tpu.pipeline_mode<synchronous>, transform_indices = @transform_1, window_bounds = array<i64: 128, 128>}, {pipeline_mode = #tpu.pipeline_mode<synchronous>, transform_indices = @transform_2, window_bounds = array<i64: 1, 128>}, {pipeline_mode = #tpu.pipeline_mode<synchronous>, transform_indices = @transform_3, window_bounds = array<i64: 128, 128>}, {pipeline_mode = #tpu.pipeline_mode<synchronous>, transform_indices = @transform_4, window_bounds = array<i64: 1, 128>}, {pipeline_mode = #tpu.pipeline_mode<synchronous>, transform_indices = @transform_5, window_bounds = array<i64: 2, 128>}]} {
    %c0 = arith.constant 0 : index
    %c0_0 = arith.constant 0 : index
    %0 = vector.load %arg1[%c0, %c0_0] : memref<2x128xbf16, #tpu.memory_space<vmem>>, vector<2x128xbf16>
    %c0_1 = arith.constant 0 : index
    %c0_2 = arith.constant 0 : index
    %1 = vector.load %arg2[%c0_1, %c0_2] : memref<128x128xbf16, #tpu.memory_space<vmem>>, vector<128x128xbf16>
    %cst = arith.constant dense<0.000000e+00> : vector<2x128xf32>
    %2 = tpu.matmul %0, %1, %cst {dimension_numbers = #tpu.dot_dimension_numbers<[1], [0], [0], [1], [0, 0, 1, 1], [], []>} : vector<2x128xbf16>, vector<128x128xbf16>, vector<2x128xf32> -> vector<2x128xf32>
    %c0_3 = arith.constant 0 : index
    %c0_4 = arith.constant 0 : index
    %3 = vector.load %arg3[%c0_3, %c0_4] : memref<1x128xbf16, #tpu.memory_space<vmem>>, vector<1x128xbf16>
    %4 = arith.extf %3 : vector<1x128xbf16> to vector<1x128xf32>
    %5 = vector.broadcast %4 : vector<1x128xf32> to vector<2x128xf32>
    %6 = arith.addf %2, %5 : vector<2x128xf32>
    %7 = math.tanh %6 : vector<2x128xf32>
    %c0_5 = arith.constant 0 : index
    %c0_6 = arith.constant 0 : index
    %8 = vector.load %arg4[%c0_5, %c0_6] : memref<128x128xbf16, #tpu.memory_space<vmem>>, vector<128x128xbf16>
    %9 = arith.extf %8 : vector<128x128xbf16> to vector<128x128xf32>
    %cst_7 = arith.constant dense<0.000000e+00> : vector<2x128xf32>
    %10 = tpu.matmul %7, %9, %cst_7 {dimension_numbers = #tpu.dot_dimension_numbers<[1], [0], [0], [1], [0, 0, 1, 1], [], []>} : vector<2x128xf32>, vector<128x128xf32>, vector<2x128xf32> -> vector<2x128xf32>
    %c0_8 = arith.constant 0 : index
    %c0_9 = arith.constant 0 : index
    %11 = vector.load %arg5[%c0_8, %c0_9] : memref<1x128xbf16, #tpu.memory_space<vmem>>, vector<1x128xbf16>
    %12 = arith.extf %11 : vector<1x128xbf16> to vector<1x128xf32>
    %13 = vector.broadcast %12 : vector<1x128xf32> to vector<2x128xf32>
    %14 = arith.addf %10, %13 : vector<2x128xf32>
    %15 = arith.negf %14 : vector<2x128xf32>
    %16 = math.exp %15 : vector<2x128xf32>
    %cst_10 = arith.constant 1.000000e+00 : f32
    %17 = vector.broadcast %cst_10 : f32 to vector<2x128xf32>
    %18 = arith.addf %17, %16 : vector<2x128xf32>
    %19 = arith.divf %17, %18 : vector<2x128xf32>
    %c0_11 = arith.constant 0 : index
    %c0_12 = arith.constant 0 : index
    %20 = vector.load %arg6[%c0_11, %c0_12] : memref<2x128xf32, #tpu.memory_space<vmem>>, vector<2x128xf32>
    tpu.vector_store %arg6[%c0_11, %c0_12], %19 {strides = array<i32>} : memref<2x128xf32, #tpu.memory_space<vmem>>, vector<2x128xf32>,
    return
  }
  func.func @transform_0(%arg0: i32) -> (i32, i32) {
    %c0_i32 = arith.constant 0 : i32
    %c0_i32_0 = arith.constant 0 : i32
    %c0_i32_1 = arith.constant 0 : i32
    return %c0_i32, %c0_i32_0 : i32, i32
  }
  func.func @transform_1(%arg0: i32) -> (i32, i32) {
    %c0_i32 = arith.constant 0 : i32
    %c0_i32_0 = arith.constant 0 : i32
    %c0_i32_1 = arith.constant 0 : i32
    return %c0_i32, %c0_i32_0 : i32, i32
  }
  func.func @transform_2(%arg0: i32) -> (i32, i32) {
    %c0_i32 = arith.constant 0 : i32
    %c0_i32_0 = arith.constant 0 : i32
    %c0_i32_1 = arith.constant 0 : i32
    return %c0_i32, %c0_i32_0 : i32, i32
  }
  func.func @transform_3(%arg0: i32) -> (i32, i32) {
    %c0_i32 = arith.constant 0 : i32
    %c0_i32_0 = arith.constant 0 : i32
    %c0_i32_1 = arith.constant 0 : i32
    return %c0_i32, %c0_i32_0 : i32, i32
  }
  func.func @transform_4(%arg0: i32) -> (i32, i32) {
    %c0_i32 = arith.constant 0 : i32
    %c0_i32_0 = arith.constant 0 : i32
    %c0_i32_1 = arith.constant 0 : i32
    return %c0_i32, %c0_i32_0 : i32, i32
  }
  func.func @transform_5(%arg0: i32) -> (i32, i32) {
    %c0_i32 = arith.constant 0 : i32
    %c0_i32_0 = arith.constant 0 : i32
    %c0_i32_1 = arith.constant 0 : i32
    return %c0_i32, %c0_i32_0 : i32, i32
  }
}

</mosaic_0001>

<llo_original>
// kernel: tpu_custom_call.1
$region0: #{tpu_custom_call.1}
  #allocation0 [shape = 'u32[]', space=smem, size = 0x4, offset = 0x4, fixed_abs, tag = 'smem constant byte address 0x4 - core index']
  #allocation1 [shape = 'u32[144,128]{1,0:T(1,128)}', space=vmem, size = 0x12000, scoped, tag = 'internal scratch']
  %s0 = inlined_call_operand.hbm [shape: f32[8,128], index: 0, kind: input, shape index: {}]
  %s1 = inlined_call_operand.hbm [shape: f32[16,128], index: 1, kind: output, shape index: {}]
  %s2 = sld [smem:[#allocation0]]
  $region41: #{tpu_custom_call.1} parent=0
    _
  %s4 = ssub.s32 1, %s2
  %s5 = scalar_select 0, %s4, %s2
  $region1: #{tpu_custom_call.1} parent=0
    #allocation2 [shape = 'u8[4096]{0}', space=vmem, size = 0x1000, scoped, tag = 'input window, operand 0, single buffered']
    #allocation3 [shape = 's32[2]{0}', space=sflag, size = 0x8, scoped, tag = 'scoped memory for tpu_custom_call.1']
    #allocation4 [shape = 's32[2]{0}', space=sflag, size = 0x8, scoped, tag = 'scoped memory for tpu_custom_call.1']
    #allocation5 [shape = 'u8[8192]{0}', space=vmem, size = 0x2000, scoped, tag = 'output window, operand 0']
    %6 = vsyncpa [#allocation3], 0
    %7 = vsyncpa [#allocation4], 0
    %s8 = scalar_lea.sflag [#allocation4], 1
    %9 = vsyncpa %s8, 0
    loop: start=0, step=1, limit=4
    $region2: #{tpu_custom_call.1} parent=1 // loop_pre_header
      _
    $region3: #{tpu_custom_call.1} parent=1 // loop_header
      %s11 = sphi 0, %s15
      %p12 = scmp.ge.s32.totalorder %s11, 4
      %s19 = sphi 0, %s19
      %s21 = sphi 0, %s19
      %s22 = sphi 0, %s21
      %s36 = sphi 0, %s22
      %s42 = sphi 0, %s44
      %s45 = sphi 0, %s42
      %s46 = sphi 0, %s45
      %s62 = sphi 0, %s46
    $region4: #{tpu_custom_call.1} parent=1 // loop_header_branch
      %14 = sbr.rel (%p12) target = $region8
    $region5: #{tpu_custom_call.1} parent=1 // loop_body
      %s16 = ssub.s32 %s11, 1
      %s17 = ssub.s32 %s11, 2
      %s18 = sadd.s32 %s11, 1
      %s20 = sadd.s32 %s19, 1
      %p23 = scmp.eq.s32.totalorder %s11, 1
      %p24 = scmp.ne.s32.totalorder %s19, %s21
      %p25 = scmp.eq.s32.totalorder %s11, 0
      %p26 = por %p24, %p25
      %p27 = scmp.ne.s32.totalorder %s19, %s21
      %p28 = scmp.eq.s32.totalorder %s16, 1
      %p29 = por %p27, %p28
      %p30 = scmp.ne.s32.totalorder %s21, %s22
      %p31 = scmp.eq.s32.totalorder %s16, 0
      %p32 = por %p30, %p31
      %p33 = scmp.ne.s32.totalorder %s21, %s22
      %p34 = scmp.eq.s32.totalorder %s17, 1
      %p35 = por %p33, %p34
      %p37 = scmp.ne.s32.totalorder %s22, %s36
      %p38 = scmp.eq.s32.totalorder %s17, 0
      %p39 = por %p37, %p38
      %s40 = ssub.s32 %s11, %s18
      %p41 = scmp.eq.s32.totalorder %s40, 0
      %s43 = sadd.s32 %s42, 1
      %s44 = scalar_select %p41, %s42, %s43
      %p47 = pneg %p41
      %p48 = scmp.eq.s32.totalorder %s11, 1
      %p49 = por %p47, %p48
      %p50 = scmp.ne.s32.totalorder %s42, %s45
      %p51 = scmp.eq.s32.totalorder %s11, 0
      %p52 = por %p50, %p51
      %p53 = scmp.ne.s32.totalorder %s42, %s45
      %p54 = scmp.eq.s32.totalorder %s16, 1
      %p55 = por %p53, %p54
      %p56 = scmp.ne.s32.totalorder %s45, %s46
      %p57 = scmp.eq.s32.totalorder %s16, 0
      %p58 = por %p56, %p57
      %p59 = scmp.ne.s32.totalorder %s45, %s46
      %p60 = scmp.eq.s32.totalorder %s17, 1
      %p61 = por %p59, %p60
      %p63 = scmp.ne.s32.totalorder %s46, %s62
      %p64 = scmp.eq.s32.totalorder %s17, 0
      %p65 = por %p63, %p64
      %p66 = scmp.le.s32.totalorder 1, %s11
      %p67 = scmp.lt.s32.totalorder %s11, 3
      %p68 = pnand %p66, %p67
      %p69 = pneg %p68
      // Predicated region
      $region9: #{tpu_custom_call.1} parent=5 // pred_check
        _
      $region10: #{tpu_custom_call.1} parent=5 // pred_check_branch
        %71 = sbr.rel (%p68) target = $region12
      $region11: #{tpu_custom_call.1} parent=5 // pred_region
        %s72 = ssub.s32 %s11, 1
        // Predicated region
        $region13: #{tpu_custom_call.1} parent=11 // pred_check
          %p73 = pneg %p32
        $region14: #{tpu_custom_call.1} parent=11 // pred_check_branch
          %75 = sbr.rel (%p73) target = $region16
        $region15: #{tpu_custom_call.1} parent=11 // pred_region
          %s77 = ssub.s32 128, 128
          %78 = vsyncadd [#allocation3], %s77
          %s80 = sshll.u32 [#allocation2], 4
          %s81 = int_to_ptr.vmem [resolvable:$true] %s80
          %83 = dma.hbm_to_vmem [thread:$0]  %s0, 128, %s81, [#allocation3]
        $region16: #{tpu_custom_call.1} parent=11 // pred_fallthru
          _
      $region12: #{tpu_custom_call.1} parent=5 // pred_fallthru
        _
      %p84 = scmp.lt.s32.totalorder %s11, 2
      // Predicated region
      $region17: #{tpu_custom_call.1} parent=5 // pred_check
        %p85 = pneg %p84
      $region18: #{tpu_custom_call.1} parent=5 // pred_check_branch
        %87 = sbr.rel (%p85) target = $region20
      $region19: #{tpu_custom_call.1} parent=5 // pred_region
        _
      $region20: #{tpu_custom_call.1} parent=5 // pred_fallthru
        _
      %p88 = scmp.le.s32.totalorder 1, %s11
      %p89 = scmp.lt.s32.totalorder %s11, 3
      %p90 = pnand %p88, %p89
      %p91 = pneg %p90
      // Predicated region
      $region21: #{tpu_custom_call.1} parent=5 // pred_check
        _
      $region22: #{tpu_custom_call.1} parent=5 // pred_check_branch
        %93 = sbr.rel (%p90) target = $region24
      $region23: #{tpu_custom_call.1} parent=5 // pred_region
        %s94 = ssub.s32 %s11, 1
        // Predicated region
        $region25: #{tpu_custom_call.1} parent=23 // pred_check
          %p95 = pneg %p32
        $region26: #{tpu_custom_call.1} parent=23 // pred_check_branch
          %97 = sbr.rel (%p95) target = $region28
        $region27: #{tpu_custom_call.1} parent=23 // pred_region
          %98 = dma.done [#allocation3], 128
        $region28: #{tpu_custom_call.1} parent=23 // pred_fallthru
          _
        %p99 = pneg %p32
        %p100 = pneg %p29
        %p101 = pneg %p58
        %p102 = pneg %p55
        %s103 = sand.u32 %s45, 1
        %s104 = scalar_lea.sflag [#allocation4], %s103
        %s105 = sand.u32 %s45, 1
        %s106 = smul.addr %s105, 8
        %s107 = scalar_lea.vmem [#allocation5], %s106
        %v108 = vld [vmem:[#allocation2] sm:$0xff]
        %v109 = vmul.f32 %v108, 2.0
        %110 = vst [vmem:[%s107] sm:$0xff] %v109
        %s111 = sand.u32 %s45, 1
        %s112 = scalar_lea.sflag [#allocation4], %s111
        %s113 = sand.u32 %s45, 1
        %s114 = smul.addr %s113, 8
        %s115 = scalar_lea.vmem [#allocation5], %s114
        // Predicated region
        $region29: #{tpu_custom_call.1} parent=23 // pred_check
          %p116 = pneg %p55
        $region30: #{tpu_custom_call.1} parent=23 // pred_check_branch
          %118 = sbr.rel (%p116) target = $region32
        $region31: #{tpu_custom_call.1} parent=23 // pred_region
          %s120 = ssub.s32 128, 128
          %121 = vsyncadd %s112, %s120
          %s122 = smul.addr %s16, 128
          %s123 = scalar_lea.hbm %s1, %s122
          %s125 = sshll.u32 %s115, 4
          %s126 = int_to_ptr.vmem [resolvable:$true] %s125
          %128 = dma.vmem_to_hbm [thread:$0]  %s126, 128, %s123, %s112
        $region32: #{tpu_custom_call.1} parent=23 // pred_fallthru
          _
      $region24: #{tpu_custom_call.1} parent=5 // pred_fallthru
        _
      %p129 = scmp.le.s32.totalorder 2, %s11
      // Predicated region
      $region33: #{tpu_custom_call.1} parent=5 // pred_check
        %p130 = pneg %p129
      $region34: #{tpu_custom_call.1} parent=5 // pred_check_branch
        %132 = sbr.rel (%p130) target = $region36
      $region35: #{tpu_custom_call.1} parent=5 // pred_region
        %s133 = ssub.s32 %s11, 2
        // Predicated region
        $region37: #{tpu_custom_call.1} parent=35 // pred_check
          %p134 = pneg %p61
        $region38: #{tpu_custom_call.1} parent=35 // pred_check_branch
          %136 = sbr.rel (%p134) target = $region40
        $region39: #{tpu_custom_call.1} parent=35 // pred_region
          %s137 = sand.u32 %s46, 1
          %s138 = scalar_lea.sflag [#allocation4], %s137
          %s139 = sand.u32 %s46, 1
          %s140 = smul.addr %s139, 8
          %s141 = scalar_lea.vmem [#allocation5], %s140
          %142 = dma.done %s138, 128
        $region40: #{tpu_custom_call.1} parent=35 // pred_fallthru
          _
      $region36: #{tpu_custom_call.1} parent=5 // pred_fallthru
        _
    $region6: #{tpu_custom_call.1} parent=1 // loop_footer
      %s15 = sadd.s32 1, %s11
    $region7: #{tpu_custom_call.1} parent=1 // loop_footer_branch
      %10 = sbr.rel target = $region3
    $region8: #{tpu_custom_call.1} parent=1 // loop_exit
      _
    %143 = vsyncpa [#allocation3], 1
    %s144 = scalar_lea.sflag [#allocation3], 1
    %145 = vsyncpa %s144, 1
    %146 = vsyncpa [#allocation4], 1
    %s147 = scalar_lea.sflag [#allocation4], 1
    %148 = vsyncpa %s147, 1

// kernel: bert_qa_forward.10
$region0: #{bert_qa_forward.10}
  #allocation0 [shape = 'u32[]', space=smem, size = 0x4, offset = 0x4, fixed_abs, tag = 'smem constant byte address 0x4 - core index']
  #allocation1 [shape = 'u32[144,128]{1,0:T(1,128)}', space=vmem, size = 0x12000, scoped, tag = 'internal scratch']
  %s0 = inlined_call_operand.vmem [shape: bf16[16,128], index: 0, kind: input, shape index: {}]
  %s1 = inlined_call_operand.vmem [shape: bf16[16,128], index: 1, kind: input, shape index: {}]
  %s2 = inlined_call_operand.vmem [shape: bf16[16,128], index: 2, kind: input, shape index: {}]
  %s3 = inlined_call_operand.vmem [shape: bf16[1,128], index: 3, kind: input, shape index: {}]
  %s4 = inlined_call_operand.vmem [shape: bf16[1,128], index: 4, kind: input, shape index: {}]
  %s5 = inlined_call_operand.vmem [shape: bf16[16,128], index: 5, kind: output, shape index: {}]
  %s6 = sld [smem:[#allocation0]]
  $region30: #{bert_qa_forward.10} parent=0
    _
  %s8 = ssub.s32 1, %s6
  %s9 = scalar_select 0, %s8, %s6
  // Predicated region
  $region2: #{bert_qa_forward.10} parent=0 // pred_check
    _
  $region3: #{bert_qa_forward.10} parent=0 // pred_check_branch
    %11 = sbr.rel (0) target = $region5
  $region4: #{bert_qa_forward.10} parent=0 // pred_region
    _
  $region5: #{bert_qa_forward.10} parent=0 // pred_fallthru
    _
  // Predicated region
  $region6: #{bert_qa_forward.10} parent=0 // pred_check
    _
  $region7: #{bert_qa_forward.10} parent=0 // pred_check_branch
    %13 = sbr.rel (0) target = $region9
  $region8: #{bert_qa_forward.10} parent=0 // pred_region
    _
  $region9: #{bert_qa_forward.10} parent=0 // pred_fallthru
    _
  // Predicated region
  $region10: #{bert_qa_forward.10} parent=0 // pred_check
    _
  $region11: #{bert_qa_forward.10} parent=0 // pred_check_branch
    %15 = sbr.rel (0) target = $region13
  $region12: #{bert_qa_forward.10} parent=0 // pred_region
    _
  $region13: #{bert_qa_forward.10} parent=0 // pred_fallthru
    _
  // Predicated region
  $region14: #{bert_qa_forward.10} parent=0 // pred_check
    _
  $region15: #{bert_qa_forward.10} parent=0 // pred_check_branch
    %17 = sbr.rel (0) target = $region17
  $region16: #{bert_qa_forward.10} parent=0 // pred_region
    _
  $region17: #{bert_qa_forward.10} parent=0 // pred_fallthru
    _
  // Predicated region
  $region18: #{bert_qa_forward.10} parent=0 // pred_check
    _
  $region19: #{bert_qa_forward.10} parent=0 // pred_check_branch
    %19 = sbr.rel (0) target = $region21
  $region20: #{bert_qa_forward.10} parent=0 // pred_region
    _
  $region21: #{bert_qa_forward.10} parent=0 // pred_fallthru
    _
  %v20 = vld [vmem:[%s0] sm:$0xf]
  %v21 = vld [vmem:[%s0 + $0x4] sm:$0xf]
  %v22 = vunpack.c.l.bf16 %v20
  %v23 = vunpack.c.l.bf16 %v21
  %v24 = vld [vmem:[%s1] sm:$0xf]
  %v25 = vld [vmem:[%s1 + $0x4] sm:$0xf]
  %v26 = vunpack.c.l.bf16 %v24
  %v27 = vunpack.c.l.bf16 %v25
  %v28 = vadd.f32 %v22, %v26
  %v29 = vadd.f32 %v23, %v27
  %v30 = vld [vmem:[%s2] sm:$0xf]
  %v31 = vld [vmem:[%s2 + $0x4] sm:$0xf]
  %v32 = vunpack.c.l.bf16 %v30
  %v33 = vunpack.c.l.bf16 %v31
  %v34 = vadd.f32 %v28, %v32
  %v35 = vadd.f32 %v29, %v33
  %36 = vadd.xlane.f32.xlu0 %v34
  %v37 = vpop.xlane.xlu0 %36
  %38 = vadd.xlane.f32.xlu0 %v35
  %v39 = vpop.xlane.xlu0 %38
  %v40 = vrcp.pop 128.0
  %v41 = vmul.f32 %v37, %v40
  %v42 = vmul.f32 %v39, %v40
  %v43 = vsub.f32 %v34, %v41
  %v44 = vsub.f32 %v35, %v42
  %v45 = vmul.f32 %v43, %v43
  %v46 = vmul.f32 %v44, %v44
  %47 = vadd.xlane.f32.xlu0 %v45
  %v48 = vpop.xlane.xlu0 %47
  %49 = vadd.xlane.f32.xlu0 %v46
  %v50 = vpop.xlane.xlu0 %49
  %v51 = vmul.f32 %v48, %v40
  %v52 = vmul.f32 %v50, %v40
  %v53 = vadd.f32 %v51, 1e-12
  %v54 = vadd.f32 %v52, 1e-12
  %v55 = vrsqrt.pop %v53
  %v56 = vrsqrt.pop %v54
  %v57 = vmul.f32 %v43, %v55
  %v58 = vmul.f32 %v44, %v56
  %v59 = vld [vmem:[%s3] sm:$0x1]
  %v60 = vunpack.c.l.bf16 %v59
  %v61 = vlaneseq
  %v62 = vshrl.u32 %v61, 7
  %v63 = vsub.s32 0, %v62
  %v64 = vrot.slane %v60, %v63
  %v65 = vmul.f32 %v57, %v64
  %v66 = vmul.f32 %v58, %v64
  %v67 = vld [vmem:[%s4] sm:$0x1]
  %v68 = vunpack.c.l.bf16 %v67
  %v69 = vlaneseq
  %v70 = vshrl.u32 %v69, 7
  %v71 = vsub.s32 0, %v70
  %v72 = vrot.slane %v68, %v71
  %v73 = vadd.f32 %v65, %v72
  %v74 = vadd.f32 %v66, %v72
  %v75 = vpack.c.bf16 %v74, %v73
  %v77 = vunpack.c.l.b16 %v75
  %v78 = vunpack.c.h.b16 %v75
  %v79 = vpack.c.b16 %v77, %v77
  %v80 = vpack.c.b16 %v78, %v78
  %83 = vst [vmem:[%s5] sm:$0xf] %v79
  %84 = vst [vmem:[%s5 + $0x4] sm:$0xf] %v80
  // Predicated region
  $region22: #{bert_qa_forward.10} parent=0 // pred_check
    _
  $region23: #{bert_qa_forward.10} parent=0 // pred_check_branch
    %86 = sbr.rel (0) target = $region25
  $region24: #{bert_qa_forward.10} parent=0 // pred_region
    _
  $region25: #{bert_qa_forward.10} parent=0 // pred_fallthru
    _
  // Predicated region
  $region26: #{bert_qa_forward.10} parent=0 // pred_check
    _
  $region27: #{bert_qa_forward.10} parent=0 // pred_check_branch
    %88 = sbr.rel (0) target = $region29
  $region28: #{bert_qa_forward.10} parent=0 // pred_region
    _
  $region29: #{bert_qa_forward.10} parent=0 // pred_fallthru
    _

// kernel: bert_qa_forward.13
$region0: #{bert_qa_forward.13}
  #allocation0 [shape = 'u32[]', space=smem, size = 0x4, offset = 0x4, fixed_abs, tag = 'smem constant byte address 0x4 - core index']
  #allocation1 [shape = 'u32[144,128]{1,0:T(1,128)}', space=vmem, size = 0x12000, scoped, tag = 'internal scratch']
  %s0 = inlined_call_operand.vmem [shape: bf16[16,128], index: 0, kind: input, shape index: {}]
  %s1 = inlined_call_operand.vmem [shape: bf16[128,256], index: 1, kind: input, shape index: {}]
  %s2 = inlined_call_operand.vmem [shape: bf16[1,256], index: 2, kind: input, shape index: {}]
  %s3 = inlined_call_operand.vmem [shape: bf16[16,256], index: 3, kind: output, shape index: {}]
  %s4 = sld [smem:[#allocation0]]
  $region22: #{bert_qa_forward.13} parent=0
    _
  %s6 = ssub.s32 1, %s4
  %s7 = scalar_select 0, %s6, %s4
  // Predicated region
  $region2: #{bert_qa_forward.13} parent=0 // pred_check
    _
  $region3: #{bert_qa_forward.13} parent=0 // pred_check_branch
    %9 = sbr.rel (0) target = $region5
  $region4: #{bert_qa_forward.13} parent=0 // pred_region
    _
  $region5: #{bert_qa_forward.13} parent=0 // pred_fallthru
    _
  // Predicated region
  $region6: #{bert_qa_forward.13} parent=0 // pred_check
    _
  $region7: #{bert_qa_forward.13} parent=0 // pred_check_branch
    %11 = sbr.rel (0) target = $region9
  $region8: #{bert_qa_forward.13} parent=0 // pred_region
    _
  $region9: #{bert_qa_forward.13} parent=0 // pred_fallthru
    _
  // Predicated region
  $region10: #{bert_qa_forward.13} parent=0 // pred_check
    _
  $region11: #{bert_qa_forward.13} parent=0 // pred_check_branch
    %13 = sbr.rel (0) target = $region13
  $region12: #{bert_qa_forward.13} parent=0 // pred_region
    _
  $region13: #{bert_qa_forward.13} parent=0 // pred_fallthru
    _
  %v15 = vld [vmem:[%s0] sm:$0xf]
  %v16 = vld [vmem:[%s0 + $0x4] sm:$0xf]
  %v17 = vld [vmem:[%s1] sm:$0xff]
  %v18 = vld [vmem:[%s1 + $0x8] sm:$0xff]
  %v19 = vld [vmem:[%s1 + $0x10] sm:$0xff]
  %v20 = vld [vmem:[%s1 + $0x18] sm:$0xff]
  %v21 = vld [vmem:[%s1 + $0x20] sm:$0xff]
  %v22 = vld [vmem:[%s1 + $0x28] sm:$0xff]
  %v23 = vld [vmem:[%s1 + $0x30] sm:$0xff]
  %v24 = vld [vmem:[%s1 + $0x38] sm:$0xff]
  %v25 = vld [vmem:[%s1 + $0x40] sm:$0xff]
  %v26 = vld [vmem:[%s1 + $0x48] sm:$0xff]
  %v27 = vld [vmem:[%s1 + $0x50] sm:$0xff]
  %v28 = vld [vmem:[%s1 + $0x58] sm:$0xff]
  %v29 = vld [vmem:[%s1 + $0x60] sm:$0xff]
  %v30 = vld [vmem:[%s1 + $0x68] sm:$0xff]
  %v31 = vld [vmem:[%s1 + $0x70] sm:$0xff]
  %v32 = vld [vmem:[%s1 + $0x78] sm:$0xff]
  %v33 = vld [vmem:[%s2] sm:$0x3]
  %v34 = vunpack.c.l.bf16 %v33
  %v36 = vlaneseq
  %v37 = vshrl.u32 %v36, 7
  %v38 = vsub.s32 0, %v37
  %v39 = vrot.slane %v34, %v38
  %v40 = vlaneseq
  %v41 = vshrl.u32 %v40, 7
  %v42 = vsub.s32 2, %v41
  %v43 = vrot.slane %v34, %v42
  %v46 = vlaneseq
  %v47 = vshrl.u32 %v46, 7
  %v48 = vsub.s32 0, %v47
  %v49 = vrot.slane %v39, %v48
  %v50 = vlaneseq
  %v51 = vshrl.u32 %v50, 7
  %v52 = vsub.s32 0, %v51
  %v53 = vrot.slane %v43, %v52
  %v56 = vunpack.c.l.b16 %v15
  %v57 = vunpack.c.l.b16 %v16
  %v58 = vpack.c.b16 %v57, %v56
  %v76 = vunpack.c.l.b16 %v17
  %v77 = vunpack.c.h.b16 %v17
  %v78 = vunpack.c.l.b16 %v18
  %v79 = vunpack.c.h.b16 %v18
  %v80 = vunpack.c.l.b16 %v19
  %v81 = vunpack.c.h.b16 %v19
  %v82 = vunpack.c.l.b16 %v20
  %v83 = vunpack.c.h.b16 %v20
  %v84 = vunpack.c.l.b16 %v21
  %v85 = vunpack.c.h.b16 %v21
  %v86 = vunpack.c.l.b16 %v22
  %v87 = vunpack.c.h.b16 %v22
  %v88 = vunpack.c.l.b16 %v23
  %v89 = vunpack.c.h.b16 %v23
  %v90 = vunpack.c.l.b16 %v24
  %v91 = vunpack.c.h.b16 %v24
  %v92 = vunpack.c.l.b16 %v25
  %v93 = vunpack.c.h.b16 %v25
  %v94 = vunpack.c.l.b16 %v26
  %v95 = vunpack.c.h.b16 %v26
  %v96 = vunpack.c.l.b16 %v27
  %v97 = vunpack.c.h.b16 %v27
  %v98 = vunpack.c.l.b16 %v28
  %v99 = vunpack.c.h.b16 %v28
  %v100 = vunpack.c.l.b16 %v29
  %v101 = vunpack.c.h.b16 %v29
  %v102 = vunpack.c.l.b16 %v30
  %v103 = vunpack.c.h.b16 %v30
  %v104 = vunpack.c.l.b16 %v31
  %v105 = vunpack.c.h.b16 %v31
  %v106 = vunpack.c.l.b16 %v32
  %v107 = vunpack.c.h.b16 %v32
  %v108 = vpack.c.b16 %v78, %v76
  %v109 = vpack.c.b16 %v79, %v77
  %v110 = vpack.c.b16 %v82, %v80
  %v111 = vpack.c.b16 %v83, %v81
  %v112 = vpack.c.b16 %v86, %v84
  %v113 = vpack.c.b16 %v87, %v85
  %v114 = vpack.c.b16 %v90, %v88
  %v115 = vpack.c.b16 %v91, %v89
  %v116 = vpack.c.b16 %v94, %v92
  %v117 = vpack.c.b16 %v95, %v93
  %v118 = vpack.c.b16 %v98, %v96
  %v119 = vpack.c.b16 %v99, %v97
  %v120 = vpack.c.b16 %v102, %v100
  %v121 = vpack.c.b16 %v103, %v101
  %v122 = vpack.c.b16 %v106, %v104
  %v123 = vpack.c.b16 %v107, %v105
  %140 = vmatprep.subr.bf16.mxu0 %v109
  %141 = vmatpush1.bf16.msra.mxu0 %v108
  %142 = vmatprep.subr.bf16.mxu0 %v111
  %143 = vmatpush1.bf16.msra.mxu0 %v110
  %144 = vmatprep.subr.bf16.mxu0 %v113
  %145 = vmatpush1.bf16.msra.mxu0 %v112
  %146 = vmatprep.subr.bf16.mxu0 %v115
  %147 = vmatpush1.bf16.msra.mxu0 %v114
  %148 = vmatprep.subr.bf16.mxu0 %v117
  %149 = vmatpush1.bf16.msra.mxu0 %v116
  %150 = vmatprep.subr.bf16.mxu0 %v119
  %151 = vmatpush1.bf16.msra.mxu0 %v118
  %152 = vmatprep.subr.bf16.mxu0 %v121
  %153 = vmatpush1.bf16.msra.mxu0 %v120
  %154 = vmatprep.subr.bf16.mxu0 %v123
  %155 = vmatpush1.bf16.msra.mxu0 %v122
  %156 = vmatprep.subr.bf16.mxu0 0
  %157 = vmatpush1.bf16.msra.mxu0 0
  %158 = vmatprep.subr.bf16.mxu0 0
  %159 = vmatpush1.bf16.msra.mxu0 0
  %160 = vmatprep.subr.bf16.mxu0 0
  %161 = vmatpush1.bf16.msra.mxu0 0
  %162 = vmatprep.subr.bf16.mxu0 0
  %163 = vmatpush1.bf16.msra.mxu0 0
  %164 = vmatprep.subr.bf16.mxu0 0
  %165 = vmatpush1.bf16.msra.mxu0 0
  %166 = vmatprep.subr.bf16.mxu0 0
  %167 = vmatpush1.bf16.msra.mxu0 0
  %168 = vmatprep.subr.bf16.mxu0 0
  %169 = vmatpush1.bf16.msra.mxu0 0
  %170 = vmatprep.subr.bf16.mxu0 0
  %171 = vmatpush1.bf16.msra.mxu0 0
  %172 = vmatprep.mubr.bf16.mxu0 0
  %173 = vmatmul.mubr.bf16.gmra.mrb[0].mxu0 %v58
  %v174 = vpop.f32.mrb[0].mxu0
  %v175 = vadd.f32 %v49, %v174
  %v176 = vpop.f32.mrb[0].mxu0
  %v177 = vadd.f32 %v53, %v176
  %v178 = vpop.f32.mrb[0].mxu0
  %v179 = vadd.f32 %v49, %v178
  %v180 = vpop.f32.mrb[0].mxu0
  %v181 = vadd.f32 %v53, %v180
  %182 = vdwg.mxu0
  %v183 = vmul.f32 %v175, %v175
  %v184 = vmul.f32 %v177, %v177
  %v185 = vmul.f32 %v179, %v179
  %v186 = vmul.f32 %v181, %v181
  %v187 = vmul.f32 %v175, %v183
  %v188 = vmul.f32 %v177, %v184
  %v189 = vmul.f32 %v179, %v185
  %v190 = vmul.f32 %v181, %v186
  %v191 = vmul.f32 %v187, 0.044715
  %v192 = vmul.f32 %v188, 0.044715
  %v193 = vmul.f32 %v189, 0.044715
  %v194 = vmul.f32 %v190, 0.044715
  %v195 = vadd.f32 %v175, %v191
  %v196 = vadd.f32 %v177, %v192
  %v197 = vadd.f32 %v179, %v193
  %v198 = vadd.f32 %v181, %v194
  %v199 = vmul.f32 %v195, 0.7978846
  %v200 = vmul.f32 %v196, 0.7978846
  %v201 = vmul.f32 %v197, 0.7978846
  %v202 = vmul.f32 %v198, 0.7978846
  %v203 = vtanh.pop %v199
  %v204 = vtanh.pop %v200
  %v205 = vtanh.pop %v201
  %v206 = vtanh.pop %v202
  %v207 = vadd.f32 %v203, 1.0
  %v208 = vadd.f32 %v204, 1.0
  %v209 = vadd.f32 %v205, 1.0
  %v210 = vadd.f32 %v206, 1.0
  %v211 = vmul.f32 %v207, 0.5
  %v212 = vmul.f32 %v208, 0.5
  %v213 = vmul.f32 %v209, 0.5
  %v214 = vmul.f32 %v210, 0.5
  %v215 = vmul.f32 %v175, %v211
  %v216 = vmul.f32 %v177, %v212
  %v217 = vmul.f32 %v179, %v213
  %v218 = vmul.f32 %v181, %v214
  %v219 = vpack.c.bf16 %v217, %v215
  %v220 = vpack.c.bf16 %v218, %v216
  %v223 = vunpack.c.l.b16 %v219
  %v224 = vunpack.c.l.b16 %v220
  %v225 = vunpack.c.h.b16 %v219
  %v226 = vunpack.c.h.b16 %v220
  %v227 = vpack.c.b16 %v224, %v223
  %v228 = vpack.c.b16 %v226, %v225
  %231 = vst [vmem:[%s3] sm:$0xff] %v227
  %232 = vst [vmem:[%s3 + $0x8] sm:$0xff] %v228
  // Predicated region
  $region14: #{bert_qa_forward.13} parent=0 // pred_check
    _
  $region15: #{bert_qa_forward.13} parent=0 // pred_check_branch
    %234 = sbr.rel (0) target = $region17
  $region16: #{bert_qa_forward.13} parent=0 // pred_region
    _
  $region17: #{bert_qa_forward.13} parent=0 // pred_fallthru
    _
  // Predicated region
  $region18: #{bert_qa_forward.13} parent=0 // pred_check
    _
  $region19: #{bert_qa_forward.13} parent=0 // pred_check_branch
    %236 = sbr.rel (0) target = $region21
  $region20: #{bert_qa_forward.13} parent=0 // pred_region
    _
  $region21: #{bert_qa_forward.13} parent=0 // pred_fallthru
    _

// kernel: bert_qa_forward.12
$region0: #{bert_qa_forward.12}
  #allocation0 [shape = 'u32[]', space=smem, size = 0x4, offset = 0x4, fixed_abs, tag = 'smem constant byte address 0x4 - core index']
  #allocation1 [shape = 'u32[144,128]{1,0:T(1,128)}', space=vmem, size = 0x12000, scoped, tag = 'internal scratch']
  %s0 = inlined_call_operand.vmem [shape: bf16[16,128], index: 0, kind: input, shape index: {}]
  %s1 = inlined_call_operand.vmem [shape: bf16[128,128], index: 1, kind: input, shape index: {}]
  %s2 = inlined_call_operand.vmem [shape: bf16[1,128], index: 2, kind: input, shape index: {}]
  %s3 = inlined_call_operand.vmem [shape: bf16[16,128], index: 3, kind: input, shape index: {}]
  %s4 = inlined_call_operand.vmem [shape: bf16[1,128], index: 4, kind: input, shape index: {}]
  %s5 = inlined_call_operand.vmem [shape: bf16[1,128], index: 5, kind: input, shape index: {}]
  %s6 = inlined_call_operand.vmem [shape: bf16[16,128], index: 6, kind: output, shape index: {}]
  %s7 = sld [smem:[#allocation0]]
  $region34: #{bert_qa_forward.12} parent=0
    _
  %s9 = ssub.s32 1, %s7
  %s10 = scalar_select 0, %s9, %s7
  // Predicated region
  $region2: #{bert_qa_forward.12} parent=0 // pred_check
    _
  $region3: #{bert_qa_forward.12} parent=0 // pred_check_branch
    %12 = sbr.rel (0) target = $region5
  $region4: #{bert_qa_forward.12} parent=0 // pred_region
    _
  $region5: #{bert_qa_forward.12} parent=0 // pred_fallthru
    _
  // Predicated region
  $region6: #{bert_qa_forward.12} parent=0 // pred_check
    _
  $region7: #{bert_qa_forward.12} parent=0 // pred_check_branch
    %14 = sbr.rel (0) target = $region9
  $region8: #{bert_qa_forward.12} parent=0 // pred_region
    _
  $region9: #{bert_qa_forward.12} parent=0 // pred_fallthru
    _
  // Predicated region
  $region10: #{bert_qa_forward.12} parent=0 // pred_check
    _
  $region11: #{bert_qa_forward.12} parent=0 // pred_check_branch
    %16 = sbr.rel (0) target = $region13
  $region12: #{bert_qa_forward.12} parent=0 // pred_region
    _
  $region13: #{bert_qa_forward.12} parent=0 // pred_fallthru
    _
  // Predicated region
  $region14: #{bert_qa_forward.12} parent=0 // pred_check
    _
  $region15: #{bert_qa_forward.12} parent=0 // pred_check_branch
    %18 = sbr.rel (0) target = $region17
  $region16: #{bert_qa_forward.12} parent=0 // pred_region
    _
  $region17: #{bert_qa_forward.12} parent=0 // pred_fallthru
    _
  // Predicated region
  $region18: #{bert_qa_forward.12} parent=0 // pred_check
    _
  $region19: #{bert_qa_forward.12} parent=0 // pred_check_branch
    %20 = sbr.rel (0) target = $region21
  $region20: #{bert_qa_forward.12} parent=0 // pred_region
    _
  $region21: #{bert_qa_forward.12} parent=0 // pred_fallthru
    _
  // Predicated region
  $region22: #{bert_qa_forward.12} parent=0 // pred_check
    _
  $region23: #{bert_qa_forward.12} parent=0 // pred_check_branch
    %22 = sbr.rel (0) target = $region25
  $region24: #{bert_qa_forward.12} parent=0 // pred_region
    _
  $region25: #{bert_qa_forward.12} parent=0 // pred_fallthru
    _
  %v24 = vld [vmem:[%s0] sm:$0xf]
  %v25 = vld [vmem:[%s0 + $0x4] sm:$0xf]
  %v26 = vld [vmem:[%s1] sm:$0xf]
  %v27 = vld [vmem:[%s1 + $0x4] sm:$0xf]
  %v28 = vld [vmem:[%s1 + $0x8] sm:$0xf]
  %v29 = vld [vmem:[%s1 + $0xc] sm:$0xf]
  %v30 = vld [vmem:[%s1 + $0x10] sm:$0xf]
  %v31 = vld [vmem:[%s1 + $0x14] sm:$0xf]
  %v32 = vld [vmem:[%s1 + $0x18] sm:$0xf]
  %v33 = vld [vmem:[%s1 + $0x1c] sm:$0xf]
  %v34 = vld [vmem:[%s1 + $0x20] sm:$0xf]
  %v35 = vld [vmem:[%s1 + $0x24] sm:$0xf]
  %v36 = vld [vmem:[%s1 + $0x28] sm:$0xf]
  %v37 = vld [vmem:[%s1 + $0x2c] sm:$0xf]
  %v38 = vld [vmem:[%s1 + $0x30] sm:$0xf]
  %v39 = vld [vmem:[%s1 + $0x34] sm:$0xf]
  %v40 = vld [vmem:[%s1 + $0x38] sm:$0xf]
  %v41 = vld [vmem:[%s1 + $0x3c] sm:$0xf]
  %v42 = vld [vmem:[%s2] sm:$0x1]
  %v43 = vunpack.c.l.bf16 %v42
  %v44 = vlaneseq
  %v45 = vshrl.u32 %v44, 7
  %v46 = vsub.s32 0, %v45
  %v47 = vrot.slane %v43, %v46
  %v50 = vunpack.c.l.b16 %v24
  %v51 = vunpack.c.l.b16 %v25
  %v52 = vpack.c.b16 %v51, %v50
  %v70 = vunpack.c.l.b16 %v26
  %v71 = vunpack.c.l.b16 %v27
  %v72 = vunpack.c.l.b16 %v28
  %v73 = vunpack.c.l.b16 %v29
  %v74 = vunpack.c.l.b16 %v30
  %v75 = vunpack.c.l.b16 %v31
  %v76 = vunpack.c.l.b16 %v32
  %v77 = vunpack.c.l.b16 %v33
  %v78 = vunpack.c.l.b16 %v34
  %v79 = vunpack.c.l.b16 %v35
  %v80 = vunpack.c.l.b16 %v36
  %v81 = vunpack.c.l.b16 %v37
  %v82 = vunpack.c.l.b16 %v38
  %v83 = vunpack.c.l.b16 %v39
  %v84 = vunpack.c.l.b16 %v40
  %v85 = vunpack.c.l.b16 %v41
  %v86 = vpack.c.b16 %v71, %v70
  %v87 = vpack.c.b16 %v73, %v72
  %v88 = vpack.c.b16 %v75, %v74
  %v89 = vpack.c.b16 %v77, %v76
  %v90 = vpack.c.b16 %v79, %v78
  %v91 = vpack.c.b16 %v81, %v80
  %v92 = vpack.c.b16 %v83, %v82
  %v93 = vpack.c.b16 %v85, %v84
  %102 = vmatprep.subr.bf16.mxu0 0
  %103 = vmatpush1.bf16.msra.mxu0 %v86
  %104 = vmatprep.subr.bf16.mxu0 0
  %105 = vmatpush1.bf16.msra.mxu0 %v87
  %106 = vmatprep.subr.bf16.mxu0 0
  %107 = vmatpush1.bf16.msra.mxu0 %v88
  %108 = vmatprep.subr.bf16.mxu0 0
  %109 = vmatpush1.bf16.msra.mxu0 %v89
  %110 = vmatprep.subr.bf16.mxu0 0
  %111 = vmatpush1.bf16.msra.mxu0 %v90
  %112 = vmatprep.subr.bf16.mxu0 0
  %113 = vmatpush1.bf16.msra.mxu0 %v91
  %114 = vmatprep.subr.bf16.mxu0 0
  %115 = vmatpush1.bf16.msra.mxu0 %v92
  %116 = vmatprep.subr.bf16.mxu0 0
  %117 = vmatpush1.bf16.msra.mxu0 %v93
  %118 = vmatprep.subr.bf16.mxu0 0
  %119 = vmatpush1.bf16.msra.mxu0 0
  %120 = vmatprep.subr.bf16.mxu0 0
  %121 = vmatpush1.bf16.msra.mxu0 0
  %122 = vmatprep.subr.bf16.mxu0 0
  %123 = vmatpush1.bf16.msra.mxu0 0
  %124 = vmatprep.subr.bf16.mxu0 0
  %125 = vmatpush1.bf16.msra.mxu0 0
  %126 = vmatprep.subr.bf16.mxu0 0
  %127 = vmatpush1.bf16.msra.mxu0 0
  %128 = vmatprep.subr.bf16.mxu0 0
  %129 = vmatpush1.bf16.msra.mxu0 0
  %130 = vmatprep.subr.bf16.mxu0 0
  %131 = vmatpush1.bf16.msra.mxu0 0
  %132 = vmatprep.subr.bf16.mxu0 0
  %133 = vmatpush1.bf16.msra.mxu0 0
  %134 = vmatprep.mubr.bf16.mxu0 0
  %135 = vmatmul.mubr.bf16.gmra.mrb[0].mxu0 %v52
  %v136 = vpop.f32.mrb[0].mxu0
  %v137 = vadd.f32 %v47, %v136
  %v138 = vpop.f32.mrb[0].mxu0
  %v139 = vpop.f32.mrb[0].mxu0
  %v140 = vadd.f32 %v47, %v139
  %v141 = vpop.f32.mrb[0].mxu0
  %142 = vdwg.mxu0
  %v143 = vld [vmem:[%s3] sm:$0xf]
  %v144 = vld [vmem:[%s3 + $0x4] sm:$0xf]
  %v145 = vunpack.c.l.bf16 %v143
  %v146 = vunpack.c.l.bf16 %v144
  %v147 = vadd.f32 %v137, %v145
  %v148 = vadd.f32 %v140, %v146
  %149 = vadd.xlane.f32.xlu0 %v147
  %v150 = vpop.xlane.xlu0 %149
  %151 = vadd.xlane.f32.xlu0 %v148
  %v152 = vpop.xlane.xlu0 %151
  %v153 = vrcp.pop 128.0
  %v154 = vmul.f32 %v150, %v153
  %v155 = vmul.f32 %v152, %v153
  %v156 = vsub.f32 %v147, %v154
  %v157 = vsub.f32 %v148, %v155
  %v158 = vmul.f32 %v156, %v156
  %v159 = vmul.f32 %v157, %v157
  %160 = vadd.xlane.f32.xlu0 %v158
  %v161 = vpop.xlane.xlu0 %160
  %162 = vadd.xlane.f32.xlu0 %v159
  %v163 = vpop.xlane.xlu0 %162
  %v164 = vmul.f32 %v161, %v153
  %v165 = vmul.f32 %v163, %v153
  %v166 = vadd.f32 %v164, 1e-12
  %v167 = vadd.f32 %v165, 1e-12
  %v168 = vrsqrt.pop %v166
  %v169 = vrsqrt.pop %v167
  %v170 = vmul.f32 %v156, %v168
  %v171 = vmul.f32 %v157, %v169
  %v172 = vld [vmem:[%s4] sm:$0x1]
  %v173 = vunpack.c.l.bf16 %v172
  %v174 = vlaneseq
  %v175 = vshrl.u32 %v174, 7
  %v176 = vsub.s32 0, %v175
  %v177 = vrot.slane %v173, %v176
  %v178 = vmul.f32 %v170, %v177
  %v179 = vmul.f32 %v171, %v177
  %v180 = vld [vmem:[%s5] sm:$0x1]
  %v181 = vunpack.c.l.bf16 %v180
  %v182 = vlaneseq
  %v183 = vshrl.u32 %v182, 7
  %v184 = vsub.s32 0, %v183
  %v185 = vrot.slane %v181, %v184
  %v186 = vadd.f32 %v178, %v185
  %v187 = vadd.f32 %v179, %v185
  %v188 = vpack.c.bf16 %v187, %v186
  %v190 = vunpack.c.l.b16 %v188
  %v191 = vunpack.c.h.b16 %v188
  %v192 = vpack.c.b16 %v190, %v190
  %v193 = vpack.c.b16 %v191, %v191
  %196 = vst [vmem:[%s6] sm:$0xf] %v192
  %197 = vst [vmem:[%s6 + $0x4] sm:$0xf] %v193
  // Predicated region
  $region26: #{bert_qa_forward.12} parent=0 // pred_check
    _
  $region27: #{bert_qa_forward.12} parent=0 // pred_check_branch
    %199 = sbr.rel (0) target = $region29
  $region28: #{bert_qa_forward.12} parent=0 // pred_region
    _
  $region29: #{bert_qa_forward.12} parent=0 // pred_fallthru
    _
  // Predicated region
  $region30: #{bert_qa_forward.12} parent=0 // pred_check
    _
  $region31: #{bert_qa_forward.12} parent=0 // pred_check_branch
    %201 = sbr.rel (0) target = $region33
  $region32: #{bert_qa_forward.12} parent=0 // pred_region
    _
  $region33: #{bert_qa_forward.12} parent=0 // pred_fallthru
    _

// kernel: bert_qa_forward.11
$region0: #{bert_qa_forward.11}
  #allocation0 [shape = 'u32[]', space=smem, size = 0x4, offset = 0x4, fixed_abs, tag = 'smem constant byte address 0x4 - core index']
  #allocation1 [shape = 'u32[144,128]{1,0:T(1,128)}', space=vmem, size = 0x12000, scoped, tag = 'internal scratch']
  %s0 = inlined_call_operand.vmem [shape: bf16[2,8,128], index: 0, kind: input, shape index: {}]
  %s1 = inlined_call_operand.vmem [shape: bf16[128,384], index: 1, kind: input, shape index: {}]
  %s2 = inlined_call_operand.vmem [shape: bf16[1,384], index: 2, kind: input, shape index: {}]
  %s3 = inlined_call_operand.vmem [shape: f32[2,1,8], index: 3, kind: input, shape index: {}]
  %s4 = inlined_call_operand.vmem [shape: bf16[2,8,128], index: 4, kind: output, shape index: {}]
  %s5 = sld [smem:[#allocation0]]
  $region49: #{bert_qa_forward.11} parent=0
    _
  %s7 = ssub.s32 1, %s5
  %s8 = scalar_select 0, %s7, %s5
  loop: start=0, step=1, limit=4
  $region2: #{bert_qa_forward.11} parent=0 // loop_pre_header
    _
  $region3: #{bert_qa_forward.11} parent=0 // loop_header
    %s10 = sphi 0, %s14
    %p11 = scmp.ge.s32.totalorder %s10, 4
    %s20 = sphi 0, %s22
    %s23 = sphi 0, %s20
    %s24 = sphi 0, %s23
    %s40 = sphi 0, %s24
    %s44 = sphi 0, %s44
    %s46 = sphi 0, %s44
    %s47 = sphi 0, %s46
    %s61 = sphi 0, %s47
    %s65 = sphi 0, %s65
    %s67 = sphi 0, %s65
    %s68 = sphi 0, %s67
    %s82 = sphi 0, %s68
    %s88 = sphi 0, %s90
    %s91 = sphi 0, %s88
    %s92 = sphi 0, %s91
    %s108 = sphi 0, %s92
    %s114 = sphi 0, %s116
    %s117 = sphi 0, %s114
    %s118 = sphi 0, %s117
    %s134 = sphi 0, %s118
  $region4: #{bert_qa_forward.11} parent=0 // loop_header_branch
    %13 = sbr.rel (%p11) target = $region8
  $region5: #{bert_qa_forward.11} parent=0 // loop_body
    %s15 = ssub.s32 %s10, 1
    %s16 = ssub.s32 %s10, 2
    %s17 = sadd.s32 %s10, 1
    %s18 = ssub.s32 %s10, %s17
    %p19 = scmp.eq.s32.totalorder %s18, 0
    %s21 = sadd.s32 %s20, 1
    %s22 = scalar_select %p19, %s20, %s21
    %p25 = pneg %p19
    %p26 = scmp.eq.s32.totalorder %s10, 1
    %p27 = por %p25, %p26
    %p28 = scmp.ne.s32.totalorder %s20, %s23
    %p29 = scmp.eq.s32.totalorder %s10, 0
    %p30 = por %p28, %p29
    %p31 = scmp.ne.s32.totalorder %s20, %s23
    %p32 = scmp.eq.s32.totalorder %s15, 1
    %p33 = por %p31, %p32
    %p34 = scmp.ne.s32.totalorder %s23, %s24
    %p35 = scmp.eq.s32.totalorder %s15, 0
    %p36 = por %p34, %p35
    %p37 = scmp.ne.s32.totalorder %s23, %s24
    %p38 = scmp.eq.s32.totalorder %s16, 1
    %p39 = por %p37, %p38
    %p41 = scmp.ne.s32.totalorder %s24, %s40
    %p42 = scmp.eq.s32.totalorder %s16, 0
    %p43 = por %p41, %p42
    %s45 = sadd.s32 %s44, 1
    %p48 = scmp.eq.s32.totalorder %s10, 1
    %p49 = scmp.ne.s32.totalorder %s44, %s46
    %p50 = scmp.eq.s32.totalorder %s10, 0
    %p51 = por %p49, %p50
    %p52 = scmp.ne.s32.totalorder %s44, %s46
    %p53 = scmp.eq.s32.totalorder %s15, 1
    %p54 = por %p52, %p53
    %p55 = scmp.ne.s32.totalorder %s46, %s47
    %p56 = scmp.eq.s32.totalorder %s15, 0
    %p57 = por %p55, %p56
    %p58 = scmp.ne.s32.totalorder %s46, %s47
    %p59 = scmp.eq.s32.totalorder %s16, 1
    %p60 = por %p58, %p59
    %p62 = scmp.ne.s32.totalorder %s47, %s61
    %p63 = scmp.eq.s32.totalorder %s16, 0
    %p64 = por %p62, %p63
    %s66 = sadd.s32 %s65, 1
    %p69 = scmp.eq.s32.totalorder %s10, 1
    %p70 = scmp.ne.s32.totalorder %s65, %s67
    %p71 = scmp.eq.s32.totalorder %s10, 0
    %p72 = por %p70, %p71
    %p73 = scmp.ne.s32.totalorder %s65, %s67
    %p74 = scmp.eq.s32.totalorder %s15, 1
    %p75 = por %p73, %p74
    %p76 = scmp.ne.s32.totalorder %s67, %s68
    %p77 = scmp.eq.s32.totalorder %s15, 0
    %p78 = por %p76, %p77
    %p79 = scmp.ne.s32.totalorder %s67, %s68
    %p80 = scmp.eq.s32.totalorder %s16, 1
    %p81 = por %p79, %p80
    %p83 = scmp.ne.s32.totalorder %s68, %s82
    %p84 = scmp.eq.s32.totalorder %s16, 0
    %p85 = por %p83, %p84
    %s86 = ssub.s32 %s10, %s17
    %p87 = scmp.eq.s32.totalorder %s86, 0
    %s89 = sadd.s32 %s88, 1
    %s90 = scalar_select %p87, %s88, %s89
    %p93 = pneg %p87
    %p94 = scmp.eq.s32.totalorder %s10, 1
    %p95 = por %p93, %p94
    %p96 = scmp.ne.s32.totalorder %s88, %s91
    %p97 = scmp.eq.s32.totalorder %s10, 0
    %p98 = por %p96, %p97
    %p99 = scmp.ne.s32.totalorder %s88, %s91
    %p100 = scmp.eq.s32.totalorder %s15, 1
    %p101 = por %p99, %p100
    %p102 = scmp.ne.s32.totalorder %s91, %s92
    %p103 = scmp.eq.s32.totalorder %s15, 0
    %p104 = por %p102, %p103
    %p105 = scmp.ne.s32.totalorder %s91, %s92
    %p106 = scmp.eq.s32.totalorder %s16, 1
    %p107 = por %p105, %p106
    %p109 = scmp.ne.s32.totalorder %s92, %s108
    %p110 = scmp.eq.s32.totalorder %s16, 0
    %p111 = por %p109, %p110
    %s112 = ssub.s32 %s10, %s17
    %p113 = scmp.eq.s32.totalorder %s112, 0
    %s115 = sadd.s32 %s114, 1
    %s116 = scalar_select %p113, %s114, %s115
    %p119 = pneg %p113
    %p120 = scmp.eq.s32.totalorder %s10, 1
    %p121 = por %p119, %p120
    %p122 = scmp.ne.s32.totalorder %s114, %s117
    %p123 = scmp.eq.s32.totalorder %s10, 0
    %p124 = por %p122, %p123
    %p125 = scmp.ne.s32.totalorder %s114, %s117
    %p126 = scmp.eq.s32.totalorder %s15, 1
    %p127 = por %p125, %p126
    %p128 = scmp.ne.s32.totalorder %s117, %s118
    %p129 = scmp.eq.s32.totalorder %s15, 0
    %p130 = por %p128, %p129
    %p131 = scmp.ne.s32.totalorder %s117, %s118
    %p132 = scmp.eq.s32.totalorder %s16, 1
    %p133 = por %p131, %p132
    %p135 = scmp.ne.s32.totalorder %s118, %s134
    %p136 = scmp.eq.s32.totalorder %s16, 0
    %p137 = por %p135, %p136
    %p138 = scmp.le.s32.totalorder 1, %s10
    %p139 = scmp.lt.s32.totalorder %s10, 3
    %p140 = pnand %p138, %p139
    %p141 = pneg %p140
    // Predicated region
    $region9: #{bert_qa_forward.11} parent=5 // pred_check
      _
    $region10: #{bert_qa_forward.11} parent=5 // pred_check_branch
      %143 = sbr.rel (%p140) target = $region12
    $region11: #{bert_qa_forward.11} parent=5 // pred_region
      %s144 = ssub.s32 %s10, 1
      // Predicated region
      $region13: #{bert_qa_forward.11} parent=11 // pred_check
        %p145 = pneg %p57
      $region14: #{bert_qa_forward.11} parent=11 // pred_check_branch
        %147 = sbr.rel (%p145) target = $region16
      $region15: #{bert_qa_forward.11} parent=11 // pred_region
        _
      $region16: #{bert_qa_forward.11} parent=11 // pred_fallthru
        _
      // Predicated region
      $region17: #{bert_qa_forward.11} parent=11 // pred_check
        %p148 = pneg %p78
      $region18: #{bert_qa_forward.11} parent=11 // pred_check_branch
        %150 = sbr.rel (%p148) target = $region20
      $region19: #{bert_qa_forward.11} parent=11 // pred_region
        _
      $region20: #{bert_qa_forward.11} parent=11 // pred_fallthru
        _
    $region12: #{bert_qa_forward.11} parent=5 // pred_fallthru
      _
    %p151 = scmp.lt.s32.totalorder %s10, 2
    // Predicated region
    $region21: #{bert_qa_forward.11} parent=5 // pred_check
      %p152 = pneg %p151
    $region22: #{bert_qa_forward.11} parent=5 // pred_check_branch
      %154 = sbr.rel (%p152) target = $region24
    $region23: #{bert_qa_forward.11} parent=5 // pred_region
      // Predicated region
      $region25: #{bert_qa_forward.11} parent=23 // pred_check
        %p155 = pneg %p30
      $region26: #{bert_qa_forward.11} parent=23 // pred_check_branch
        %157 = sbr.rel (%p155) target = $region28
      $region27: #{bert_qa_forward.11} parent=23 // pred_region
        %p158 = scmp.lt.s32.totalorder %s10, 1
        %s159 = scalar_select %p158, %s10, 1
        %s160 = smul.addr %s159, 4
        %s161 = scalar_lea.vmem %s0, %s160
      $region28: #{bert_qa_forward.11} parent=23 // pred_fallthru
        _
      // Predicated region
      $region29: #{bert_qa_forward.11} parent=23 // pred_check
        %p162 = pneg %p98
      $region30: #{bert_qa_forward.11} parent=23 // pred_check_branch
        %164 = sbr.rel (%p162) target = $region32
      $region31: #{bert_qa_forward.11} parent=23 // pred_region
        %p165 = scmp.lt.s32.totalorder %s10, 1
        %s166 = scalar_select %p165, %s10, 1
        %s167 = scalar_lea.vmem %s3, %s166
      $region32: #{bert_qa_forward.11} parent=23 // pred_fallthru
        _
    $region24: #{bert_qa_forward.11} parent=5 // pred_fallthru
      _
    %p168 = scmp.le.s32.totalorder 1, %s10
    %p169 = scmp.lt.s32.totalorder %s10, 3
    %p170 = pnand %p168, %p169
    %p171 = pneg %p170
    // Predicated region
    $region33: #{bert_qa_forward.11} parent=5 // pred_check
      _
    $region34: #{bert_qa_forward.11} parent=5 // pred_check_branch
      %173 = sbr.rel (%p170) target = $region36
    $region35: #{bert_qa_forward.11} parent=5 // pred_region
      %s174 = ssub.s32 %s10, 1
      %p175 = scmp.lt.s32.totalorder %s15, 1
      %s176 = scalar_select %p175, %s15, 1
      %s177 = smul.addr %s176, 4
      %s178 = scalar_lea.vmem %s0, %s177
      %p179 = pneg %p36
      %p180 = pneg %p33
      %p181 = pneg %p57
      %p182 = pneg %p54
      %p183 = pneg %p78
      %p184 = pneg %p75
      %p185 = scmp.lt.s32.totalorder %s15, 1
      %s186 = scalar_select %p185, %s15, 1
      %s187 = scalar_lea.vmem %s3, %s186
      %p188 = pneg %p104
      %p189 = pneg %p101
      %p190 = pneg %p130
      %p191 = pneg %p127
      %p192 = scmp.lt.s32.totalorder %s15, 1
      %s193 = scalar_select %p192, %s15, 1
      %s194 = smul.addr %s193, 4
      %s195 = scalar_lea.vmem %s4, %s194
      %p196 = scmp.lt.s32.totalorder %s15, 1
      %s197 = scalar_select %p196, %s15, 1
      %s198 = smul.addr %s197, 4
      %s199 = scalar_lea.vmem %s0, %s198
      %p200 = scmp.lt.s32.totalorder %s15, 1
      %s201 = scalar_select %p200, %s15, 1
      %s202 = scalar_lea.vmem %s3, %s201
      %p203 = scmp.lt.s32.totalorder %s15, 1
      %s204 = scalar_select %p203, %s15, 1
      %s205 = smul.addr %s204, 4
      %s206 = scalar_lea.vmem %s4, %s205
      %v208 = vld [vmem:[%s199] sm:$0xf]
      %v209 = vld [vmem:[%s1] sm:$0xff]
      %v210 = vld [vmem:[%s1 + $0x8] sm:$0xf]
      %v211 = vld [vmem:[%s1 + $0xc] sm:$0xff]
      %v212 = vld [vmem:[%s1 + $0x14] sm:$0xf]
      %v213 = vld [vmem:[%s1 + $0x18] sm:$0xff]
      %v214 = vld [vmem:[%s1 + $0x20] sm:$0xf]
      %v215 = vld [vmem:[%s1 + $0x24] sm:$0xff]
      %v216 = vld [vmem:[%s1 + $0x2c] sm:$0xf]
      %v217 = vld [vmem:[%s1 + $0x30] sm:$0xff]
      %v218 = vld [vmem:[%s1 + $0x38] sm:$0xf]
      %v219 = vld [vmem:[%s1 + $0x3c] sm:$0xff]
      %v220 = vld [vmem:[%s1 + $0x44] sm:$0xf]
      %v221 = vld [vmem:[%s1 + $0x48] sm:$0xff]
      %v222 = vld [vmem:[%s1 + $0x50] sm:$0xf]
      %v223 = vld [vmem:[%s1 + $0x54] sm:$0xff]
      %v224 = vld [vmem:[%s1 + $0x5c] sm:$0xf]
      %v225 = vld [vmem:[%s1 + $0x60] sm:$0xff]
      %v226 = vld [vmem:[%s1 + $0x68] sm:$0xf]
      %v227 = vld [vmem:[%s1 + $0x6c] sm:$0xff]
      %v228 = vld [vmem:[%s1 + $0x74] sm:$0xf]
      %v229 = vld [vmem:[%s1 + $0x78] sm:$0xff]
      %v230 = vld [vmem:[%s1 + $0x80] sm:$0xf]
      %v231 = vld [vmem:[%s1 + $0x84] sm:$0xff]
      %v232 = vld [vmem:[%s1 + $0x8c] sm:$0xf]
      %v233 = vld [vmem:[%s1 + $0x90] sm:$0xff]
      %v234 = vld [vmem:[%s1 + $0x98] sm:$0xf]
      %v235 = vld [vmem:[%s1 + $0x9c] sm:$0xff]
      %v236 = vld [vmem:[%s1 + $0xa4] sm:$0xf]
      %v237 = vld [vmem:[%s1 + $0xa8] sm:$0xff]
      %v238 = vld [vmem:[%s1 + $0xb0] sm:$0xf]
      %v239 = vld [vmem:[%s1 + $0xb4] sm:$0xff]
      %v240 = vld [vmem:[%s1 + $0xbc] sm:$0xf]
      %v241 = vld [vmem:[%s2] sm:$0x7]
      %v242 = vunpack.c.l.bf16 %v241
      %v244 = vlaneseq
      %v245 = vshrl.u32 %v244, 7
      %v246 = vsub.s32 0, %v245
      %v247 = vrot.slane %v242, %v246
      %v248 = vlaneseq
      %v249 = vshrl.u32 %v248, 7
      %v250 = vsub.s32 2, %v249
      %v251 = vrot.slane %v242, %v250
      %v252 = vlaneseq
      %v253 = vshrl.u32 %v252, 7
      %v254 = vsub.s32 4, %v253
      %v255 = vrot.slane %v242, %v254
      %v259 = vlaneseq
      %v260 = vshrl.u32 %v259, 7
      %v261 = vsub.s32 0, %v260
      %v262 = vrot.slane %v247, %v261
      %v263 = vlaneseq
      %v264 = vshrl.u32 %v263, 7
      %v265 = vsub.s32 0, %v264
      %v266 = vrot.slane %v251, %v265
      %v267 = vlaneseq
      %v268 = vshrl.u32 %v267, 7
      %v269 = vsub.s32 0, %v268
      %v270 = vrot.slane %v255, %v269
      %v303 = vunpack.c.l.b16 %v209
      %v304 = vunpack.c.h.b16 %v209
      %v305 = vunpack.c.l.b16 %v210
      %v306 = vunpack.c.l.b16 %v211
      %v307 = vunpack.c.h.b16 %v211
      %v308 = vunpack.c.l.b16 %v212
      %v309 = vunpack.c.l.b16 %v213
      %v310 = vunpack.c.h.b16 %v213
      %v311 = vunpack.c.l.b16 %v214
      %v312 = vunpack.c.l.b16 %v215
      %v313 = vunpack.c.h.b16 %v215
      %v314 = vunpack.c.l.b16 %v216
      %v315 = vunpack.c.l.b16 %v217
      %v316 = vunpack.c.h.b16 %v217
      %v317 = vunpack.c.l.b16 %v218
      %v318 = vunpack.c.l.b16 %v219
      %v319 = vunpack.c.h.b16 %v219
      %v320 = vunpack.c.l.b16 %v220
      %v321 = vunpack.c.l.b16 %v221
      %v322 = vunpack.c.h.b16 %v221
      %v323 = vunpack.c.l.b16 %v222
      %v324 = vunpack.c.l.b16 %v223
      %v325 = vunpack.c.h.b16 %v223
      %v326 = vunpack.c.l.b16 %v224
      %v327 = vunpack.c.l.b16 %v225
      %v328 = vunpack.c.h.b16 %v225
      %v329 = vunpack.c.l.b16 %v226
      %v330 = vunpack.c.l.b16 %v227
      %v331 = vunpack.c.h.b16 %v227
      %v332 = vunpack.c.l.b16 %v228
      %v333 = vunpack.c.l.b16 %v229
      %v334 = vunpack.c.h.b16 %v229
      %v335 = vunpack.c.l.b16 %v230
      %v336 = vunpack.c.l.b16 %v231
      %v337 = vunpack.c.h.b16 %v231
      %v338 = vunpack.c.l.b16 %v232
      %v339 = vunpack.c.l.b16 %v233
      %v340 = vunpack.c.h.b16 %v233
      %v341 = vunpack.c.l.b16 %v234
      %v342 = vunpack.c.l.b16 %v235
      %v343 = vunpack.c.h.b16 %v235
      %v344 = vunpack.c.l.b16 %v236
      %v345 = vunpack.c.l.b16 %v237
      %v346 = vunpack.c.h.b16 %v237
      %v347 = vunpack.c.l.b16 %v238
      %v348 = vunpack.c.l.b16 %v239
      %v349 = vunpack.c.h.b16 %v239
      %v350 = vunpack.c.l.b16 %v240
      %v351 = vpack.c.b16 %v306, %v303
      %v352 = vpack.c.b16 %v307, %v304
      %v353 = vpack.c.b16 %v308, %v305
      %v354 = vpack.c.b16 %v312, %v309
      %v355 = vpack.c.b16 %v313, %v310
      %v356 = vpack.c.b16 %v314, %v311
      %v357 = vpack.c.b16 %v318, %v315
      %v358 = vpack.c.b16 %v319, %v316
      %v359 = vpack.c.b16 %v320, %v317
      %v360 = vpack.c.b16 %v324, %v321
      %v361 = vpack.c.b16 %v325, %v322
      %v362 = vpack.c.b16 %v326, %v323
      %v363 = vpack.c.b16 %v330, %v327
      %v364 = vpack.c.b16 %v331, %v328
      %v365 = vpack.c.b16 %v332, %v329
      %v366 = vpack.c.b16 %v336, %v333
      %v367 = vpack.c.b16 %v337, %v334
      %v368 = vpack.c.b16 %v338, %v335
      %v369 = vpack.c.b16 %v342, %v339
      %v370 = vpack.c.b16 %v343, %v340
      %v371 = vpack.c.b16 %v344, %v341
      %v372 = vpack.c.b16 %v348, %v345
      %v373 = vpack.c.b16 %v349, %v346
      %v374 = vpack.c.b16 %v350, %v347
      %399 = vmatprep.subr.bf16.mxu0 %v352
      %400 = vmatpush1.bf16.msra.mxu0 %v351
      %401 = vmatprep.subr.bf16.mxu0 %v355
      %402 = vmatpush1.bf16.msra.mxu0 %v354
      %403 = vmatprep.subr.bf16.mxu0 %v358
      %404 = vmatpush1.bf16.msra.mxu0 %v357
      %405 = vmatprep.subr.bf16.mxu0 %v361
      %406 = vmatpush1.bf16.msra.mxu0 %v360
      %407 = vmatprep.subr.bf16.mxu0 %v364
      %408 = vmatpush1.bf16.msra.mxu0 %v363
      %409 = vmatprep.subr.bf16.mxu0 %v367
      %410 = vmatpush1.bf16.msra.mxu0 %v366
      %411 = vmatprep.subr.bf16.mxu0 %v370
      %412 = vmatpush1.bf16.msra.mxu0 %v369
      %413 = vmatprep.subr.bf16.mxu0 %v373
      %414 = vmatpush1.bf16.msra.mxu0 %v372
      %415 = vmatprep.subr.bf16.mxu0 0
      %416 = vmatpush1.bf16.msra.mxu0 0
      %417 = vmatprep.subr.bf16.mxu0 0
      %418 = vmatpush1.bf16.msra.mxu0 0
      %419 = vmatprep.subr.bf16.mxu0 0
      %420 = vmatpush1.bf16.msra.mxu0 0
      %421 = vmatprep.subr.bf16.mxu0 0
      %422 = vmatpush1.bf16.msra.mxu0 0
      %423 = vmatprep.subr.bf16.mxu0 0
      %424 = vmatpush1.bf16.msra.mxu0 0
      %425 = vmatprep.subr.bf16.mxu0 0
      %426 = vmatpush1.bf16.msra.mxu0 0
      %427 = vmatprep.subr.bf16.mxu0 0
      %428 = vmatpush1.bf16.msra.mxu0 0
      %429 = vmatprep.subr.bf16.mxu0 0
      %430 = vmatpush1.bf16.msra.mxu0 0
      %431 = vmatprep.mubr.bf16.mxu0 0
      %432 = vmatmul.mubr.bf16.gmra.mrb[0].mxu0 %v208
      %v433 = vpop.f32.mrb[0].mxu0
      %v434 = vadd.f32 %v262, %v433
      %v435 = vpop.f32.mrb[0].mxu0
      %v436 = vadd.f32 %v266, %v435
      %v437 = vpop.f32.mrb[0].mxu0
      %v438 = vpop.f32.mrb[0].mxu0
      %439 = vdwg.mxu0
      %440 = vmatprep.subr.bf16.mxu0 0
      %441 = vmatpush1.bf16.msra.mxu0 %v353
      %442 = vmatprep.subr.bf16.mxu0 0
      %443 = vmatpush1.bf16.msra.mxu0 %v356
      %444 = vmatprep.subr.bf16.mxu0 0
      %445 = vmatpush1.bf16.msra.mxu0 %v359
      %446 = vmatprep.subr.bf16.mxu0 0
      %447 = vmatpush1.bf16.msra.mxu0 %v362
      %448 = vmatprep.subr.bf16.mxu0 0
      %449 = vmatpush1.bf16.msra.mxu0 %v365
      %450 = vmatprep.subr.bf16.mxu0 0
      %451 = vmatpush1.bf16.msra.mxu0 %v368
      %452 = vmatprep.subr.bf16.mxu0 0
      %453 = vmatpush1.bf16.msra.mxu0 %v371
      %454 = vmatprep.subr.bf16.mxu0 0
      %455 = vmatpush1.bf16.msra.mxu0 %v374
      %456 = vmatprep.subr.bf16.mxu0 0
      %457 = vmatpush1.bf16.msra.mxu0 0
      %458 = vmatprep.subr.bf16.mxu0 0
      %459 = vmatpush1.bf16.msra.mxu0 0
      %460 = vmatprep.subr.bf16.mxu0 0
      %461 = vmatpush1.bf16.msra.mxu0 0
      %462 = vmatprep.subr.bf16.mxu0 0
      %463 = vmatpush1.bf16.msra.mxu0 0
      %464 = vmatprep.subr.bf16.mxu0 0
      %465 = vmatpush1.bf16.msra.mxu0 0
      %466 = vmatprep.subr.bf16.mxu0 0
      %467 = vmatpush1.bf16.msra.mxu0 0
      %468 = vmatprep.subr.bf16.mxu0 0
      %469 = vmatpush1.bf16.msra.mxu0 0
      %470 = vmatprep.subr.bf16.mxu0 0
      %471 = vmatpush1.bf16.msra.mxu0 0
      %472 = vmatprep.mubr.bf16.mxu0 0
      %473 = vmatmul.mubr.bf16.gmra.mrb[0].mxu0 %v208
      %v474 = vpop.f32.mrb[0].mxu0
      %v475 = vadd.f32 %v270, %v474
      %v476 = vpop.f32.mrb[0].mxu0
      %v477 = vpop.f32.mrb[0].mxu0
      %v478 = vpop.f32.mrb[0].mxu0
      %479 = vdwg.mxu0
      %v480 = vpack.c.bf16 %v434, %v434
      %v481 = vpack.c.bf16 %v436, %v436
      %v482 = vpack.c.bf16 %v475, %v475
      %v483 = vld [vmem:[%s202] sm:$0x1]
      %vm484 = vcmask 523264
      %v486 = vsel %vm484, %v480, 0
      %v489 = vsel %vm484, %v481, 0
      %491 = vmatprep.subr.bf16.mxu0 0
      %492 = vmatpush1.bf16.xpose.msra.mxu0 %v489
      %493 = vmatprep.subr.bf16.mxu0 0
      %494 = vmatpush1.bf16.xpose.msra.mxu0 0
      %495 = vmatprep.subr.bf16.mxu0 0
      %496 = vmatpush1.bf16.xpose.msra.mxu0 0
      %497 = vmatprep.subr.bf16.mxu0 0
      %498 = vmatpush1.bf16.xpose.msra.mxu0 0
      %499 = vmatprep.subr.bf16.mxu0 0
      %500 = vmatpush1.bf16.xpose.msra.mxu0 0
      %501 = vmatprep.subr.bf16.mxu0 0
      %502 = vmatpush1.bf16.xpose.msra.mxu0 0
      %503 = vmatprep.subr.bf16.mxu0 0
      %504 = vmatpush1.bf16.xpose.msra.mxu0 0
      %505 = vmatprep.subr.bf16.mxu0 0
      %506 = vmatpush1.bf16.xpose.msra.mxu0 0
      %507 = vmatprep.subr.bf16.mxu0 0
      %508 = vmatpush1.bf16.xpose.msra.mxu0 0
      %509 = vmatprep.subr.bf16.mxu0 0
      %510 = vmatpush1.bf16.xpose.msra.mxu0 0
      %511 = vmatprep.subr.bf16.mxu0 0
      %512 = vmatpush1.bf16.xpose.msra.mxu0 0
      %513 = vmatprep.subr.bf16.mxu0 0
      %514 = vmatpush1.bf16.xpose.msra.mxu0 0
      %515 = vmatprep.subr.bf16.mxu0 0
      %516 = vmatpush1.bf16.xpose.msra.mxu0 0
      %517 = vmatprep.subr.bf16.mxu0 0
      %518 = vmatpush1.bf16.xpose.msra.mxu0 0
      %519 = vmatprep.subr.bf16.mxu0 0
      %520 = vmatpush1.bf16.xpose.msra.mxu0 0
      %521 = vmatprep.subr.bf16.mxu0 0
      %522 = vmatpush1.bf16.xpose.msra.mxu0 0
      %523 = vmatprep.mubr.bf16.mxu0 0
      %524 = vmatmul.mubr.bf16.gmra.mrb[0].mxu0 %v486
      %v525 = vpop.f32.mrb[0].mxu0
      %v526 = vadd.f32 0.0, %v525
      %v527 = vpop.f32.mrb[0].mxu0
      %v528 = vpop.f32.mrb[0].mxu0
      %v529 = vpop.f32.mrb[0].mxu0
      %530 = vdwg.mxu0
      %v531 = vmul.f32 %v526, 0.125
      %v533 = vlaneseq
      %v534 = vshrl.u32 %v533, 7
      %v535 = vsub.s32 0, %v534
      %v536 = vrot.slane %v483, %v535
      %v538 = vadd.f32 %v531, %v536
      %vm539 = vcmask 64512
      %v540 = vsel %vm539, %v538, -inf
      %541 = vmax.xlane.f32.xlu0 %v540
      %v542 = vpop.xlane.xlu0 %541
      %v543 = vsub.f32 %v538, %v542
      %v544 = vmul.f32 %v543, 1.442695
      %v545 = vpow.pop %v544
      %v546 = vsel %vm539, %v545, 0.0
      %547 = vadd.xlane.f32.xlu0 %v546
      %v548 = vpop.xlane.xlu0 %547
      %v549 = vrcp.pop %v548
      %v550 = vmul.f32 %v545, %v549
      %v551 = vpack.c.bf16 %v550, %v550
      %v553 = vsel %vm539, %v551, 0
      %vm555 = vcmask 1043456
      %v557 = vsel %vm555, %v482, 0
      %559 = vmatprep.subr.bf16.mxu0 0
      %560 = vmatpush1.bf16.msra.mxu0 %v557
      %561 = vmatprep.subr.bf16.mxu0 0
      %562 = vmatpush1.bf16.msra.mxu0 0
      %563 = vmatprep.subr.bf16.mxu0 0
      %564 = vmatpush1.bf16.msra.mxu0 0
      %565 = vmatprep.subr.bf16.mxu0 0
      %566 = vmatpush1.bf16.msra.mxu0 0
      %567 = vmatprep.subr.bf16.mxu0 0
      %568 = vmatpush1.bf16.msra.mxu0 0
      %569 = vmatprep.subr.bf16.mxu0 0
      %570 = vmatpush1.bf16.msra.mxu0 0
      %571 = vmatprep.subr.bf16.mxu0 0
      %572 = vmatpush1.bf16.msra.mxu0 0
      %573 = vmatprep.subr.bf16.mxu0 0
      %574 = vmatpush1.bf16.msra.mxu0 0
      %575 = vmatprep.subr.bf16.mxu0 0
      %576 = vmatpush1.bf16.msra.mxu0 0
      %577 = vmatprep.subr.bf16.mxu0 0
      %578 = vmatpush1.bf16.msra.mxu0 0
      %579 = vmatprep.subr.bf16.mxu0 0
      %580 = vmatpush1.bf16.msra.mxu0 0
      %581 = vmatprep.subr.bf16.mxu0 0
      %582 = vmatpush1.bf16.msra.mxu0 0
      %583 = vmatprep.subr.bf16.mxu0 0
      %584 = vmatpush1.bf16.msra.mxu0 0
      %585 = vmatprep.subr.bf16.mxu0 0
      %586 = vmatpush1.bf16.msra.mxu0 0
      %587 = vmatprep.subr.bf16.mxu0 0
      %588 = vmatpush1.bf16.msra.mxu0 0
      %589 = vmatprep.subr.bf16.mxu0 0
      %590 = vmatpush1.bf16.msra.mxu0 0
      %591 = vmatprep.mubr.bf16.mxu0 0
      %592 = vmatmul.mubr.bf16.gmra.mrb[0].mxu0 %v553
      %v593 = vpop.f32.mrb[0].mxu0
      %v594 = vadd.f32 0.0, %v593
      %v595 = vpop.f32.mrb[0].mxu0
      %v596 = vpop.f32.mrb[0].mxu0
      %v597 = vpop.f32.mrb[0].mxu0
      %598 = vdwg.mxu0
      %600 = vrot.lane.b32.xlu0 %v480, 64
      %v601 = vpop.permute.xlu0 %600
      %603 = vrot.lane.b32.xlu0 %v481, 64
      %v604 = vpop.permute.xlu0 %603
      %v606 = vsel %vm484, %v601, 0
      %v609 = vsel %vm484, %v604, 0
      %611 = vmatprep.subr.bf16.mxu0 0
      %612 = vmatpush1.bf16.xpose.msra.mxu0 %v609
      %613 = vmatprep.subr.bf16.mxu0 0
      %614 = vmatpush1.bf16.xpose.msra.mxu0 0
      %615 = vmatprep.subr.bf16.mxu0 0
      %616 = vmatpush1.bf16.xpose.msra.mxu0 0
      %617 = vmatprep.subr.bf16.mxu0 0
      %618 = vmatpush1.bf16.xpose.msra.mxu0 0
      %619 = vmatprep.subr.bf16.mxu0 0
      %620 = vmatpush1.bf16.xpose.msra.mxu0 0
      %621 = vmatprep.subr.bf16.mxu0 0
      %622 = vmatpush1.bf16.xpose.msra.mxu0 0
      %623 = vmatprep.subr.bf16.mxu0 0
      %624 = vmatpush1.bf16.xpose.msra.mxu0 0
      %625 = vmatprep.subr.bf16.mxu0 0
      %626 = vmatpush1.bf16.xpose.msra.mxu0 0
      %627 = vmatprep.subr.bf16.mxu0 0
      %628 = vmatpush1.bf16.xpose.msra.mxu0 0
      %629 = vmatprep.subr.bf16.mxu0 0
      %630 = vmatpush1.bf16.xpose.msra.mxu0 0
      %631 = vmatprep.subr.bf16.mxu0 0
      %632 = vmatpush1.bf16.xpose.msra.mxu0 0
      %633 = vmatprep.subr.bf16.mxu0 0
      %634 = vmatpush1.bf16.xpose.msra.mxu0 0
      %635 = vmatprep.subr.bf16.mxu0 0
      %636 = vmatpush1.bf16.xpose.msra.mxu0 0
      %637 = vmatprep.subr.bf16.mxu0 0
      %638 = vmatpush1.bf16.xpose.msra.mxu0 0
      %639 = vmatprep.subr.bf16.mxu0 0
      %640 = vmatpush1.bf16.xpose.msra.mxu0 0
      %641 = vmatprep.subr.bf16.mxu0 0
      %642 = vmatpush1.bf16.xpose.msra.mxu0 0
      %643 = vmatprep.mubr.bf16.mxu0 0
      %644 = vmatmul.mubr.bf16.gmra.mrb[0].mxu0 %v606
      %v645 = vpop.f32.mrb[0].mxu0
      %v646 = vadd.f32 0.0, %v645
      %v647 = vpop.f32.mrb[0].mxu0
      %v648 = vpop.f32.mrb[0].mxu0
      %v649 = vpop.f32.mrb[0].mxu0
      %650 = vdwg.mxu0
      %v651 = vmul.f32 %v646, 0.125
      %v652 = vadd.f32 %v651, %v536
      %v653 = vsel %vm539, %v652, -inf
      %654 = vmax.xlane.f32.xlu0 %v653
      %v655 = vpop.xlane.xlu0 %654
      %v656 = vsub.f32 %v652, %v655
      %v657 = vmul.f32 %v656, 1.442695
      %v658 = vpow.pop %v657
      %v659 = vsel %vm539, %v658, 0.0
      %660 = vadd.xlane.f32.xlu0 %v659
      %v661 = vpop.xlane.xlu0 %660
      %v662 = vrcp.pop %v661
      %v663 = vmul.f32 %v658, %v662
      %v664 = vpack.c.bf16 %v663, %v663
      %666 = vrot.lane.b32.xlu0 %v482, 64
      %v667 = vpop.permute.xlu0 %666
      %v669 = vsel %vm539, %v664, 0
      %v672 = vsel %vm555, %v667, 0
      %674 = vmatprep.subr.bf16.mxu0 0
      %675 = vmatpush1.bf16.msra.mxu0 %v672
      %676 = vmatprep.subr.bf16.mxu0 0
      %677 = vmatpush1.bf16.msra.mxu0 0
      %678 = vmatprep.subr.bf16.mxu0 0
      %679 = vmatpush1.bf16.msra.mxu0 0
      %680 = vmatprep.subr.bf16.mxu0 0
      %681 = vmatpush1.bf16.msra.mxu0 0
      %682 = vmatprep.subr.bf16.mxu0 0
      %683 = vmatpush1.bf16.msra.mxu0 0
      %684 = vmatprep.subr.bf16.mxu0 0
      %685 = vmatpush1.bf16.msra.mxu0 0
      %686 = vmatprep.subr.bf16.mxu0 0
      %687 = vmatpush1.bf16.msra.mxu0 0
      %688 = vmatprep.subr.bf16.mxu0 0
      %689 = vmatpush1.bf16.msra.mxu0 0
      %690 = vmatprep.subr.bf16.mxu0 0
      %691 = vmatpush1.bf16.msra.mxu0 0
      %692 = vmatprep.subr.bf16.mxu0 0
      %693 = vmatpush1.bf16.msra.mxu0 0
      %694 = vmatprep.subr.bf16.mxu0 0
      %695 = vmatpush1.bf16.msra.mxu0 0
      %696 = vmatprep.subr.bf16.mxu0 0
      %697 = vmatpush1.bf16.msra.mxu0 0
      %698 = vmatprep.subr.bf16.mxu0 0
      %699 = vmatpush1.bf16.msra.mxu0 0
      %700 = vmatprep.subr.bf16.mxu0 0
      %701 = vmatpush1.bf16.msra.mxu0 0
      %702 = vmatprep.subr.bf16.mxu0 0
      %703 = vmatpush1.bf16.msra.mxu0 0
      %704 = vmatprep.subr.bf16.mxu0 0
      %705 = vmatpush1.bf16.msra.mxu0 0
      %706 = vmatprep.mubr.bf16.mxu0 0
      %707 = vmatmul.mubr.bf16.gmra.mrb[0].mxu0 %v669
      %v708 = vpop.f32.mrb[0].mxu0
      %v709 = vadd.f32 0.0, %v708
      %v710 = vpop.f32.mrb[0].mxu0
      %v711 = vpop.f32.mrb[0].mxu0
      %v712 = vpop.f32.mrb[0].mxu0
      %713 = vdwg.mxu0
      %715 = vrot.lane.b32.xlu0 %v709, 64
      %v716 = vpop.permute.xlu0 %715
      %v718 = vsel %vm484, %v594, %v716
      %v719 = vpack.c.bf16 %v718, %v718
      %720 = vst [vmem:[%s206] sm:$0xf] %v719
      %p721 = scmp.lt.s32.totalorder %s15, 1
      %s722 = scalar_select %p721, %s15, 1
      %s723 = smul.addr %s722, 4
      %s724 = scalar_lea.vmem %s4, %s723
      // Predicated region
      $region37: #{bert_qa_forward.11} parent=35 // pred_check
        %p725 = pneg %p127
      $region38: #{bert_qa_forward.11} parent=35 // pred_check_branch
        %727 = sbr.rel (%p725) target = $region40
      $region39: #{bert_qa_forward.11} parent=35 // pred_region
        _
      $region40: #{bert_qa_forward.11} parent=35 // pred_fallthru
        _
    $region36: #{bert_qa_forward.11} parent=5 // pred_fallthru
      _
    %p728 = scmp.le.s32.totalorder 2, %s10
    // Predicated region
    $region41: #{bert_qa_forward.11} parent=5 // pred_check
      %p729 = pneg %p728
    $region42: #{bert_qa_forward.11} parent=5 // pred_check_branch
      %731 = sbr.rel (%p729) target = $region44
    $region43: #{bert_qa_forward.11} parent=5 // pred_region
      %s732 = ssub.s32 %s10, 2
      // Predicated region
      $region45: #{bert_qa_forward.11} parent=43 // pred_check
        %p733 = pneg %p133
      $region46: #{bert_qa_forward.11} parent=43 // pred_check_branch
        %735 = sbr.rel (%p733) target = $region48
      $region47: #{bert_qa_forward.11} parent=43 // pred_region
        %p736 = scmp.lt.s32.totalorder %s16, 1
        %s737 = scalar_select %p736, %s16, 1
        %s738 = smul.addr %s737, 4
        %s739 = scalar_lea.vmem %s4, %s738
      $region48: #{bert_qa_forward.11} parent=43 // pred_fallthru
        _
    $region44: #{bert_qa_forward.11} parent=5 // pred_fallthru
      _
  $region6: #{bert_qa_forward.11} parent=0 // loop_footer
    %s14 = sadd.s32 1, %s10
  $region7: #{bert_qa_forward.11} parent=0 // loop_footer_branch
    %9 = sbr.rel target = $region3
  $region8: #{bert_qa_forward.11} parent=0 // loop_exit
    _

// kernel: bert_qa_forward.14
$region0: #{bert_qa_forward.14}
  #allocation0 [shape = 'u32[]', space=smem, size = 0x4, offset = 0x4, fixed_abs, tag = 'smem constant byte address 0x4 - core index']
  #allocation1 [shape = 'u32[144,128]{1,0:T(1,128)}', space=vmem, size = 0x12000, scoped, tag = 'internal scratch']
  %s0 = inlined_call_operand.vmem [shape: bf16[16,256], index: 0, kind: input, shape index: {}]
  %s1 = inlined_call_operand.vmem [shape: bf16[256,128], index: 1, kind: input, shape index: {}]
  %s2 = inlined_call_operand.vmem [shape: bf16[1,128], index: 2, kind: input, shape index: {}]
  %s3 = inlined_call_operand.vmem [shape: bf16[16,128], index: 3, kind: input, shape index: {}]
  %s4 = inlined_call_operand.vmem [shape: bf16[1,128], index: 4, kind: input, shape index: {}]
  %s5 = inlined_call_operand.vmem [shape: bf16[1,128], index: 5, kind: input, shape index: {}]
  %s6 = inlined_call_operand.vmem [shape: bf16[16,128], index: 6, kind: output, shape index: {}]
  %s7 = sld [smem:[#allocation0]]
  $region34: #{bert_qa_forward.14} parent=0
    _
  %s9 = ssub.s32 1, %s7
  %s10 = scalar_select 0, %s9, %s7
  // Predicated region
  $region2: #{bert_qa_forward.14} parent=0 // pred_check
    _
  $region3: #{bert_qa_forward.14} parent=0 // pred_check_branch
    %12 = sbr.rel (0) target = $region5
  $region4: #{bert_qa_forward.14} parent=0 // pred_region
    _
  $region5: #{bert_qa_forward.14} parent=0 // pred_fallthru
    _
  // Predicated region
  $region6: #{bert_qa_forward.14} parent=0 // pred_check
    _
  $region7: #{bert_qa_forward.14} parent=0 // pred_check_branch
    %14 = sbr.rel (0) target = $region9
  $region8: #{bert_qa_forward.14} parent=0 // pred_region
    _
  $region9: #{bert_qa_forward.14} parent=0 // pred_fallthru
    _
  // Predicated region
  $region10: #{bert_qa_forward.14} parent=0 // pred_check
    _
  $region11: #{bert_qa_forward.14} parent=0 // pred_check_branch
    %16 = sbr.rel (0) target = $region13
  $region12: #{bert_qa_forward.14} parent=0 // pred_region
    _
  $region13: #{bert_qa_forward.14} parent=0 // pred_fallthru
    _
  // Predicated region
  $region14: #{bert_qa_forward.14} parent=0 // pred_check
    _
  $region15: #{bert_qa_forward.14} parent=0 // pred_check_branch
    %18 = sbr.rel (0) target = $region17
  $region16: #{bert_qa_forward.14} parent=0 // pred_region
    _
  $region17: #{bert_qa_forward.14} parent=0 // pred_fallthru
    _
  // Predicated region
  $region18: #{bert_qa_forward.14} parent=0 // pred_check
    _
  $region19: #{bert_qa_forward.14} parent=0 // pred_check_branch
    %20 = sbr.rel (0) target = $region21
  $region20: #{bert_qa_forward.14} parent=0 // pred_region
    _
  $region21: #{bert_qa_forward.14} parent=0 // pred_fallthru
    _
  // Predicated region
  $region22: #{bert_qa_forward.14} parent=0 // pred_check
    _
  $region23: #{bert_qa_forward.14} parent=0 // pred_check_branch
    %22 = sbr.rel (0) target = $region25
  $region24: #{bert_qa_forward.14} parent=0 // pred_region
    _
  $region25: #{bert_qa_forward.14} parent=0 // pred_fallthru
    _
  %v24 = vld [vmem:[%s0] sm:$0xff]
  %v25 = vld [vmem:[%s0 + $0x8] sm:$0xff]
  %v26 = vld [vmem:[%s1] sm:$0xf]
  %v27 = vld [vmem:[%s1 + $0x4] sm:$0xf]
  %v28 = vld [vmem:[%s1 + $0x8] sm:$0xf]
  %v29 = vld [vmem:[%s1 + $0xc] sm:$0xf]
  %v30 = vld [vmem:[%s1 + $0x10] sm:$0xf]
  %v31 = vld [vmem:[%s1 + $0x14] sm:$0xf]
  %v32 = vld [vmem:[%s1 + $0x18] sm:$0xf]
  %v33 = vld [vmem:[%s1 + $0x1c] sm:$0xf]
  %v34 = vld [vmem:[%s1 + $0x20] sm:$0xf]
  %v35 = vld [vmem:[%s1 + $0x24] sm:$0xf]
  %v36 = vld [vmem:[%s1 + $0x28] sm:$0xf]
  %v37 = vld [vmem:[%s1 + $0x2c] sm:$0xf]
  %v38 = vld [vmem:[%s1 + $0x30] sm:$0xf]
  %v39 = vld [vmem:[%s1 + $0x34] sm:$0xf]
  %v40 = vld [vmem:[%s1 + $0x38] sm:$0xf]
  %v41 = vld [vmem:[%s1 + $0x3c] sm:$0xf]
  %v42 = vld [vmem:[%s1 + $0x40] sm:$0xf]
  %v43 = vld [vmem:[%s1 + $0x44] sm:$0xf]
  %v44 = vld [vmem:[%s1 + $0x48] sm:$0xf]
  %v45 = vld [vmem:[%s1 + $0x4c] sm:$0xf]
  %v46 = vld [vmem:[%s1 + $0x50] sm:$0xf]
  %v47 = vld [vmem:[%s1 + $0x54] sm:$0xf]
  %v48 = vld [vmem:[%s1 + $0x58] sm:$0xf]
  %v49 = vld [vmem:[%s1 + $0x5c] sm:$0xf]
  %v50 = vld [vmem:[%s1 + $0x60] sm:$0xf]
  %v51 = vld [vmem:[%s1 + $0x64] sm:$0xf]
  %v52 = vld [vmem:[%s1 + $0x68] sm:$0xf]
  %v53 = vld [vmem:[%s1 + $0x6c] sm:$0xf]
  %v54 = vld [vmem:[%s1 + $0x70] sm:$0xf]
  %v55 = vld [vmem:[%s1 + $0x74] sm:$0xf]
  %v56 = vld [vmem:[%s1 + $0x78] sm:$0xf]
  %v57 = vld [vmem:[%s1 + $0x7c] sm:$0xf]
  %v58 = vld [vmem:[%s2] sm:$0x1]
  %v59 = vunpack.c.l.bf16 %v58
  %v60 = vlaneseq
  %v61 = vshrl.u32 %v60, 7
  %v62 = vsub.s32 0, %v61
  %v63 = vrot.slane %v59, %v62
  %v66 = vunpack.c.l.b16 %v24
  %v67 = vunpack.c.h.b16 %v24
  %v68 = vunpack.c.l.b16 %v25
  %v69 = vunpack.c.h.b16 %v25
  %v70 = vpack.c.b16 %v68, %v66
  %v71 = vpack.c.b16 %v69, %v67
  %v106 = vunpack.c.l.b16 %v26
  %v107 = vunpack.c.l.b16 %v27
  %v108 = vunpack.c.l.b16 %v28
  %v109 = vunpack.c.l.b16 %v29
  %v110 = vunpack.c.l.b16 %v30
  %v111 = vunpack.c.l.b16 %v31
  %v112 = vunpack.c.l.b16 %v32
  %v113 = vunpack.c.l.b16 %v33
  %v114 = vunpack.c.l.b16 %v34
  %v115 = vunpack.c.l.b16 %v35
  %v116 = vunpack.c.l.b16 %v36
  %v117 = vunpack.c.l.b16 %v37
  %v118 = vunpack.c.l.b16 %v38
  %v119 = vunpack.c.l.b16 %v39
  %v120 = vunpack.c.l.b16 %v40
  %v121 = vunpack.c.l.b16 %v41
  %v122 = vunpack.c.l.b16 %v42
  %v123 = vunpack.c.l.b16 %v43
  %v124 = vunpack.c.l.b16 %v44
  %v125 = vunpack.c.l.b16 %v45
  %v126 = vunpack.c.l.b16 %v46
  %v127 = vunpack.c.l.b16 %v47
  %v128 = vunpack.c.l.b16 %v48
  %v129 = vunpack.c.l.b16 %v49
  %v130 = vunpack.c.l.b16 %v50
  %v131 = vunpack.c.l.b16 %v51
  %v132 = vunpack.c.l.b16 %v52
  %v133 = vunpack.c.l.b16 %v53
  %v134 = vunpack.c.l.b16 %v54
  %v135 = vunpack.c.l.b16 %v55
  %v136 = vunpack.c.l.b16 %v56
  %v137 = vunpack.c.l.b16 %v57
  %v138 = vpack.c.b16 %v107, %v106
  %v139 = vpack.c.b16 %v109, %v108
  %v140 = vpack.c.b16 %v111, %v110
  %v141 = vpack.c.b16 %v113, %v112
  %v142 = vpack.c.b16 %v115, %v114
  %v143 = vpack.c.b16 %v117, %v116
  %v144 = vpack.c.b16 %v119, %v118
  %v145 = vpack.c.b16 %v121, %v120
  %v146 = vpack.c.b16 %v123, %v122
  %v147 = vpack.c.b16 %v125, %v124
  %v148 = vpack.c.b16 %v127, %v126
  %v149 = vpack.c.b16 %v129, %v128
  %v150 = vpack.c.b16 %v131, %v130
  %v151 = vpack.c.b16 %v133, %v132
  %v152 = vpack.c.b16 %v135, %v134
  %v153 = vpack.c.b16 %v137, %v136
  %170 = vmatprep.subr.bf16.mxu0 0
  %171 = vmatpush1.bf16.msra.mxu0 %v138
  %172 = vmatprep.subr.bf16.mxu0 0
  %173 = vmatpush1.bf16.msra.mxu0 %v139
  %174 = vmatprep.subr.bf16.mxu0 0
  %175 = vmatpush1.bf16.msra.mxu0 %v140
  %176 = vmatprep.subr.bf16.mxu0 0
  %177 = vmatpush1.bf16.msra.mxu0 %v141
  %178 = vmatprep.subr.bf16.mxu0 0
  %179 = vmatpush1.bf16.msra.mxu0 %v142
  %180 = vmatprep.subr.bf16.mxu0 0
  %181 = vmatpush1.bf16.msra.mxu0 %v143
  %182 = vmatprep.subr.bf16.mxu0 0
  %183 = vmatpush1.bf16.msra.mxu0 %v144
  %184 = vmatprep.subr.bf16.mxu0 0
  %185 = vmatpush1.bf16.msra.mxu0 %v145
  %186 = vmatprep.subr.bf16.mxu0 0
  %187 = vmatpush1.bf16.msra.mxu0 %v146
  %188 = vmatprep.subr.bf16.mxu0 0
  %189 = vmatpush1.bf16.msra.mxu0 %v147
  %190 = vmatprep.subr.bf16.mxu0 0
  %191 = vmatpush1.bf16.msra.mxu0 %v148
  %192 = vmatprep.subr.bf16.mxu0 0
  %193 = vmatpush1.bf16.msra.mxu0 %v149
  %194 = vmatprep.subr.bf16.mxu0 0
  %195 = vmatpush1.bf16.msra.mxu0 %v150
  %196 = vmatprep.subr.bf16.mxu0 0
  %197 = vmatpush1.bf16.msra.mxu0 %v151
  %198 = vmatprep.subr.bf16.mxu0 0
  %199 = vmatpush1.bf16.msra.mxu0 %v152
  %200 = vmatprep.subr.bf16.mxu0 0
  %201 = vmatpush1.bf16.msra.mxu0 %v153
  %202 = vmatprep.mubr.bf16.mxu0 %v71
  %203 = vmatmul.mubr.bf16.gmra.mrb[0].mxu0 %v70
  %v204 = vpop.f32.mrb[0].mxu0
  %v205 = vadd.f32 %v63, %v204
  %v206 = vpop.f32.mrb[0].mxu0
  %v207 = vpop.f32.mrb[0].mxu0
  %v208 = vadd.f32 %v63, %v207
  %v209 = vpop.f32.mrb[0].mxu0
  %210 = vdwg.mxu0
  %v211 = vld [vmem:[%s3] sm:$0xf]
  %v212 = vld [vmem:[%s3 + $0x4] sm:$0xf]
  %v213 = vunpack.c.l.bf16 %v211
  %v214 = vunpack.c.l.bf16 %v212
  %v215 = vadd.f32 %v205, %v213
  %v216 = vadd.f32 %v208, %v214
  %217 = vadd.xlane.f32.xlu0 %v215
  %v218 = vpop.xlane.xlu0 %217
  %219 = vadd.xlane.f32.xlu0 %v216
  %v220 = vpop.xlane.xlu0 %219
  %v221 = vrcp.pop 128.0
  %v222 = vmul.f32 %v218, %v221
  %v223 = vmul.f32 %v220, %v221
  %v224 = vsub.f32 %v215, %v222
  %v225 = vsub.f32 %v216, %v223
  %v226 = vmul.f32 %v224, %v224
  %v227 = vmul.f32 %v225, %v225
  %228 = vadd.xlane.f32.xlu0 %v226
  %v229 = vpop.xlane.xlu0 %228
  %230 = vadd.xlane.f32.xlu0 %v227
  %v231 = vpop.xlane.xlu0 %230
  %v232 = vmul.f32 %v229, %v221
  %v233 = vmul.f32 %v231, %v221
  %v234 = vadd.f32 %v232, 1e-12
  %v235 = vadd.f32 %v233, 1e-12
  %v236 = vrsqrt.pop %v234
  %v237 = vrsqrt.pop %v235
  %v238 = vmul.f32 %v224, %v236
  %v239 = vmul.f32 %v225, %v237
  %v240 = vld [vmem:[%s4] sm:$0x1]
  %v241 = vunpack.c.l.bf16 %v240
  %v242 = vlaneseq
  %v243 = vshrl.u32 %v242, 7
  %v244 = vsub.s32 0, %v243
  %v245 = vrot.slane %v241, %v244
  %v246 = vmul.f32 %v238, %v245
  %v247 = vmul.f32 %v239, %v245
  %v248 = vld [vmem:[%s5] sm:$0x1]
  %v249 = vunpack.c.l.bf16 %v248
  %v250 = vlaneseq
  %v251 = vshrl.u32 %v250, 7
  %v252 = vsub.s32 0, %v251
  %v253 = vrot.slane %v249, %v252
  %v254 = vadd.f32 %v246, %v253
  %v255 = vadd.f32 %v247, %v253
  %v256 = vpack.c.bf16 %v255, %v254
  %v258 = vunpack.c.l.b16 %v256
  %v259 = vunpack.c.h.b16 %v256
  %v260 = vpack.c.b16 %v258, %v258
  %v261 = vpack.c.b16 %v259, %v259
  %264 = vst [vmem:[%s6] sm:$0xf] %v260
  %265 = vst [vmem:[%s6 + $0x4] sm:$0xf] %v261
  // Predicated region
  $region26: #{bert_qa_forward.14} parent=0 // pred_check
    _
  $region27: #{bert_qa_forward.14} parent=0 // pred_check_branch
    %267 = sbr.rel (0) target = $region29
  $region28: #{bert_qa_forward.14} parent=0 // pred_region
    _
  $region29: #{bert_qa_forward.14} parent=0 // pred_fallthru
    _
  // Predicated region
  $region30: #{bert_qa_forward.14} parent=0 // pred_check
    _
  $region31: #{bert_qa_forward.14} parent=0 // pred_check_branch
    %269 = sbr.rel (0) target = $region33
  $region32: #{bert_qa_forward.14} parent=0 // pred_region
    _
  $region33: #{bert_qa_forward.14} parent=0 // pred_fallthru
    _

// kernel: bert_qa_forward.19
$region0: #{bert_qa_forward.19}
  #allocation0 [shape = 'u32[]', space=smem, size = 0x4, offset = 0x4, fixed_abs, tag = 'smem constant byte address 0x4 - core index']
  #allocation1 [shape = 'u32[144,128]{1,0:T(1,128)}', space=vmem, size = 0x12000, scoped, tag = 'internal scratch']
  %s0 = inlined_call_operand.vmem [shape: bf16[2,128], index: 0, kind: input, shape index: {}]
  %s1 = inlined_call_operand.vmem [shape: bf16[128,128], index: 1, kind: input, shape index: {}]
  %s2 = inlined_call_operand.vmem [shape: bf16[1,128], index: 2, kind: input, shape index: {}]
  %s3 = inlined_call_operand.vmem [shape: bf16[128,128], index: 3, kind: input, shape index: {}]
  %s4 = inlined_call_operand.vmem [shape: bf16[1,128], index: 4, kind: input, shape index: {}]
  %s5 = inlined_call_operand.vmem [shape: f32[2,128], index: 5, kind: output, shape index: {}]
  %s6 = sld [smem:[#allocation0]]
  $region30: #{bert_qa_forward.19} parent=0
    _
  %s8 = ssub.s32 1, %s6
  %s9 = scalar_select 0, %s8, %s6
  // Predicated region
  $region2: #{bert_qa_forward.19} parent=0 // pred_check
    _
  $region3: #{bert_qa_forward.19} parent=0 // pred_check_branch
    %11 = sbr.rel (0) target = $region5
  $region4: #{bert_qa_forward.19} parent=0 // pred_region
    _
  $region5: #{bert_qa_forward.19} parent=0 // pred_fallthru
    _
  // Predicated region
  $region6: #{bert_qa_forward.19} parent=0 // pred_check
    _
  $region7: #{bert_qa_forward.19} parent=0 // pred_check_branch
    %13 = sbr.rel (0) target = $region9
  $region8: #{bert_qa_forward.19} parent=0 // pred_region
    _
  $region9: #{bert_qa_forward.19} parent=0 // pred_fallthru
    _
  // Predicated region
  $region10: #{bert_qa_forward.19} parent=0 // pred_check
    _
  $region11: #{bert_qa_forward.19} parent=0 // pred_check_branch
    %15 = sbr.rel (0) target = $region13
  $region12: #{bert_qa_forward.19} parent=0 // pred_region
    _
  $region13: #{bert_qa_forward.19} parent=0 // pred_fallthru
    _
  // Predicated region
  $region14: #{bert_qa_forward.19} parent=0 // pred_check
    _
  $region15: #{bert_qa_forward.19} parent=0 // pred_check_branch
    %17 = sbr.rel (0) target = $region17
  $region16: #{bert_qa_forward.19} parent=0 // pred_region
    _
  $region17: #{bert_qa_forward.19} parent=0 // pred_fallthru
    _
  // Predicated region
  $region18: #{bert_qa_forward.19} parent=0 // pred_check
    _
  $region19: #{bert_qa_forward.19} parent=0 // pred_check_branch
    %19 = sbr.rel (0) target = $region21
  $region20: #{bert_qa_forward.19} parent=0 // pred_region
    _
  $region21: #{bert_qa_forward.19} parent=0 // pred_fallthru
    _
  %v21 = vld [vmem:[%s0] sm:$0x1]
  %v22 = vld [vmem:[%s1] sm:$0xf]
  %v23 = vld [vmem:[%s1 + $0x4] sm:$0xf]
  %v24 = vld [vmem:[%s1 + $0x8] sm:$0xf]
  %v25 = vld [vmem:[%s1 + $0xc] sm:$0xf]
  %v26 = vld [vmem:[%s1 + $0x10] sm:$0xf]
  %v27 = vld [vmem:[%s1 + $0x14] sm:$0xf]
  %v28 = vld [vmem:[%s1 + $0x18] sm:$0xf]
  %v29 = vld [vmem:[%s1 + $0x1c] sm:$0xf]
  %v30 = vld [vmem:[%s1 + $0x20] sm:$0xf]
  %v31 = vld [vmem:[%s1 + $0x24] sm:$0xf]
  %v32 = vld [vmem:[%s1 + $0x28] sm:$0xf]
  %v33 = vld [vmem:[%s1 + $0x2c] sm:$0xf]
  %v34 = vld [vmem:[%s1 + $0x30] sm:$0xf]
  %v35 = vld [vmem:[%s1 + $0x34] sm:$0xf]
  %v36 = vld [vmem:[%s1 + $0x38] sm:$0xf]
  %v37 = vld [vmem:[%s1 + $0x3c] sm:$0xf]
  %v38 = vld [vmem:[%s2] sm:$0x1]
  %v39 = vunpack.c.l.bf16 %v38
  %v40 = vlaneseq
  %v41 = vshrl.u32 %v40, 7
  %v42 = vsub.s32 0, %v41
  %v43 = vrot.slane %v39, %v42
  %v60 = vunpack.c.l.b16 %v22
  %v61 = vunpack.c.l.b16 %v23
  %v62 = vunpack.c.l.b16 %v24
  %v63 = vunpack.c.l.b16 %v25
  %v64 = vunpack.c.l.b16 %v26
  %v65 = vunpack.c.l.b16 %v27
  %v66 = vunpack.c.l.b16 %v28
  %v67 = vunpack.c.l.b16 %v29
  %v68 = vunpack.c.l.b16 %v30
  %v69 = vunpack.c.l.b16 %v31
  %v70 = vunpack.c.l.b16 %v32
  %v71 = vunpack.c.l.b16 %v33
  %v72 = vunpack.c.l.b16 %v34
  %v73 = vunpack.c.l.b16 %v35
  %v74 = vunpack.c.l.b16 %v36
  %v75 = vunpack.c.l.b16 %v37
  %v76 = vpack.c.b16 %v61, %v60
  %v77 = vpack.c.b16 %v63, %v62
  %v78 = vpack.c.b16 %v65, %v64
  %v79 = vpack.c.b16 %v67, %v66
  %v80 = vpack.c.b16 %v69, %v68
  %v81 = vpack.c.b16 %v71, %v70
  %v82 = vpack.c.b16 %v73, %v72
  %v83 = vpack.c.b16 %v75, %v74
  %92 = vmatprep.subr.bf16.mxu0 0
  %93 = vmatpush1.bf16.msra.mxu0 %v76
  %94 = vmatprep.subr.bf16.mxu0 0
  %95 = vmatpush1.bf16.msra.mxu0 %v77
  %96 = vmatprep.subr.bf16.mxu0 0
  %97 = vmatpush1.bf16.msra.mxu0 %v78
  %98 = vmatprep.subr.bf16.mxu0 0
  %99 = vmatpush1.bf16.msra.mxu0 %v79
  %100 = vmatprep.subr.bf16.mxu0 0
  %101 = vmatpush1.bf16.msra.mxu0 %v80
  %102 = vmatprep.subr.bf16.mxu0 0
  %103 = vmatpush1.bf16.msra.mxu0 %v81
  %104 = vmatprep.subr.bf16.mxu0 0
  %105 = vmatpush1.bf16.msra.mxu0 %v82
  %106 = vmatprep.subr.bf16.mxu0 0
  %107 = vmatpush1.bf16.msra.mxu0 %v83
  %108 = vmatprep.subr.bf16.mxu0 0
  %109 = vmatpush1.bf16.msra.mxu0 0
  %110 = vmatprep.subr.bf16.mxu0 0
  %111 = vmatpush1.bf16.msra.mxu0 0
  %112 = vmatprep.subr.bf16.mxu0 0
  %113 = vmatpush1.bf16.msra.mxu0 0
  %114 = vmatprep.subr.bf16.mxu0 0
  %115 = vmatpush1.bf16.msra.mxu0 0
  %116 = vmatprep.subr.bf16.mxu0 0
  %117 = vmatpush1.bf16.msra.mxu0 0
  %118 = vmatprep.subr.bf16.mxu0 0
  %119 = vmatpush1.bf16.msra.mxu0 0
  %120 = vmatprep.subr.bf16.mxu0 0
  %121 = vmatpush1.bf16.msra.mxu0 0
  %122 = vmatprep.subr.bf16.mxu0 0
  %123 = vmatpush1.bf16.msra.mxu0 0
  %124 = vmatprep.mubr.bf16.mxu0 0
  %125 = vmatmul.mubr.bf16.gmra.mrb[0].mxu0 %v21
  %v126 = vpop.f32.mrb[0].mxu0
  %v127 = vadd.f32 %v43, %v126
  %v128 = vpop.f32.mrb[0].mxu0
  %v129 = vpop.f32.mrb[0].mxu0
  %v130 = vpop.f32.mrb[0].mxu0
  %131 = vdwg.mxu0
  %v132 = vtanh.pop %v127
  %v133 = vld [vmem:[%s3] sm:$0xf]
  %v134 = vld [vmem:[%s3 + $0x4] sm:$0xf]
  %v135 = vld [vmem:[%s3 + $0x8] sm:$0xf]
  %v136 = vld [vmem:[%s3 + $0xc] sm:$0xf]
  %v137 = vld [vmem:[%s3 + $0x10] sm:$0xf]
  %v138 = vld [vmem:[%s3 + $0x14] sm:$0xf]
  %v139 = vld [vmem:[%s3 + $0x18] sm:$0xf]
  %v140 = vld [vmem:[%s3 + $0x1c] sm:$0xf]
  %v141 = vld [vmem:[%s3 + $0x20] sm:$0xf]
  %v142 = vld [vmem:[%s3 + $0x24] sm:$0xf]
  %v143 = vld [vmem:[%s3 + $0x28] sm:$0xf]
  %v144 = vld [vmem:[%s3 + $0x2c] sm:$0xf]
  %v145 = vld [vmem:[%s3 + $0x30] sm:$0xf]
  %v146 = vld [vmem:[%s3 + $0x34] sm:$0xf]
  %v147 = vld [vmem:[%s3 + $0x38] sm:$0xf]
  %v148 = vld [vmem:[%s3 + $0x3c] sm:$0xf]
  %v149 = vunpack.c.l.bf16 %v133
  %v150 = vunpack.c.l.bf16 %v134
  %v151 = vunpack.c.l.bf16 %v135
  %v152 = vunpack.c.l.bf16 %v136
  %v153 = vunpack.c.l.bf16 %v137
  %v154 = vunpack.c.l.bf16 %v138
  %v155 = vunpack.c.l.bf16 %v139
  %v156 = vunpack.c.l.bf16 %v140
  %v157 = vunpack.c.l.bf16 %v141
  %v158 = vunpack.c.l.bf16 %v142
  %v159 = vunpack.c.l.bf16 %v143
  %v160 = vunpack.c.l.bf16 %v144
  %v161 = vunpack.c.l.bf16 %v145
  %v162 = vunpack.c.l.bf16 %v146
  %v163 = vunpack.c.l.bf16 %v147
  %v164 = vunpack.c.l.bf16 %v148
  %v165 = vld [vmem:[%s4] sm:$0x1]
  %v166 = vunpack.c.l.bf16 %v165
  %v167 = vlaneseq
  %v168 = vshrl.u32 %v167, 7
  %v169 = vsub.s32 0, %v168
  %v170 = vrot.slane %v166, %v169
  %171 = vmatprep.subr.mxu0 0.0
  %172 = vmatpush1.msra.mxu0 %v149
  %173 = vmatprep.subr.mxu0 0.0
  %174 = vmatpush1.msra.mxu0 %v150
  %175 = vmatprep.subr.mxu0 0.0
  %176 = vmatpush1.msra.mxu0 %v151
  %177 = vmatprep.subr.mxu0 0.0
  %178 = vmatpush1.msra.mxu0 %v152
  %179 = vmatprep.subr.mxu0 0.0
  %180 = vmatpush1.msra.mxu0 %v153
  %181 = vmatprep.subr.mxu0 0.0
  %182 = vmatpush1.msra.mxu0 %v154
  %183 = vmatprep.subr.mxu0 0.0
  %184 = vmatpush1.msra.mxu0 %v155
  %185 = vmatprep.subr.mxu0 0.0
  %186 = vmatpush1.msra.mxu0 %v156
  %187 = vmatprep.subr.mxu0 0.0
  %188 = vmatpush1.msra.mxu0 %v157
  %189 = vmatprep.subr.mxu0 0.0
  %190 = vmatpush1.msra.mxu0 %v158
  %191 = vmatprep.subr.mxu0 0.0
  %192 = vmatpush1.msra.mxu0 %v159
  %193 = vmatprep.subr.mxu0 0.0
  %194 = vmatpush1.msra.mxu0 %v160
  %195 = vmatprep.subr.mxu0 0.0
  %196 = vmatpush1.msra.mxu0 %v161
  %197 = vmatprep.subr.mxu0 0.0
  %198 = vmatpush1.msra.mxu0 %v162
  %199 = vmatprep.subr.mxu0 0.0
  %200 = vmatpush1.msra.mxu0 %v163
  %201 = vmatprep.subr.mxu0 0.0
  %202 = vmatpush1.msra.mxu0 %v164
  %203 = vmatprep.subr.mxu0 0.0
  %204 = vmatpush1.msra.mxu0 0.0
  %205 = vmatprep.subr.mxu0 0.0
  %206 = vmatpush1.msra.mxu0 0.0
  %207 = vmatprep.subr.mxu0 0.0
  %208 = vmatpush1.msra.mxu0 0.0
  %209 = vmatprep.subr.mxu0 0.0
  %210 = vmatpush1.msra.mxu0 0.0
  %211 = vmatprep.subr.mxu0 0.0
  %212 = vmatpush1.msra.mxu0 0.0
  %213 = vmatprep.subr.mxu0 0.0
  %214 = vmatpush1.msra.mxu0 0.0
  %215 = vmatprep.subr.mxu0 0.0
  %216 = vmatpush1.msra.mxu0 0.0
  %217 = vmatprep.subr.mxu0 0.0
  %218 = vmatpush1.msra.mxu0 0.0
  %219 = vmatprep.subr.mxu0 0.0
  %220 = vmatpush1.msra.mxu0 0.0
  %221 = vmatprep.subr.mxu0 0.0
  %222 = vmatpush1.msra.mxu0 0.0
  %223 = vmatprep.subr.mxu0 0.0
  %224 = vmatpush1.msra.mxu0 0.0
  %225 = vmatprep.subr.mxu0 0.0
  %226 = vmatpush1.msra.mxu0 0.0
  %227 = vmatprep.subr.mxu0 0.0
  %228 = vmatpush1.msra.mxu0 0.0
  %229 = vmatprep.subr.mxu0 0.0
  %230 = vmatpush1.msra.mxu0 0.0
  %231 = vmatprep.subr.mxu0 0.0
  %232 = vmatpush1.msra.mxu0 0.0
  %233 = vmatprep.subr.mxu0 0.0
  %234 = vmatpush1.msra.mxu0 0.0
  %235 = vmatprep.mubr.f32.mxu0 0.0
  %236 = vmatmul.mubr.f32.gmra.mrb[0].mxu0 %v132
  %v237 = vpop.f32.mrb[0].mxu0
  %v238 = vadd.f32 %v170, %v237
  %v239 = vpop.f32.mrb[0].mxu0
  %240 = vdwg.mxu0
  %v241 = vxor.u32 %v238, 2147483648
  %v242 = vmul.f32 %v241, 1.442695
  %v243 = vpow.pop %v242
  %v244 = vadd.f32 %v243, 1.0
  %v245 = vrcp.pop %v244
  %v246 = vmul.f32 1.0, %v245
  %247 = vst [vmem:[%s5] sm:$0x3] %v246
  // Predicated region
  $region22: #{bert_qa_forward.19} parent=0 // pred_check
    _
  $region23: #{bert_qa_forward.19} parent=0 // pred_check_branch
    %249 = sbr.rel (0) target = $region25
  $region24: #{bert_qa_forward.19} parent=0 // pred_region
    _
  $region25: #{bert_qa_forward.19} parent=0 // pred_fallthru
    _
  // Predicated region
  $region26: #{bert_qa_forward.19} parent=0 // pred_check
    _
  $region27: #{bert_qa_forward.19} parent=0 // pred_check_branch
    %251 = sbr.rel (0) target = $region29
  $region28: #{bert_qa_forward.19} parent=0 // pred_region
    _
  $region29: #{bert_qa_forward.19} parent=0 // pred_fallthru
    _

// kernel: bert_qa_forward.18
$region0: #{bert_qa_forward.18}
  #allocation0 [shape = 'u32[]', space=smem, size = 0x4, offset = 0x4, fixed_abs, tag = 'smem constant byte address 0x4 - core index']
  #allocation1 [shape = 'u32[144,128]{1,0:T(1,128)}', space=vmem, size = 0x12000, scoped, tag = 'internal scratch']
  %s0 = inlined_call_operand.vmem [shape: bf16[16,256], index: 0, kind: input, shape index: {}]
  %s1 = inlined_call_operand.vmem [shape: bf16[256,128], index: 1, kind: input, shape index: {}]
  %s2 = inlined_call_operand.vmem [shape: bf16[1,128], index: 2, kind: input, shape index: {}]
  %s3 = inlined_call_operand.vmem [shape: bf16[16,128], index: 3, kind: input, shape index: {}]
  %s4 = inlined_call_operand.vmem [shape: bf16[1,128], index: 4, kind: input, shape index: {}]
  %s5 = inlined_call_operand.vmem [shape: bf16[1,128], index: 5, kind: input, shape index: {}]
  %s6 = inlined_call_operand.vmem [shape: bf16[128,128], index: 6, kind: input, shape index: {}]
  %s7 = inlined_call_operand.vmem [shape: bf16[1,128], index: 7, kind: input, shape index: {}]
  %s8 = inlined_call_operand.vmem [shape: bf16[16,128], index: 8, kind: output, shape index: {0}]
  %s9 = inlined_call_operand.vmem [shape: f32[16,128], index: 9, kind: output, shape index: {1}]
  %10 = xla_tuple %s8, %s9
  %s11 = sld [smem:[#allocation0]]
  $region50: #{bert_qa_forward.18} parent=0
    _
  %s13 = ssub.s32 1, %s11
  %s14 = scalar_select 0, %s13, %s11
  // Predicated region
  $region2: #{bert_qa_forward.18} parent=0 // pred_check
    _
  $region3: #{bert_qa_forward.18} parent=0 // pred_check_branch
    %16 = sbr.rel (0) target = $region5
  $region4: #{bert_qa_forward.18} parent=0 // pred_region
    _
  $region5: #{bert_qa_forward.18} parent=0 // pred_fallthru
    _
  // Predicated region
  $region6: #{bert_qa_forward.18} parent=0 // pred_check
    _
  $region7: #{bert_qa_forward.18} parent=0 // pred_check_branch
    %18 = sbr.rel (0) target = $region9
  $region8: #{bert_qa_forward.18} parent=0 // pred_region
    _
  $region9: #{bert_qa_forward.18} parent=0 // pred_fallthru
    _
  // Predicated region
  $region10: #{bert_qa_forward.18} parent=0 // pred_check
    _
  $region11: #{bert_qa_forward.18} parent=0 // pred_check_branch
    %20 = sbr.rel (0) target = $region13
  $region12: #{bert_qa_forward.18} parent=0 // pred_region
    _
  $region13: #{bert_qa_forward.18} parent=0 // pred_fallthru
    _
  // Predicated region
  $region14: #{bert_qa_forward.18} parent=0 // pred_check
    _
  $region15: #{bert_qa_forward.18} parent=0 // pred_check_branch
    %22 = sbr.rel (0) target = $region17
  $region16: #{bert_qa_forward.18} parent=0 // pred_region
    _
  $region17: #{bert_qa_forward.18} parent=0 // pred_fallthru
    _
  // Predicated region
  $region18: #{bert_qa_forward.18} parent=0 // pred_check
    _
  $region19: #{bert_qa_forward.18} parent=0 // pred_check_branch
    %24 = sbr.rel (0) target = $region21
  $region20: #{bert_qa_forward.18} parent=0 // pred_region
    _
  $region21: #{bert_qa_forward.18} parent=0 // pred_fallthru
    _
  // Predicated region
  $region22: #{bert_qa_forward.18} parent=0 // pred_check
    _
  $region23: #{bert_qa_forward.18} parent=0 // pred_check_branch
    %26 = sbr.rel (0) target = $region25
  $region24: #{bert_qa_forward.18} parent=0 // pred_region
    _
  $region25: #{bert_qa_forward.18} parent=0 // pred_fallthru
    _
  // Predicated region
  $region26: #{bert_qa_forward.18} parent=0 // pred_check
    _
  $region27: #{bert_qa_forward.18} parent=0 // pred_check_branch
    %28 = sbr.rel (0) target = $region29
  $region28: #{bert_qa_forward.18} parent=0 // pred_region
    _
  $region29: #{bert_qa_forward.18} parent=0 // pred_fallthru
    _
  // Predicated region
  $region30: #{bert_qa_forward.18} parent=0 // pred_check
    _
  $region31: #{bert_qa_forward.18} parent=0 // pred_check_branch
    %30 = sbr.rel (0) target = $region33
  $region32: #{bert_qa_forward.18} parent=0 // pred_region
    _
  $region33: #{bert_qa_forward.18} parent=0 // pred_fallthru
    _
  %v32 = vld [vmem:[%s0] sm:$0xff]
  %v33 = vld [vmem:[%s0 + $0x8] sm:$0xff]
  %v34 = vld [vmem:[%s1] sm:$0xf]
  %v35 = vld [vmem:[%s1 + $0x4] sm:$0xf]
  %v36 = vld [vmem:[%s1 + $0x8] sm:$0xf]
  %v37 = vld [vmem:[%s1 + $0xc] sm:$0xf]
  %v38 = vld [vmem:[%s1 + $0x10] sm:$0xf]
  %v39 = vld [vmem:[%s1 + $0x14] sm:$0xf]
  %v40 = vld [vmem:[%s1 + $0x18] sm:$0xf]
  %v41 = vld [vmem:[%s1 + $0x1c] sm:$0xf]
  %v42 = vld [vmem:[%s1 + $0x20] sm:$0xf]
  %v43 = vld [vmem:[%s1 + $0x24] sm:$0xf]
  %v44 = vld [vmem:[%s1 + $0x28] sm:$0xf]
  %v45 = vld [vmem:[%s1 + $0x2c] sm:$0xf]
  %v46 = vld [vmem:[%s1 + $0x30] sm:$0xf]
  %v47 = vld [vmem:[%s1 + $0x34] sm:$0xf]
  %v48 = vld [vmem:[%s1 + $0x38] sm:$0xf]
  %v49 = vld [vmem:[%s1 + $0x3c] sm:$0xf]
  %v50 = vld [vmem:[%s1 + $0x40] sm:$0xf]
  %v51 = vld [vmem:[%s1 + $0x44] sm:$0xf]
  %v52 = vld [vmem:[%s1 + $0x48] sm:$0xf]
  %v53 = vld [vmem:[%s1 + $0x4c] sm:$0xf]
  %v54 = vld [vmem:[%s1 + $0x50] sm:$0xf]
  %v55 = vld [vmem:[%s1 + $0x54] sm:$0xf]
  %v56 = vld [vmem:[%s1 + $0x58] sm:$0xf]
  %v57 = vld [vmem:[%s1 + $0x5c] sm:$0xf]
  %v58 = vld [vmem:[%s1 + $0x60] sm:$0xf]
  %v59 = vld [vmem:[%s1 + $0x64] sm:$0xf]
  %v60 = vld [vmem:[%s1 + $0x68] sm:$0xf]
  %v61 = vld [vmem:[%s1 + $0x6c] sm:$0xf]
  %v62 = vld [vmem:[%s1 + $0x70] sm:$0xf]
  %v63 = vld [vmem:[%s1 + $0x74] sm:$0xf]
  %v64 = vld [vmem:[%s1 + $0x78] sm:$0xf]
  %v65 = vld [vmem:[%s1 + $0x7c] sm:$0xf]
  %v66 = vld [vmem:[%s2] sm:$0x1]
  %v67 = vunpack.c.l.bf16 %v66
  %v68 = vlaneseq
  %v69 = vshrl.u32 %v68, 7
  %v70 = vsub.s32 0, %v69
  %v71 = vrot.slane %v67, %v70
  %v74 = vunpack.c.l.b16 %v32
  %v75 = vunpack.c.h.b16 %v32
  %v76 = vunpack.c.l.b16 %v33
  %v77 = vunpack.c.h.b16 %v33
  %v78 = vpack.c.b16 %v76, %v74
  %v79 = vpack.c.b16 %v77, %v75
  %v114 = vunpack.c.l.b16 %v34
  %v115 = vunpack.c.l.b16 %v35
  %v116 = vunpack.c.l.b16 %v36
  %v117 = vunpack.c.l.b16 %v37
  %v118 = vunpack.c.l.b16 %v38
  %v119 = vunpack.c.l.b16 %v39
  %v120 = vunpack.c.l.b16 %v40
  %v121 = vunpack.c.l.b16 %v41
  %v122 = vunpack.c.l.b16 %v42
  %v123 = vunpack.c.l.b16 %v43
  %v124 = vunpack.c.l.b16 %v44
  %v125 = vunpack.c.l.b16 %v45
  %v126 = vunpack.c.l.b16 %v46
  %v127 = vunpack.c.l.b16 %v47
  %v128 = vunpack.c.l.b16 %v48
  %v129 = vunpack.c.l.b16 %v49
  %v130 = vunpack.c.l.b16 %v50
  %v131 = vunpack.c.l.b16 %v51
  %v132 = vunpack.c.l.b16 %v52
  %v133 = vunpack.c.l.b16 %v53
  %v134 = vunpack.c.l.b16 %v54
  %v135 = vunpack.c.l.b16 %v55
  %v136 = vunpack.c.l.b16 %v56
  %v137 = vunpack.c.l.b16 %v57
  %v138 = vunpack.c.l.b16 %v58
  %v139 = vunpack.c.l.b16 %v59
  %v140 = vunpack.c.l.b16 %v60
  %v141 = vunpack.c.l.b16 %v61
  %v142 = vunpack.c.l.b16 %v62
  %v143 = vunpack.c.l.b16 %v63
  %v144 = vunpack.c.l.b16 %v64
  %v145 = vunpack.c.l.b16 %v65
  %v146 = vpack.c.b16 %v115, %v114
  %v147 = vpack.c.b16 %v117, %v116
  %v148 = vpack.c.b16 %v119, %v118
  %v149 = vpack.c.b16 %v121, %v120
  %v150 = vpack.c.b16 %v123, %v122
  %v151 = vpack.c.b16 %v125, %v124
  %v152 = vpack.c.b16 %v127, %v126
  %v153 = vpack.c.b16 %v129, %v128
  %v154 = vpack.c.b16 %v131, %v130
  %v155 = vpack.c.b16 %v133, %v132
  %v156 = vpack.c.b16 %v135, %v134
  %v157 = vpack.c.b16 %v137, %v136
  %v158 = vpack.c.b16 %v139, %v138
  %v159 = vpack.c.b16 %v141, %v140
  %v160 = vpack.c.b16 %v143, %v142
  %v161 = vpack.c.b16 %v145, %v144
  %178 = vmatprep.subr.bf16.mxu0 0
  %179 = vmatpush1.bf16.msra.mxu0 %v146
  %180 = vmatprep.subr.bf16.mxu0 0
  %181 = vmatpush1.bf16.msra.mxu0 %v147
  %182 = vmatprep.subr.bf16.mxu0 0
  %183 = vmatpush1.bf16.msra.mxu0 %v148
  %184 = vmatprep.subr.bf16.mxu0 0
  %185 = vmatpush1.bf16.msra.mxu0 %v149
  %186 = vmatprep.subr.bf16.mxu0 0
  %187 = vmatpush1.bf16.msra.mxu0 %v150
  %188 = vmatprep.subr.bf16.mxu0 0
  %189 = vmatpush1.bf16.msra.mxu0 %v151
  %190 = vmatprep.subr.bf16.mxu0 0
  %191 = vmatpush1.bf16.msra.mxu0 %v152
  %192 = vmatprep.subr.bf16.mxu0 0
  %193 = vmatpush1.bf16.msra.mxu0 %v153
  %194 = vmatprep.subr.bf16.mxu0 0
  %195 = vmatpush1.bf16.msra.mxu0 %v154
  %196 = vmatprep.subr.bf16.mxu0 0
  %197 = vmatpush1.bf16.msra.mxu0 %v155
  %198 = vmatprep.subr.bf16.mxu0 0
  %199 = vmatpush1.bf16.msra.mxu0 %v156
  %200 = vmatprep.subr.bf16.mxu0 0
  %201 = vmatpush1.bf16.msra.mxu0 %v157
  %202 = vmatprep.subr.bf16.mxu0 0
  %203 = vmatpush1.bf16.msra.mxu0 %v158
  %204 = vmatprep.subr.bf16.mxu0 0
  %205 = vmatpush1.bf16.msra.mxu0 %v159
  %206 = vmatprep.subr.bf16.mxu0 0
  %207 = vmatpush1.bf16.msra.mxu0 %v160
  %208 = vmatprep.subr.bf16.mxu0 0
  %209 = vmatpush1.bf16.msra.mxu0 %v161
  %210 = vmatprep.mubr.bf16.mxu0 %v79
  %211 = vmatmul.mubr.bf16.gmra.mrb[0].mxu0 %v78
  %v212 = vpop.f32.mrb[0].mxu0
  %v213 = vadd.f32 %v71, %v212
  %v214 = vpop.f32.mrb[0].mxu0
  %v215 = vpop.f32.mrb[0].mxu0
  %v216 = vadd.f32 %v71, %v215
  %v217 = vpop.f32.mrb[0].mxu0
  %218 = vdwg.mxu0
  %v219 = vld [vmem:[%s3] sm:$0xf]
  %v220 = vld [vmem:[%s3 + $0x4] sm:$0xf]
  %v221 = vunpack.c.l.bf16 %v219
  %v222 = vunpack.c.l.bf16 %v220
  %v223 = vadd.f32 %v213, %v221
  %v224 = vadd.f32 %v216, %v222
  %225 = vadd.xlane.f32.xlu0 %v223
  %v226 = vpop.xlane.xlu0 %225
  %227 = vadd.xlane.f32.xlu0 %v224
  %v228 = vpop.xlane.xlu0 %227
  %v229 = vrcp.pop 128.0
  %v230 = vmul.f32 %v226, %v229
  %v231 = vmul.f32 %v228, %v229
  %v232 = vsub.f32 %v223, %v230
  %v233 = vsub.f32 %v224, %v231
  %v234 = vmul.f32 %v232, %v232
  %v235 = vmul.f32 %v233, %v233
  %236 = vadd.xlane.f32.xlu0 %v234
  %v237 = vpop.xlane.xlu0 %236
  %238 = vadd.xlane.f32.xlu0 %v235
  %v239 = vpop.xlane.xlu0 %238
  %v240 = vmul.f32 %v237, %v229
  %v241 = vmul.f32 %v239, %v229
  %v242 = vadd.f32 %v240, 1e-12
  %v243 = vadd.f32 %v241, 1e-12
  %v244 = vrsqrt.pop %v242
  %v245 = vrsqrt.pop %v243
  %v246 = vmul.f32 %v232, %v244
  %v247 = vmul.f32 %v233, %v245
  %v248 = vld [vmem:[%s4] sm:$0x1]
  %v249 = vunpack.c.l.bf16 %v248
  %v250 = vlaneseq
  %v251 = vshrl.u32 %v250, 7
  %v252 = vsub.s32 0, %v251
  %v253 = vrot.slane %v249, %v252
  %v254 = vmul.f32 %v246, %v253
  %v255 = vmul.f32 %v247, %v253
  %v256 = vld [vmem:[%s5] sm:$0x1]
  %v257 = vunpack.c.l.bf16 %v256
  %v258 = vlaneseq
  %v259 = vshrl.u32 %v258, 7
  %v260 = vsub.s32 0, %v259
  %v261 = vrot.slane %v257, %v260
  %v262 = vadd.f32 %v254, %v261
  %v263 = vadd.f32 %v255, %v261
  %v264 = vpack.c.bf16 %v263, %v262
  %v266 = vunpack.c.l.b16 %v264
  %v267 = vunpack.c.h.b16 %v264
  %v268 = vpack.c.b16 %v266, %v266
  %v269 = vpack.c.b16 %v267, %v267
  %272 = vst [vmem:[%s8] sm:$0xf] %v268
  %273 = vst [vmem:[%s8 + $0x4] sm:$0xf] %v269
  %v274 = vld [vmem:[%s6] sm:$0xf]
  %v275 = vld [vmem:[%s6 + $0x4] sm:$0xf]
  %v276 = vld [vmem:[%s6 + $0x8] sm:$0xf]
  %v277 = vld [vmem:[%s6 + $0xc] sm:$0xf]
  %v278 = vld [vmem:[%s6 + $0x10] sm:$0xf]
  %v279 = vld [vmem:[%s6 + $0x14] sm:$0xf]
  %v280 = vld [vmem:[%s6 + $0x18] sm:$0xf]
  %v281 = vld [vmem:[%s6 + $0x1c] sm:$0xf]
  %v282 = vld [vmem:[%s6 + $0x20] sm:$0xf]
  %v283 = vld [vmem:[%s6 + $0x24] sm:$0xf]
  %v284 = vld [vmem:[%s6 + $0x28] sm:$0xf]
  %v285 = vld [vmem:[%s6 + $0x2c] sm:$0xf]
  %v286 = vld [vmem:[%s6 + $0x30] sm:$0xf]
  %v287 = vld [vmem:[%s6 + $0x34] sm:$0xf]
  %v288 = vld [vmem:[%s6 + $0x38] sm:$0xf]
  %v289 = vld [vmem:[%s6 + $0x3c] sm:$0xf]
  %v290 = vunpack.c.l.bf16 %v274
  %v291 = vunpack.c.l.bf16 %v275
  %v292 = vunpack.c.l.bf16 %v276
  %v293 = vunpack.c.l.bf16 %v277
  %v294 = vunpack.c.l.bf16 %v278
  %v295 = vunpack.c.l.bf16 %v279
  %v296 = vunpack.c.l.bf16 %v280
  %v297 = vunpack.c.l.bf16 %v281
  %v298 = vunpack.c.l.bf16 %v282
  %v299 = vunpack.c.l.bf16 %v283
  %v300 = vunpack.c.l.bf16 %v284
  %v301 = vunpack.c.l.bf16 %v285
  %v302 = vunpack.c.l.bf16 %v286
  %v303 = vunpack.c.l.bf16 %v287
  %v304 = vunpack.c.l.bf16 %v288
  %v305 = vunpack.c.l.bf16 %v289
  %v306 = vld [vmem:[%s7] sm:$0x1]
  %v307 = vunpack.c.l.bf16 %v306
  %v308 = vlaneseq
  %v309 = vshrl.u32 %v308, 7
  %v310 = vsub.s32 0, %v309
  %v311 = vrot.slane %v307, %v310
  %312 = vmatprep.subr.mxu0 0.0
  %313 = vmatpush1.msra.mxu0 %v290
  %314 = vmatprep.subr.mxu0 0.0
  %315 = vmatpush1.msra.mxu0 %v291
  %316 = vmatprep.subr.mxu0 0.0
  %317 = vmatpush1.msra.mxu0 %v292
  %318 = vmatprep.subr.mxu0 0.0
  %319 = vmatpush1.msra.mxu0 %v293
  %320 = vmatprep.subr.mxu0 0.0
  %321 = vmatpush1.msra.mxu0 %v294
  %322 = vmatprep.subr.mxu0 0.0
  %323 = vmatpush1.msra.mxu0 %v295
  %324 = vmatprep.subr.mxu0 0.0
  %325 = vmatpush1.msra.mxu0 %v296
  %326 = vmatprep.subr.mxu0 0.0
  %327 = vmatpush1.msra.mxu0 %v297
  %328 = vmatprep.subr.mxu0 0.0
  %329 = vmatpush1.msra.mxu0 %v298
  %330 = vmatprep.subr.mxu0 0.0
  %331 = vmatpush1.msra.mxu0 %v299
  %332 = vmatprep.subr.mxu0 0.0
  %333 = vmatpush1.msra.mxu0 %v300
  %334 = vmatprep.subr.mxu0 0.0
  %335 = vmatpush1.msra.mxu0 %v301
  %336 = vmatprep.subr.mxu0 0.0
  %337 = vmatpush1.msra.mxu0 %v302
  %338 = vmatprep.subr.mxu0 0.0
  %339 = vmatpush1.msra.mxu0 %v303
  %340 = vmatprep.subr.mxu0 0.0
  %341 = vmatpush1.msra.mxu0 %v304
  %342 = vmatprep.subr.mxu0 0.0
  %343 = vmatpush1.msra.mxu0 %v305
  %344 = vmatprep.subr.mxu0 0.0
  %345 = vmatpush1.msra.mxu0 0.0
  %346 = vmatprep.subr.mxu0 0.0
  %347 = vmatpush1.msra.mxu0 0.0
  %348 = vmatprep.subr.mxu0 0.0
  %349 = vmatpush1.msra.mxu0 0.0
  %350 = vmatprep.subr.mxu0 0.0
  %351 = vmatpush1.msra.mxu0 0.0
  %352 = vmatprep.subr.mxu0 0.0
  %353 = vmatpush1.msra.mxu0 0.0
  %354 = vmatprep.subr.mxu0 0.0
  %355 = vmatpush1.msra.mxu0 0.0
  %356 = vmatprep.subr.mxu0 0.0
  %357 = vmatpush1.msra.mxu0 0.0
  %358 = vmatprep.subr.mxu0 0.0
  %359 = vmatpush1.msra.mxu0 0.0
  %360 = vmatprep.subr.mxu0 0.0
  %361 = vmatpush1.msra.mxu0 0.0
  %362 = vmatprep.subr.mxu0 0.0
  %363 = vmatpush1.msra.mxu0 0.0
  %364 = vmatprep.subr.mxu0 0.0
  %365 = vmatpush1.msra.mxu0 0.0
  %366 = vmatprep.subr.mxu0 0.0
  %367 = vmatpush1.msra.mxu0 0.0
  %368 = vmatprep.subr.mxu0 0.0
  %369 = vmatpush1.msra.mxu0 0.0
  %370 = vmatprep.subr.mxu0 0.0
  %371 = vmatpush1.msra.mxu0 0.0
  %372 = vmatprep.subr.mxu0 0.0
  %373 = vmatpush1.msra.mxu0 0.0
  %374 = vmatprep.subr.mxu0 0.0
  %375 = vmatpush1.msra.mxu0 0.0
  %376 = vmatprep.mubr.f32.mxu0 0.0
  %377 = vmatmul.mubr.f32.gmra.mrb[0].mxu0 %v262
  %v378 = vpop.f32.mrb[0].mxu0
  %v379 = vadd.f32 %v311, %v378
  %v380 = vpop.f32.mrb[0].mxu0
  %381 = vmatprep.mubr.f32.mxu0 0.0
  %382 = vmatmul.mubr.f32.gmra.mrb[0].mxu0 %v263
  %v383 = vpop.f32.mrb[0].mxu0
  %v384 = vadd.f32 %v311, %v383
  %v385 = vpop.f32.mrb[0].mxu0
  %386 = vdwg.mxu0
  %387 = vst [vmem:[%s9] sm:$0xff] %v379
  %388 = vst [vmem:[%s9 + $0x8] sm:$0xff] %v384
  // Predicated region
  $region34: #{bert_qa_forward.18} parent=0 // pred_check
    _
  $region35: #{bert_qa_forward.18} parent=0 // pred_check_branch
    %390 = sbr.rel (0) target = $region37
  $region36: #{bert_qa_forward.18} parent=0 // pred_region
    _
  $region37: #{bert_qa_forward.18} parent=0 // pred_fallthru
    _
  // Predicated region
  $region38: #{bert_qa_forward.18} parent=0 // pred_check
    _
  $region39: #{bert_qa_forward.18} parent=0 // pred_check_branch
    %392 = sbr.rel (0) target = $region41
  $region40: #{bert_qa_forward.18} parent=0 // pred_region
    _
  $region41: #{bert_qa_forward.18} parent=0 // pred_fallthru
    _
  // Predicated region
  $region42: #{bert_qa_forward.18} parent=0 // pred_check
    _
  $region43: #{bert_qa_forward.18} parent=0 // pred_check_branch
    %394 = sbr.rel (0) target = $region45
  $region44: #{bert_qa_forward.18} parent=0 // pred_region
    _
  $region45: #{bert_qa_forward.18} parent=0 // pred_fallthru
    _
  // Predicated region
  $region46: #{bert_qa_forward.18} parent=0 // pred_check
    _
  $region47: #{bert_qa_forward.18} parent=0 // pred_check_branch
    %396 = sbr.rel (0) target = $region49
  $region48: #{bert_qa_forward.18} parent=0 // pred_region
    _
  $region49: #{bert_qa_forward.18} parent=0 // pred_fallthru
    _

</llo_original>
